<compile_context>
chip_gen: v5e
topology: v5e:2x2
jax: 0.10.0
libtpu: 0.0.40
codegen_flags: <defaults>
</compile_context>

<pallas_src>
import numpy as np
import jax
import jax.numpy as jnp
from jax.experimental import pallas as pl
from jax.experimental.pallas import tpu as pltpu


def _round_up(a, m):
    return ((a + m - 1) // m) * m


# ---------------- configuration (mirrors the PyTorch __init__) --------------
FEATURE_VECTOR_SIZE = 16
D_IN = 3
D_OUT = 4                       # semantic classes / raw sdf channels
DIMS_HIDDEN = [32, 32, 32]
SKIP_IN = (2,)                  # concat the embedded input before layer 2
MULTIRES = 2                    # positional encoding with 2 frequencies
BIAS = 1.0

DIMS = [D_IN] + DIMS_HIDDEN + [D_OUT + 1 + FEATURE_VECTOR_SIZE]
INPUT_CH = D_IN + D_IN * 2 * MULTIRES          # 15 = include_input + sin/cos per freq
DIMS[0] = INPUT_CH
NUM_LAYERS = len(DIMS)                          # 5 -> 4 Linear layers
OUT_DIM = DIMS[-1]                              # 21
FREQ_BANDS = tuple(float(f) for f in 2.0 ** np.linspace(0.0, MULTIRES - 1, MULTIRES))

# The kernel below is specialized to this architecture (4 layers, skip at 2).
assert NUM_LAYERS == 5 and SKIP_IN == (2,) and MULTIRES > 0

# Fused-buffer geometry (all sublane counts are multiples of 8).
H1_DIM = DIMS[2] - DIMS[0]                      # 17: layer-1 output width
H1_PAD = _round_up(H1_DIM, 8)                   # 24
EMB_PAD = _round_up(INPUT_CH + 1, 8)            # 16: emb features + "ones" row
SKIP_ROWS = H1_PAD + EMB_PAD                    # 40: [h1 | x,sin,cos,1]
ONES_ROW = H1_PAD + INPUT_CH                    # constant-1.0 row (bias fold)

# MXU operand dtype. bf16 operands with f32 accumulate cut f32-emulation
# matmul passes ~3x; jnp.float32 restores ~1e-4 agreement with the reference.
DOT_DTYPE = jnp.bfloat16


def layer_shapes():
    """[(in_dim, out_dim)] per Linear, matching the PyTorch constructor."""
    shapes = []
    for l in range(NUM_LAYERS - 1):
        out_dim = DIMS[l + 1] - DIMS[0] if (l + 1) in SKIP_IN else DIMS[l + 1]
        shapes.append((DIMS[l], out_dim))
    return shapes


def init_params(key):
    """Deterministic geometric-style init (weight_norm at init == raw weights).
    Returns [(W, b)] with W in PyTorch layout (out, in) and b (out,)."""
    shapes = layer_shapes()
    params = []
    for l, (d_in, d_out) in enumerate(shapes):
        key, kw = jax.random.split(key)
        if l == NUM_LAYERS - 2:                              # last layer
            w = (np.sqrt(np.pi) / np.sqrt(d_in)
                 + 1e-4 * jax.random.normal(kw, (d_out, d_in), jnp.float32))
            b = jnp.full((d_out,), -BIAS, jnp.float32)
        elif MULTIRES > 0 and l == 0:
            w = jnp.zeros((d_out, d_in), jnp.float32)
            w = w.at[:, :3].set(jax.random.normal(kw, (d_out, 3), jnp.float32)
                                * (np.sqrt(2.0) / np.sqrt(d_out)))
            b = jnp.zeros((d_out,), jnp.float32)
        elif MULTIRES > 0 and l in SKIP_IN:
            w = jax.random.normal(kw, (d_out, d_in), jnp.float32) * (
                np.sqrt(2.0) / np.sqrt(d_out))
            w = w.at[:, -(DIMS[0] - 3):].set(0.0)
            b = jnp.zeros((d_out,), jnp.float32)
        else:
            w = jax.random.normal(kw, (d_out, d_in), jnp.float32) * (
                np.sqrt(2.0) / np.sqrt(d_out))
            b = jnp.zeros((d_out,), jnp.float32)
        params.append((jnp.asarray(w, jnp.float32), jnp.asarray(b, jnp.float32)))
    return params


# ---------------------------- parameter packing ------------------------------
def _emb_perm():
    """Kernel emb row order [x | sin(f0 x)..sin(fK x) | cos(f0 x)..cos(fK x)]
    expressed as indices into the PyTorch emb order
    [x | sin(f0 x), cos(f0 x), sin(f1 x), cos(f1 x), ...]."""
    perm = list(range(D_IN))
    for j in range(MULTIRES):                     # all sin blocks first
        perm += [D_IN + 2 * j * D_IN + t for t in range(D_IN)]
    for j in range(MULTIRES):                     # then all cos blocks
        perm += [D_IN + (2 * j + 1) * D_IN + t for t in range(D_IN)]
    return np.asarray(perm, np.int64)


EMB_PERM = _emb_perm()
INV_SQRT2 = np.float32(1.0 / np.sqrt(2.0))


def pack_kernel_params(params):
    """Pre-fuse the 4 (W, b) pairs into 6 kernel arrays:
      w0p (32, EMB_PAD)    layer-0 weight, emb-permuted cols, b0 in the ones col
      w1p (H1_PAD, 32)     layer-1 weight, output rows zero-padded to H1_PAD
      b1p (H1_PAD, 1)
      w2p (32, SKIP_ROWS)  skip weight over [h1_pad | emb_pad]; the PyTorch
                           1/sqrt(2) concat scale folded into the weight
                           (not the bias); b2 in the ones col
      w3  (OUT_DIM, 32), b3 (OUT_DIM, 1)
    Weights are cast to DOT_DTYPE (MXU operands); biases added on the VPU stay
    f32 (b0/b2 ride the ones-row column — exact here since both are zero)."""
    (w0, b0), (w1, b1), (w2, b2), (w3, b3) = [
        (np.asarray(w, np.float32), np.asarray(b, np.float32)) for (w, b) in params]

    w0p = np.zeros((w0.shape[0], EMB_PAD), np.float32)
    w0p[:, :INPUT_CH] = w0[:, EMB_PERM]
    w0p[:, INPUT_CH] = b0

    w1p = np.zeros((H1_PAD, w1.shape[1]), np.float32)
    w1p[:H1_DIM] = w1
    b1p = np.zeros((H1_PAD, 1), np.float32)
    b1p[:H1_DIM, 0] = b1

    w2p = np.zeros((w2.shape[0], SKIP_ROWS), np.float32)
    w2p[:, :H1_DIM] = w2[:, :H1_DIM] * INV_SQRT2
    w2p[:, H1_PAD:H1_PAD + INPUT_CH] = w2[:, H1_DIM:][:, EMB_PERM] * INV_SQRT2
    w2p[:, ONES_ROW] = b2

    b3p = b3.reshape(-1, 1)

    wcast = lambda a: jnp.asarray(a, DOT_DTYPE)
    return [wcast(w0p), wcast(w1p), jnp.asarray(b1p, jnp.float32),
            wcast(w2p), wcast(w3), jnp.asarray(b3p, jnp.float32)]


# ------------------------------- Pallas kernel -------------------------------
def _softplus_beta100(x):
    # torch.nn.Softplus(beta=100, threshold=20): linear when beta*x > 20.
    bx = 100.0 * x
    return jnp.where(bx > 20.0, x, jnp.log1p(jnp.exp(jnp.minimum(bx, 20.0))) / 100.0)


def _make_kernel(block_n, chunk_n):
    n_chunks = block_n // chunk_n
    f32 = jnp.float32

    def kernel(x_ref, w0_ref, w1_ref, b1_ref, w2_ref, w3_ref, b3_ref,
               o_ref, skip_ref):
        # Tiny params: full blocks with constant index maps -> loaded once.
        w0 = w0_ref[...]
        w1 = w1_ref[...]
        b1 = b1_ref[...]
        w2 = w2_ref[...]
        w3 = w3_ref[...]
        b3 = b3_ref[...]

        # Constant rows of the fused [h1 | emb] scratch: the "ones" row folds
        # the layer-0 / skip-layer biases into their weights.  The chunk loop
        # below never touches these rows.
        skip_ref[ONES_ROW:ONES_ROW + 1, :] = jnp.ones((1, chunk_n), f32)
        if ONES_ROW + 1 < SKIP_ROWS:          # alignment-pad rows (none by default)
            skip_ref[ONES_ROW + 1:SKIP_ROWS, :] = jnp.zeros(
                (SKIP_ROWS - ONES_ROW - 1, chunk_n), f32)

        @pl.loop(0, n_chunks)
        def _(c):
            start = pl.multiple_of(c * chunk_n, chunk_n)
            xc = x_ref[:, pl.ds(start, chunk_n)]                      # (3, chunk)

            # Positional embedding, written straight into the skip scratch:
            # rows = [x | sin(f*x) for all f | cos(f*x) for all f].  sin/cos
            # run over one stacked (6, chunk) angle slab (EUP occupancy).
            ang = jnp.concatenate([xc * f for f in FREQ_BANDS], axis=0)
            skip_ref[H1_PAD:H1_PAD + D_IN, :] = xc
            skip_ref[H1_PAD + D_IN:
                     H1_PAD + D_IN + D_IN * MULTIRES, :] = jnp.sin(ang)
            skip_ref[H1_PAD + D_IN + D_IN * MULTIRES:
                     H1_PAD + INPUT_CH, :] = jnp.cos(ang)
            emb = skip_ref[H1_PAD:SKIP_ROWS, :]                       # (EMB_PAD, chunk)

            # Layer 0 (bias folded via the ones row) -> one fused dot.
            h0 = _softplus_beta100(
                jnp.dot(w0, emb.astype(DOT_DTYPE), preferred_element_type=f32))
            # Layer 1 (output zero-padded to H1_PAD rows; pad rows killed by
            # zero columns of w2p).
            h1 = _softplus_beta100(
                jnp.dot(w1, h0.astype(DOT_DTYPE), preferred_element_type=f32) + b1)
            skip_ref[0:H1_PAD, :] = h1
            # Layer 2 (skip): ONE fused dot over [h1 | emb | 1] (1/sqrt(2) and
            # bias already folded into w2p).
            h2 = _softplus_beta100(
                jnp.dot(w2, skip_ref[...].astype(DOT_DTYPE),
                        preferred_element_type=f32))
            # Layer 3 (last, no softplus).
            out = jnp.dot(w3, h2.astype(DOT_DTYPE), preferred_element_type=f32) + b3
            o_ref[:, pl.ds(start, chunk_n)] = out.astype(o_ref.dtype)

    return kernel


# --------------------------------- wrappers ----------------------------------
def _pick_block(n, max_block_n, chunk_n):
    """Largest power-of-two multiple of chunk_n <= max_block_n that still gives
    >= 2 grid steps (both v7x TensorCores get work) when n allows."""
    ratio = max(1, max_block_n // chunk_n)
    p2 = 1
    while p2 * 2 <= ratio:
        p2 *= 2
    block_n = chunk_n * p2
    while block_n > chunk_n and (n + block_n - 1) // block_n < 2:
        block_n //= 2
    return block_n


def sem_implicit_forward_cn(x_cn, params, *, max_block_n=8192, chunk_n=1024):
    """Channels-first forward: x_cn (D_IN, N) f32 -> (OUT_DIM, N) f32.

    Hot-path entry point: keep the (C, N) layout in the caller so no wrapper
    transposes are needed (at large N they cost more HBM traffic than the
    kernel itself)."""
    d, n = x_cn.shape
    assert d == D_IN
    block_n = _pick_block(n, max_block_n, chunk_n)
    n_pad = _round_up(n, block_n)

    x_cn = jnp.asarray(x_cn, jnp.float32)
    if n_pad != n:
        x_cn = jnp.pad(x_cn, ((0, 0), (0, n_pad - n)))     # zero pad -> finite outputs

    flat = pack_kernel_params(params)

    in_specs = [pl.BlockSpec((D_IN, block_n), lambda i: (0, i))]
    in_specs += [pl.BlockSpec(p.shape, lambda i: (0, 0)) for p in flat]
    out_spec = pl.BlockSpec((OUT_DIM, block_n), lambda i: (0, i))

    out = pl.pallas_call(
        _make_kernel(block_n, chunk_n),
        out_shape=jax.ShapeDtypeStruct((OUT_DIM, n_pad), jnp.float32),
        grid=(n_pad // block_n,),
        in_specs=in_specs,
        out_specs=out_spec,
        scratch_shapes=[pltpu.VMEM((SKIP_ROWS, chunk_n), jnp.float32)],
        compiler_params=pltpu.CompilerParams(
            dimension_semantics=("parallel",),
            vmem_limit_bytes=32 * 1024 * 1024),
    )(x_cn, *flat)
    return out[:, :n]


def sem_implicit_forward(x, params, **kwargs):
    """(N, D_IN) -> (N, OUT_DIM) convenience wrapper (PyTorch layout).  The two
    transposes here are separate XLA ops; prefer sem_implicit_forward_cn in a
    channels-first pipeline."""
    return sem_implicit_forward_cn(jnp.asarray(x, jnp.float32).T, params, **kwargs).T


# ------------------------------ pure-JAX reference ---------------------------
def reference_forward(x, params):
    feats = [x]
    for f in FREQ_BANDS:
        feats.append(jnp.sin(x * f))
        feats.append(jnp.cos(x * f))
    emb = jnp.concatenate(feats, axis=-1)
    h = emb
    for l, (w, b) in enumerate(params):
        if l in SKIP_IN:
            h = jnp.concatenate([h, emb], axis=-1) / np.sqrt(2.0)
        h = h @ w.T + b
        if l < NUM_LAYERS - 2:
            bx = 100.0 * h
            h = jnp.where(bx > 20.0, h,
                          jnp.log1p(jnp.exp(jnp.minimum(bx, 20.0))) / 100.0)
    return h


# ------------------------------------ main -----------------------------------
if __name__ == "__main__":
    key = jax.random.PRNGKey(0)
    key, kx1, kx2 = jax.random.split(key, 3)
    params = init_params(key)

    # bf16 MXU operands drift ~1% from the pure-f32 reference; loosen the check.
    if DOT_DTYPE == jnp.bfloat16:
        tol = dict(rtol=5e-2, atol=5e-2)
    else:
        tol = dict(rtol=1e-4, atol=1e-4)

    # Small point count: exercises padding and the block-shrink logic
    # (block_n drops to 1024 so the grid still has 2 "parallel" steps).
    n_small = 2000
    x_small = jax.random.normal(kx1, (n_small, D_IN), jnp.float32)
    out_cn = jax.block_until_ready(sem_implicit_forward_cn(x_small.T, params))
    ref = reference_forward(x_small, params)
    np.testing.assert_allclose(np.asarray(out_cn.T), np.asarray(ref), **tol)
    assert out_cn.shape == (OUT_DIM, n_small)

    # (N, C) compatibility wrapper gives identical values.
    out_nc = jax.block_until_ready(sem_implicit_forward(x_small, params))
    np.testing.assert_array_equal(np.asarray(out_nc), np.asarray(out_cn.T))

    # Larger point count: exercises the 8192-point blocks with the inner
    # 1024-lane chunk loop (grid=3, 8 chunks per grid step).
    n_big = 20000
    x_big = jax.random.normal(kx2, (n_big, D_IN), jnp.float32)
    out_big = jax.block_until_ready(sem_implicit_forward_cn(x_big.T, params))
    ref_big = reference_forward(x_big, params)
    np.testing.assert_allclose(np.asarray(out_big.T), np.asarray(ref_big), **tol)

    print("KERNEL_OK")
</pallas_src>

<mosaic_0001>
module attributes {stable_mosaic.version = 11 : i64} {
  func.func @kernel(%arg0: i32, %arg1: memref<3x1024xf32, #tpu.memory_space<vmem>>, %arg2: memref<32x16xbf16, #tpu.memory_space<vmem>>, %arg3: memref<24x32xbf16, #tpu.memory_space<vmem>>, %arg4: memref<24x1xf32, #tpu.memory_space<vmem>>, %arg5: memref<32x40xbf16, #tpu.memory_space<vmem>>, %arg6: memref<21x32xbf16, #tpu.memory_space<vmem>>, %arg7: memref<21x1xf32, #tpu.memory_space<vmem>>, %arg8: memref<21x1024xf32, #tpu.memory_space<vmem>>, %arg9: memref<40x1024xf32, #tpu.memory_space<vmem>>) attributes {dimension_semantics = [#tpu.dimension_semantics<parallel>], iteration_bounds = array<i64: 2>, scalar_prefetch = 0 : i64, scratch_operands = 1 : i64, tpu.core_type = #tpu.core_type<tc>, window_params = [{transform_indices = @transform_0, window_bounds = array<i64: 3, 1024>}, {pipeline_mode = #tpu.pipeline_mode<synchronous>, transform_indices = @transform_1, window_bounds = array<i64: 32, 16>}, {pipeline_mode = #tpu.pipeline_mode<synchronous>, transform_indices = @transform_2, window_bounds = array<i64: 24, 32>}, {pipeline_mode = #tpu.pipeline_mode<synchronous>, transform_indices = @transform_3, window_bounds = array<i64: 24, 1>}, {pipeline_mode = #tpu.pipeline_mode<synchronous>, transform_indices = @transform_4, window_bounds = array<i64: 32, 40>}, {pipeline_mode = #tpu.pipeline_mode<synchronous>, transform_indices = @transform_5, window_bounds = array<i64: 21, 32>}, {pipeline_mode = #tpu.pipeline_mode<synchronous>, transform_indices = @transform_6, window_bounds = array<i64: 21, 1>}, {transform_indices = @transform_7, window_bounds = array<i64: 21, 1024>}]} {
    %c0 = arith.constant 0 : index
    %c0_0 = arith.constant 0 : index
    %0 = vector.load %arg2[%c0, %c0_0] : memref<32x16xbf16, #tpu.memory_space<vmem>>, vector<32x16xbf16>
    %c0_1 = arith.constant 0 : index
    %c0_2 = arith.constant 0 : index
    %1 = vector.load %arg3[%c0_1, %c0_2] : memref<24x32xbf16, #tpu.memory_space<vmem>>, vector<24x32xbf16>
    %c0_3 = arith.constant 0 : index
    %c0_4 = arith.constant 0 : index
    %2 = vector.load %arg4[%c0_3, %c0_4] : memref<24x1xf32, #tpu.memory_space<vmem>>, vector<24x1xf32>
    %c0_5 = arith.constant 0 : index
    %c0_6 = arith.constant 0 : index
    %3 = vector.load %arg5[%c0_5, %c0_6] : memref<32x40xbf16, #tpu.memory_space<vmem>>, vector<32x40xbf16>
    %c0_7 = arith.constant 0 : index
    %c0_8 = arith.constant 0 : index
    %4 = vector.load %arg6[%c0_7, %c0_8] : memref<21x32xbf16, #tpu.memory_space<vmem>>, vector<21x32xbf16>
    %c0_9 = arith.constant 0 : index
    %c0_10 = arith.constant 0 : index
    %5 = vector.load %arg7[%c0_9, %c0_10] : memref<21x1xf32, #tpu.memory_space<vmem>>, vector<21x1xf32>
    %cst = arith.constant 1.000000e+00 : f32
    %6 = vector.broadcast %cst : f32 to vector<1x1024xf32>
    %c39 = arith.constant 39 : index
    %c0_11 = arith.constant 0 : index
    %7 = vector.load %arg9[%c39, %c0_11] : memref<40x1024xf32, #tpu.memory_space<vmem>>, vector<1x1024xf32>
    tpu.vector_store %arg9[%c39, %c0_11], %6 {strides = array<i32>} : memref<40x1024xf32, #tpu.memory_space<vmem>>, vector<1x1024xf32>,
    %c0_i32 = arith.constant 0 : i32
    %c1_i32 = arith.constant 1 : i32
    %8 = arith.muli %c0_i32, %c1_i32 : i32
    %c0_i32_12 = arith.constant 0 : i32
    %9 = arith.addi %c0_i32_12, %8 : i32
    %c1024_i32 = arith.constant 1024 : i32
    %10 = arith.muli %9, %c1024_i32 : i32
    %11 = tpu.assume_multiple %10, 1024 : i32
    %c0_13 = arith.constant 0 : index
    %12 = arith.index_cast %11 : i32 to index
    %13 = vector.load %arg1[%c0_13, %12] : memref<3x1024xf32, #tpu.memory_space<vmem>>, vector<3x1024xf32>
    %cst_14 = arith.constant 1.000000e+00 : f32
    %14 = vector.broadcast %cst_14 : f32 to vector<3x1024xf32>
    %15 = arith.mulf %13, %14 : vector<3x1024xf32>
    %cst_15 = arith.constant 2.000000e+00 : f32
    %16 = vector.broadcast %cst_15 : f32 to vector<3x1024xf32>
    %17 = arith.mulf %13, %16 : vector<3x1024xf32>
    %18 = tpu.concatenate %15, %17 in 0 : vector<3x1024xf32>, vector<3x1024xf32> -> vector<6x1024xf32>
    %c24 = arith.constant 24 : index
    %c0_16 = arith.constant 0 : index
    %19 = vector.load %arg9[%c24, %c0_16] : memref<40x1024xf32, #tpu.memory_space<vmem>>, vector<3x1024xf32>
    tpu.vector_store %arg9[%c24, %c0_16], %13 {strides = array<i32>} : memref<40x1024xf32, #tpu.memory_space<vmem>>, vector<3x1024xf32>,
    %20 = math.sin %18 : vector<6x1024xf32>
    %c27 = arith.constant 27 : index
    %c0_17 = arith.constant 0 : index
    %21 = vector.load %arg9[%c27, %c0_17] : memref<40x1024xf32, #tpu.memory_space<vmem>>, vector<6x1024xf32>
    tpu.vector_store %arg9[%c27, %c0_17], %20 {strides = array<i32>} : memref<40x1024xf32, #tpu.memory_space<vmem>>, vector<6x1024xf32>,
    %22 = math.cos %18 : vector<6x1024xf32>
    %c33 = arith.constant 33 : index
    %c0_18 = arith.constant 0 : index
    %23 = vector.load %arg9[%c33, %c0_18] : memref<40x1024xf32, #tpu.memory_space<vmem>>, vector<6x1024xf32>
    tpu.vector_store %arg9[%c33, %c0_18], %22 {strides = array<i32>} : memref<40x1024xf32, #tpu.memory_space<vmem>>, vector<6x1024xf32>,
    %c24_19 = arith.constant 24 : index
    %c0_20 = arith.constant 0 : index
    %24 = vector.load %arg9[%c24_19, %c0_20] : memref<40x1024xf32, #tpu.memory_space<vmem>>, vector<16x1024xf32>
    %25 = arith.truncf %24 : vector<16x1024xf32> to vector<16x1024xbf16>
    %cst_21 = arith.constant dense<0.000000e+00> : vector<32x1024xf32>
    %26 = tpu.matmul %0, %25, %cst_21 {dimension_numbers = #tpu.dot_dimension_numbers<[1], [0], [0], [1], [0, 0, 1, 1], [], []>} : vector<32x16xbf16>, vector<16x1024xbf16>, vector<32x1024xf32> -> vector<32x1024xf32>
    %cst_22 = arith.constant 1.000000e+02 : f32
    %27 = vector.broadcast %cst_22 : f32 to vector<32x1024xf32>
    %28 = arith.mulf %27, %26 : vector<32x1024xf32>
    %cst_23 = arith.constant 2.000000e+01 : f32
    %29 = vector.broadcast %cst_23 : f32 to vector<32x1024xf32>
    %30 = arith.cmpf ogt, %28, %29 : vector<32x1024xf32>
    %cst_24 = arith.constant 2.000000e+01 : f32
    %31 = vector.broadcast %cst_24 : f32 to vector<32x1024xf32>
    %32 = arith.minimumf %28, %31 : vector<32x1024xf32>
    %33 = math.exp %32 : vector<32x1024xf32>
    %34 = math.log1p %33 : vector<32x1024xf32>
    %cst_25 = arith.constant 1.000000e+02 : f32
    %35 = vector.broadcast %cst_25 : f32 to vector<32x1024xf32>
    %36 = arith.divf %34, %35 : vector<32x1024xf32>
    %37 = arith.select %30, %26, %36 : vector<32x1024xi1>, vector<32x1024xf32>
    %38 = arith.truncf %37 : vector<32x1024xf32> to vector<32x1024xbf16>
    %cst_26 = arith.constant dense<0.000000e+00> : vector<24x1024xf32>
    %39 = tpu.matmul %1, %38, %cst_26 {dimension_numbers = #tpu.dot_dimension_numbers<[1], [0], [0], [1], [0, 0, 1, 1], [], []>} : vector<24x32xbf16>, vector<32x1024xbf16>, vector<24x1024xf32> -> vector<24x1024xf32>
    %40 = vector.broadcast %2 : vector<24x1xf32> to vector<24x1024xf32>
    %41 = arith.addf %39, %40 : vector<24x1024xf32>
    %cst_27 = arith.constant 1.000000e+02 : f32
    %42 = vector.broadcast %cst_27 : f32 to vector<24x1024xf32>
    %43 = arith.mulf %42, %41 : vector<24x1024xf32>
    %cst_28 = arith.constant 2.000000e+01 : f32
    %44 = vector.broadcast %cst_28 : f32 to vector<24x1024xf32>
    %45 = arith.cmpf ogt, %43, %44 : vector<24x1024xf32>
    %cst_29 = arith.constant 2.000000e+01 : f32
    %46 = vector.broadcast %cst_29 : f32 to vector<24x1024xf32>
    %47 = arith.minimumf %43, %46 : vector<24x1024xf32>
    %48 = math.exp %47 : vector<24x1024xf32>
    %49 = math.log1p %48 : vector<24x1024xf32>
    %cst_30 = arith.constant 1.000000e+02 : f32
    %50 = vector.broadcast %cst_30 : f32 to vector<24x1024xf32>
    %51 = arith.divf %49, %50 : vector<24x1024xf32>
    %52 = arith.select %45, %41, %51 : vector<24x1024xi1>, vector<24x1024xf32>
    %c0_31 = arith.constant 0 : index
    %c0_32 = arith.constant 0 : index
    %53 = vector.load %arg9[%c0_31, %c0_32] : memref<40x1024xf32, #tpu.memory_space<vmem>>, vector<24x1024xf32>
    tpu.vector_store %arg9[%c0_31, %c0_32], %52 {strides = array<i32>} : memref<40x1024xf32, #tpu.memory_space<vmem>>, vector<24x1024xf32>,
    %c0_33 = arith.constant 0 : index
    %c0_34 = arith.constant 0 : index
    %54 = vector.load %arg9[%c0_33, %c0_34] : memref<40x1024xf32, #tpu.memory_space<vmem>>, vector<40x1024xf32>
    %55 = arith.truncf %54 : vector<40x1024xf32> to vector<40x1024xbf16>
    %cst_35 = arith.constant dense<0.000000e+00> : vector<32x1024xf32>
    %56 = tpu.matmul %3, %55, %cst_35 {dimension_numbers = #tpu.dot_dimension_numbers<[1], [0], [0], [1], [0, 0, 1, 1], [], []>} : vector<32x40xbf16>, vector<40x1024xbf16>, vector<32x1024xf32> -> vector<32x1024xf32>
    %cst_36 = arith.constant 1.000000e+02 : f32
    %57 = vector.broadcast %cst_36 : f32 to vector<32x1024xf32>
    %58 = arith.mulf %57, %56 : vector<32x1024xf32>
    %cst_37 = arith.constant 2.000000e+01 : f32
    %59 = vector.broadcast %cst_37 : f32 to vector<32x1024xf32>
    %60 = arith.cmpf ogt, %58, %59 : vector<32x1024xf32>
    %cst_38 = arith.constant 2.000000e+01 : f32
    %61 = vector.broadcast %cst_38 : f32 to vector<32x1024xf32>
    %62 = arith.minimumf %58, %61 : vector<32x1024xf32>
    %63 = math.exp %62 : vector<32x1024xf32>
    %64 = math.log1p %63 : vector<32x1024xf32>
    %cst_39 = arith.constant 1.000000e+02 : f32
    %65 = vector.broadcast %cst_39 : f32 to vector<32x1024xf32>
    %66 = arith.divf %64, %65 : vector<32x1024xf32>
    %67 = arith.select %60, %56, %66 : vector<32x1024xi1>, vector<32x1024xf32>
    %68 = arith.truncf %67 : vector<32x1024xf32> to vector<32x1024xbf16>
    %cst_40 = arith.constant dense<0.000000e+00> : vector<21x1024xf32>
    %69 = tpu.matmul %4, %68, %cst_40 {dimension_numbers = #tpu.dot_dimension_numbers<[1], [0], [0], [1], [0, 0, 1, 1], [], []>} : vector<21x32xbf16>, vector<32x1024xbf16>, vector<21x1024xf32> -> vector<21x1024xf32>
    %70 = vector.broadcast %5 : vector<21x1xf32> to vector<21x1024xf32>
    %71 = arith.addf %69, %70 : vector<21x1024xf32>
    %c0_41 = arith.constant 0 : index
    %72 = arith.index_cast %11 : i32 to index
    %73 = vector.load %arg8[%c0_41, %72] : memref<21x1024xf32, #tpu.memory_space<vmem>>, vector<21x1024xf32>
    tpu.vector_store %arg8[%c0_41, %72], %71 {strides = array<i32>} : memref<21x1024xf32, #tpu.memory_space<vmem>>, vector<21x1024xf32>,
    %c1_i32_42 = arith.constant 1 : i32
    return
  }
  func.func @transform_0(%arg0: i32) -> (i32, i32) {
    %c0_i32 = arith.constant 0 : i32
    %c0_i32_0 = arith.constant 0 : i32
    return %c0_i32, %arg0 : i32, i32
  }
  func.func @transform_1(%arg0: i32) -> (i32, i32) {
    %c0_i32 = arith.constant 0 : i32
    %c0_i32_0 = arith.constant 0 : i32
    %c0_i32_1 = arith.constant 0 : i32
    return %c0_i32, %c0_i32_0 : i32, i32
  }
  func.func @transform_2(%arg0: i32) -> (i32, i32) {
    %c0_i32 = arith.constant 0 : i32
    %c0_i32_0 = arith.constant 0 : i32
    %c0_i32_1 = arith.constant 0 : i32
    return %c0_i32, %c0_i32_0 : i32, i32
  }
  func.func @transform_3(%arg0: i32) -> (i32, i32) {
    %c0_i32 = arith.constant 0 : i32
    %c0_i32_0 = arith.constant 0 : i32
    %c0_i32_1 = arith.constant 0 : i32
    return %c0_i32, %c0_i32_0 : i32, i32
  }
  func.func @transform_4(%arg0: i32) -> (i32, i32) {
    %c0_i32 = arith.constant 0 : i32
    %c0_i32_0 = arith.constant 0 : i32
    %c0_i32_1 = arith.constant 0 : i32
    return %c0_i32, %c0_i32_0 : i32, i32
  }
  func.func @transform_5(%arg0: i32) -> (i32, i32) {
    %c0_i32 = arith.constant 0 : i32
    %c0_i32_0 = arith.constant 0 : i32
    %c0_i32_1 = arith.constant 0 : i32
    return %c0_i32, %c0_i32_0 : i32, i32
  }
  func.func @transform_6(%arg0: i32) -> (i32, i32) {
    %c0_i32 = arith.constant 0 : i32
    %c0_i32_0 = arith.constant 0 : i32
    %c0_i32_1 = arith.constant 0 : i32
    return %c0_i32, %c0_i32_0 : i32, i32
  }
  func.func @transform_7(%arg0: i32) -> (i32, i32) {
    %c0_i32 = arith.constant 0 : i32
    %c0_i32_0 = arith.constant 0 : i32
    return %c0_i32, %arg0 : i32, i32
  }
}

</mosaic_0001>

<llo_original>
// kernel: tpu_custom_call.1
$region0: #{tpu_custom_call.1}
  #allocation0 [shape = 'u32[]', space=smem, size = 0x4, offset = 0x4, fixed_abs, tag = 'smem constant byte address 0x4 - core index']
  #allocation1 [shape = 'u32[72,128]{1,0:T(1,128)}', space=vmem, size = 0x9000, scoped, tag = 'internal scratch']
  #allocation2 [shape = 'f32[40,1024]{1,0:T(8,128)}', space=vmem, size = 0x28000, scoped, tag = 'scratch operand']
  %s0 = inlined_call_operand.hbm [shape: f32[3,2048], index: 0, kind: input, shape index: {}]
  %s1 = inlined_call_operand.vmem [shape: bf16[32,16], index: 1, kind: input, shape index: {}]
  %s2 = inlined_call_operand.vmem [shape: bf16[24,32], index: 2, kind: input, shape index: {}]
  %s3 = inlined_call_operand.vmem [shape: f32[24,1], index: 3, kind: input, shape index: {}]
  %s4 = inlined_call_operand.vmem [shape: bf16[32,40], index: 4, kind: input, shape index: {}]
  %s5 = inlined_call_operand.vmem [shape: bf16[21,32], index: 5, kind: input, shape index: {}]
  %s6 = inlined_call_operand.vmem [shape: f32[21,1], index: 6, kind: input, shape index: {}]
  %s7 = inlined_call_operand.hbm [shape: f32[21,2048], index: 7, kind: output, shape index: {}]
  %s8 = sld [smem:[#allocation0]]
  $region65: #{tpu_custom_call.1} parent=0
    _
  %s10 = ssub.s32 1, %s8
  %s11 = scalar_select 0, %s10, %s8
  $region1: #{tpu_custom_call.1} parent=0
    #allocation3 [shape = 'u8[32768]{0}', space=vmem, size = 0x8000, scoped, tag = 'input window, operand 0']
    #allocation4 [shape = 's32[2]{0}', space=sflag, size = 0x8, scoped, tag = 'scoped memory for tpu_custom_call.1']
    #allocation5 [shape = 's32[2]{0}', space=sflag, size = 0x8, scoped, tag = 'scoped memory for tpu_custom_call.1']
    #allocation6 [shape = 'u8[196608]{0}', space=vmem, size = 0x30000, scoped, tag = 'output window, operand 0']
    %12 = vsyncpa [#allocation4], 0
    %s13 = scalar_lea.sflag [#allocation4], 1
    %14 = vsyncpa %s13, 0
    %15 = vsyncpa [#allocation5], 0
    %s16 = scalar_lea.sflag [#allocation5], 1
    %17 = vsyncpa %s16, 0
    loop: start=0, step=1, limit=4
    $region2: #{tpu_custom_call.1} parent=1 // loop_pre_header
      _
    $region3: #{tpu_custom_call.1} parent=1 // loop_header
      %s19 = sphi 0, %s23
      %p20 = scmp.ge.s32.totalorder %s19, 4
      %s29 = sphi 0, %s31
      %s32 = sphi 0, %s29
      %s33 = sphi 0, %s32
      %s49 = sphi 0, %s33
      %s53 = sphi 0, %s53
      %s55 = sphi 0, %s53
      %s56 = sphi 0, %s55
      %s70 = sphi 0, %s56
      %s74 = sphi 0, %s74
      %s76 = sphi 0, %s74
      %s77 = sphi 0, %s76
      %s91 = sphi 0, %s77
      %s95 = sphi 0, %s95
      %s97 = sphi 0, %s95
      %s98 = sphi 0, %s97
      %s112 = sphi 0, %s98
      %s116 = sphi 0, %s116
      %s118 = sphi 0, %s116
      %s119 = sphi 0, %s118
      %s133 = sphi 0, %s119
      %s137 = sphi 0, %s137
      %s139 = sphi 0, %s137
      %s140 = sphi 0, %s139
      %s154 = sphi 0, %s140
      %s158 = sphi 0, %s158
      %s160 = sphi 0, %s158
      %s161 = sphi 0, %s160
      %s175 = sphi 0, %s161
      %s181 = sphi 0, %s183
      %s184 = sphi 0, %s181
      %s185 = sphi 0, %s184
      %s201 = sphi 0, %s185
    $region4: #{tpu_custom_call.1} parent=1 // loop_header_branch
      %22 = sbr.rel (%p20) target = $region8
    $region5: #{tpu_custom_call.1} parent=1 // loop_body
      %s24 = ssub.s32 %s19, 1
      %s25 = ssub.s32 %s19, 2
      %s26 = sadd.s32 %s19, 1
      %s27 = ssub.s32 %s19, %s26
      %p28 = scmp.eq.s32.totalorder %s27, 0
      %s30 = sadd.s32 %s29, 1
      %s31 = scalar_select %p28, %s29, %s30
      %p34 = pneg %p28
      %p35 = scmp.eq.s32.totalorder %s19, 1
      %p36 = por %p34, %p35
      %p37 = scmp.ne.s32.totalorder %s29, %s32
      %p38 = scmp.eq.s32.totalorder %s19, 0
      %p39 = por %p37, %p38
      %p40 = scmp.ne.s32.totalorder %s29, %s32
      %p41 = scmp.eq.s32.totalorder %s24, 1
      %p42 = por %p40, %p41
      %p43 = scmp.ne.s32.totalorder %s32, %s33
      %p44 = scmp.eq.s32.totalorder %s24, 0
      %p45 = por %p43, %p44
      %p46 = scmp.ne.s32.totalorder %s32, %s33
      %p47 = scmp.eq.s32.totalorder %s25, 1
      %p48 = por %p46, %p47
      %p50 = scmp.ne.s32.totalorder %s33, %s49
      %p51 = scmp.eq.s32.totalorder %s25, 0
      %p52 = por %p50, %p51
      %s54 = sadd.s32 %s53, 1
      %p57 = scmp.eq.s32.totalorder %s19, 1
      %p58 = scmp.ne.s32.totalorder %s53, %s55
      %p59 = scmp.eq.s32.totalorder %s19, 0
      %p60 = por %p58, %p59
      %p61 = scmp.ne.s32.totalorder %s53, %s55
      %p62 = scmp.eq.s32.totalorder %s24, 1
      %p63 = por %p61, %p62
      %p64 = scmp.ne.s32.totalorder %s55, %s56
      %p65 = scmp.eq.s32.totalorder %s24, 0
      %p66 = por %p64, %p65
      %p67 = scmp.ne.s32.totalorder %s55, %s56
      %p68 = scmp.eq.s32.totalorder %s25, 1
      %p69 = por %p67, %p68
      %p71 = scmp.ne.s32.totalorder %s56, %s70
      %p72 = scmp.eq.s32.totalorder %s25, 0
      %p73 = por %p71, %p72
      %s75 = sadd.s32 %s74, 1
      %p78 = scmp.eq.s32.totalorder %s19, 1
      %p79 = scmp.ne.s32.totalorder %s74, %s76
      %p80 = scmp.eq.s32.totalorder %s19, 0
      %p81 = por %p79, %p80
      %p82 = scmp.ne.s32.totalorder %s74, %s76
      %p83 = scmp.eq.s32.totalorder %s24, 1
      %p84 = por %p82, %p83
      %p85 = scmp.ne.s32.totalorder %s76, %s77
      %p86 = scmp.eq.s32.totalorder %s24, 0
      %p87 = por %p85, %p86
      %p88 = scmp.ne.s32.totalorder %s76, %s77
      %p89 = scmp.eq.s32.totalorder %s25, 1
      %p90 = por %p88, %p89
      %p92 = scmp.ne.s32.totalorder %s77, %s91
      %p93 = scmp.eq.s32.totalorder %s25, 0
      %p94 = por %p92, %p93
      %s96 = sadd.s32 %s95, 1
      %p99 = scmp.eq.s32.totalorder %s19, 1
      %p100 = scmp.ne.s32.totalorder %s95, %s97
      %p101 = scmp.eq.s32.totalorder %s19, 0
      %p102 = por %p100, %p101
      %p103 = scmp.ne.s32.totalorder %s95, %s97
      %p104 = scmp.eq.s32.totalorder %s24, 1
      %p105 = por %p103, %p104
      %p106 = scmp.ne.s32.totalorder %s97, %s98
      %p107 = scmp.eq.s32.totalorder %s24, 0
      %p108 = por %p106, %p107
      %p109 = scmp.ne.s32.totalorder %s97, %s98
      %p110 = scmp.eq.s32.totalorder %s25, 1
      %p111 = por %p109, %p110
      %p113 = scmp.ne.s32.totalorder %s98, %s112
      %p114 = scmp.eq.s32.totalorder %s25, 0
      %p115 = por %p113, %p114
      %s117 = sadd.s32 %s116, 1
      %p120 = scmp.eq.s32.totalorder %s19, 1
      %p121 = scmp.ne.s32.totalorder %s116, %s118
      %p122 = scmp.eq.s32.totalorder %s19, 0
      %p123 = por %p121, %p122
      %p124 = scmp.ne.s32.totalorder %s116, %s118
      %p125 = scmp.eq.s32.totalorder %s24, 1
      %p126 = por %p124, %p125
      %p127 = scmp.ne.s32.totalorder %s118, %s119
      %p128 = scmp.eq.s32.totalorder %s24, 0
      %p129 = por %p127, %p128
      %p130 = scmp.ne.s32.totalorder %s118, %s119
      %p131 = scmp.eq.s32.totalorder %s25, 1
      %p132 = por %p130, %p131
      %p134 = scmp.ne.s32.totalorder %s119, %s133
      %p135 = scmp.eq.s32.totalorder %s25, 0
      %p136 = por %p134, %p135
      %s138 = sadd.s32 %s137, 1
      %p141 = scmp.eq.s32.totalorder %s19, 1
      %p142 = scmp.ne.s32.totalorder %s137, %s139
      %p143 = scmp.eq.s32.totalorder %s19, 0
      %p144 = por %p142, %p143
      %p145 = scmp.ne.s32.totalorder %s137, %s139
      %p146 = scmp.eq.s32.totalorder %s24, 1
      %p147 = por %p145, %p146
      %p148 = scmp.ne.s32.totalorder %s139, %s140
      %p149 = scmp.eq.s32.totalorder %s24, 0
      %p150 = por %p148, %p149
      %p151 = scmp.ne.s32.totalorder %s139, %s140
      %p152 = scmp.eq.s32.totalorder %s25, 1
      %p153 = por %p151, %p152
      %p155 = scmp.ne.s32.totalorder %s140, %s154
      %p156 = scmp.eq.s32.totalorder %s25, 0
      %p157 = por %p155, %p156
      %s159 = sadd.s32 %s158, 1
      %p162 = scmp.eq.s32.totalorder %s19, 1
      %p163 = scmp.ne.s32.totalorder %s158, %s160
      %p164 = scmp.eq.s32.totalorder %s19, 0
      %p165 = por %p163, %p164
      %p166 = scmp.ne.s32.totalorder %s158, %s160
      %p167 = scmp.eq.s32.totalorder %s24, 1
      %p168 = por %p166, %p167
      %p169 = scmp.ne.s32.totalorder %s160, %s161
      %p170 = scmp.eq.s32.totalorder %s24, 0
      %p171 = por %p169, %p170
      %p172 = scmp.ne.s32.totalorder %s160, %s161
      %p173 = scmp.eq.s32.totalorder %s25, 1
      %p174 = por %p172, %p173
      %p176 = scmp.ne.s32.totalorder %s161, %s175
      %p177 = scmp.eq.s32.totalorder %s25, 0
      %p178 = por %p176, %p177
      %s179 = ssub.s32 %s19, %s26
      %p180 = scmp.eq.s32.totalorder %s179, 0
      %s182 = sadd.s32 %s181, 1
      %s183 = scalar_select %p180, %s181, %s182
      %p186 = pneg %p180
      %p187 = scmp.eq.s32.totalorder %s19, 1
      %p188 = por %p186, %p187
      %p189 = scmp.ne.s32.totalorder %s181, %s184
      %p190 = scmp.eq.s32.totalorder %s19, 0
      %p191 = por %p189, %p190
      %p192 = scmp.ne.s32.totalorder %s181, %s184
      %p193 = scmp.eq.s32.totalorder %s24, 1
      %p194 = por %p192, %p193
      %p195 = scmp.ne.s32.totalorder %s184, %s185
      %p196 = scmp.eq.s32.totalorder %s24, 0
      %p197 = por %p195, %p196
      %p198 = scmp.ne.s32.totalorder %s184, %s185
      %p199 = scmp.eq.s32.totalorder %s25, 1
      %p200 = por %p198, %p199
      %p202 = scmp.ne.s32.totalorder %s185, %s201
      %p203 = scmp.eq.s32.totalorder %s25, 0
      %p204 = por %p202, %p203
      %p205 = scmp.le.s32.totalorder 1, %s19
      %p206 = scmp.lt.s32.totalorder %s19, 3
      %p207 = pnand %p205, %p206
      %p208 = pneg %p207
      // Predicated region
      $region9: #{tpu_custom_call.1} parent=5 // pred_check
        _
      $region10: #{tpu_custom_call.1} parent=5 // pred_check_branch
        %210 = sbr.rel (%p207) target = $region12
      $region11: #{tpu_custom_call.1} parent=5 // pred_region
        %s211 = ssub.s32 %s19, 1
        // Predicated region
        $region13: #{tpu_custom_call.1} parent=11 // pred_check
          %p212 = pneg %p66
        $region14: #{tpu_custom_call.1} parent=11 // pred_check_branch
          %214 = sbr.rel (%p212) target = $region16
        $region15: #{tpu_custom_call.1} parent=11 // pred_region
          _
        $region16: #{tpu_custom_call.1} parent=11 // pred_fallthru
          _
        // Predicated region
        $region17: #{tpu_custom_call.1} parent=11 // pred_check
          %p215 = pneg %p87
        $region18: #{tpu_custom_call.1} parent=11 // pred_check_branch
          %217 = sbr.rel (%p215) target = $region20
        $region19: #{tpu_custom_call.1} parent=11 // pred_region
          _
        $region20: #{tpu_custom_call.1} parent=11 // pred_fallthru
          _
        // Predicated region
        $region21: #{tpu_custom_call.1} parent=11 // pred_check
          %p218 = pneg %p108
        $region22: #{tpu_custom_call.1} parent=11 // pred_check_branch
          %220 = sbr.rel (%p218) target = $region24
        $region23: #{tpu_custom_call.1} parent=11 // pred_region
          _
        $region24: #{tpu_custom_call.1} parent=11 // pred_fallthru
          _
        // Predicated region
        $region25: #{tpu_custom_call.1} parent=11 // pred_check
          %p221 = pneg %p129
        $region26: #{tpu_custom_call.1} parent=11 // pred_check_branch
          %223 = sbr.rel (%p221) target = $region28
        $region27: #{tpu_custom_call.1} parent=11 // pred_region
          _
        $region28: #{tpu_custom_call.1} parent=11 // pred_fallthru
          _
        // Predicated region
        $region29: #{tpu_custom_call.1} parent=11 // pred_check
          %p224 = pneg %p150
        $region30: #{tpu_custom_call.1} parent=11 // pred_check_branch
          %226 = sbr.rel (%p224) target = $region32
        $region31: #{tpu_custom_call.1} parent=11 // pred_region
          _
        $region32: #{tpu_custom_call.1} parent=11 // pred_fallthru
          _
        // Predicated region
        $region33: #{tpu_custom_call.1} parent=11 // pred_check
          %p227 = pneg %p171
        $region34: #{tpu_custom_call.1} parent=11 // pred_check_branch
          %229 = sbr.rel (%p227) target = $region36
        $region35: #{tpu_custom_call.1} parent=11 // pred_region
          _
        $region36: #{tpu_custom_call.1} parent=11 // pred_fallthru
          _
      $region12: #{tpu_custom_call.1} parent=5 // pred_fallthru
        _
      %p230 = scmp.lt.s32.totalorder %s19, 2
      // Predicated region
      $region37: #{tpu_custom_call.1} parent=5 // pred_check
        %p231 = pneg %p230
      $region38: #{tpu_custom_call.1} parent=5 // pred_check_branch
        %233 = sbr.rel (%p231) target = $region40
      $region39: #{tpu_custom_call.1} parent=5 // pred_region
        // Predicated region
        $region41: #{tpu_custom_call.1} parent=39 // pred_check
          %p234 = pneg %p39
        $region42: #{tpu_custom_call.1} parent=39 // pred_check_branch
          %236 = sbr.rel (%p234) target = $region44
        $region43: #{tpu_custom_call.1} parent=39 // pred_region
          %s237 = sand.u32 %s29, 1
          %s238 = scalar_lea.sflag [#allocation4], %s237
          %s239 = sand.u32 %s29, 1
          %s240 = smul.addr %s239, 32
          %s241 = scalar_lea.vmem [#allocation3], %s240
          %s242 = smul.u32 8, %s19
          %244 = vsyncadd %s238, 0
          %s245 = smul.addr %s242, 4
          %s246 = scalar_lea.hbm %s0, %s245
          %s248 = sshll.u32 %s246, 4
          %s249 = int_to_ptr.hbm [resolvable:$true] %s248
          %s250 = sshll.u32 %s241, 4
          %s251 = int_to_ptr.vmem [resolvable:$true] %s250
          %253 = dma.hbm_to_vmem [thread:$0]  %s249, 512, %s251, %s238
        $region44: #{tpu_custom_call.1} parent=39 // pred_fallthru
          _
      $region40: #{tpu_custom_call.1} parent=5 // pred_fallthru
        _
      %p254 = scmp.le.s32.totalorder 1, %s19
      %p255 = scmp.lt.s32.totalorder %s19, 3
      %p256 = pnand %p254, %p255
      %p257 = pneg %p256
      // Predicated region
      $region45: #{tpu_custom_call.1} parent=5 // pred_check
        _
      $region46: #{tpu_custom_call.1} parent=5 // pred_check_branch
        %259 = sbr.rel (%p256) target = $region48
      $region47: #{tpu_custom_call.1} parent=5 // pred_region
        %s260 = ssub.s32 %s19, 1
        %s261 = sand.u32 %s32, 1
        %s262 = scalar_lea.sflag [#allocation4], %s261
        %s263 = sand.u32 %s32, 1
        %s264 = smul.addr %s263, 32
        %s265 = scalar_lea.vmem [#allocation3], %s264
        // Predicated region
        $region49: #{tpu_custom_call.1} parent=47 // pred_check
          %p266 = pneg %p45
        $region50: #{tpu_custom_call.1} parent=47 // pred_check_branch
          %268 = sbr.rel (%p266) target = $region52
        $region51: #{tpu_custom_call.1} parent=47 // pred_region
          %270 = dma.done %s262, 512
        $region52: #{tpu_custom_call.1} parent=47 // pred_fallthru
          _
        %s271 = sand.u32 %s32, 1
        %s272 = scalar_lea.sflag [#allocation4], %s271
        %s273 = sand.u32 %s32, 1
        %s274 = smul.addr %s273, 32
        %s275 = scalar_lea.vmem [#allocation3], %s274
        %p276 = pneg %p45
        %p277 = pneg %p42
        %p278 = pneg %p66
        %p279 = pneg %p63
        %p280 = pneg %p87
        %p281 = pneg %p84
        %p282 = pneg %p108
        %p283 = pneg %p105
        %p284 = pneg %p129
        %p285 = pneg %p126
        %p286 = pneg %p150
        %p287 = pneg %p147
        %p288 = pneg %p171
        %p289 = pneg %p168
        %p290 = pneg %p197
        %p291 = pneg %p194
        %s292 = sand.u32 %s184, 1
        %s293 = scalar_lea.sflag [#allocation5], %s292
        %s294 = sand.u32 %s184, 1
        %s295 = smul.addr %s294, 192
        %s296 = scalar_lea.vmem [#allocation6], %s295
        %s297 = smul.u32 8, %s24
        %s298 = smul.u32 8, %s24
        %v300 = vld [vmem:[%s1] sm:$0xf]
        %v301 = vld [vmem:[%s1 + $0x4] sm:$0xf]
        %v302 = vld [vmem:[%s1 + $0x8] sm:$0xf]
        %v303 = vld [vmem:[%s1 + $0xc] sm:$0xf]
        %v304 = vld [vmem:[%s2] sm:$0xf]
        %v305 = vld [vmem:[%s2 + $0x4] sm:$0xf]
        %v306 = vld [vmem:[%s2 + $0x8] sm:$0xf]
        %v307 = vld [vmem:[%s3] sm:$0xff]
        %v308 = vld [vmem:[%s3 + $0x8] sm:$0xff]
        %v309 = vld [vmem:[%s3 + $0x10] sm:$0xff]
        %v310 = vld [vmem:[%s4] sm:$0xf]
        %v311 = vld [vmem:[%s4 + $0x4] sm:$0xf]
        %v312 = vld [vmem:[%s4 + $0x8] sm:$0xf]
        %v313 = vld [vmem:[%s4 + $0xc] sm:$0xf]
        %v314 = vld [vmem:[%s5] sm:$0xf]
        %v315 = vld [vmem:[%s5 + $0x4] sm:$0xf]
        %v316 = vld [vmem:[%s5 + $0x8] sm:$0x7]
        %v317 = vld [vmem:[%s6] sm:$0xff]
        %v318 = vld [vmem:[%s6 + $0x8] sm:$0xff]
        %v319 = vld [vmem:[%s6 + $0x10] sm:$0x1f]
        %s320 = scalar_lea.vmem [#allocation2], 263
        %321 = vst [vmem:[%s320] ss:$8 sm:$0xf] 1.0
        %322 = vst [vmem:[%s320] ss:$8 sm:$0xf0] 1.0
        %v323 = vld [vmem:[%s265] sm:$0x77]
        %v324 = vld [vmem:[%s265 + $0x8] sm:$0x77]
        %v325 = vld [vmem:[%s265 + $0x10] sm:$0x77]
        %v326 = vld [vmem:[%s265 + $0x18] sm:$0x77]
        %v327 = vmul.f32 %v323, 2.0
        %v328 = vmul.f32 %v324, 2.0
        %v329 = vmul.f32 %v325, 2.0
        %v330 = vmul.f32 %v326, 2.0
        %335 = vst [vmem:[#allocation1] ss:$2 sm:$0xff] %v323
        %s336 = scalar_lea.vmem [#allocation1], 16
        %337 = vst [vmem:[%s336] ss:$2 sm:$0xff] %v324
        %s338 = scalar_lea.vmem [#allocation1], 32
        %339 = vst [vmem:[%s338] ss:$2 sm:$0xff] %v325
        %s340 = scalar_lea.vmem [#allocation1], 48
        %341 = vst [vmem:[%s340] ss:$2 sm:$0xff] %v326
        %v342 = vld.sshfl [vmem:[#allocation1] sm:$0xff pattern:$0x75316420]
        %v343 = vld.sshfl [vmem:[#allocation1 + $0x8] sm:$0xff pattern:$0x75316420]
        %v344 = vld.sshfl [vmem:[#allocation1 + $0x10] sm:$0xff pattern:$0x75316420]
        %v345 = vld.sshfl [vmem:[#allocation1 + $0x18] sm:$0xff pattern:$0x75316420]
        %v346 = vld.sshfl [vmem:[#allocation1 + $0x20] sm:$0xff pattern:$0x75316420]
        %v347 = vld.sshfl [vmem:[#allocation1 + $0x28] sm:$0xff pattern:$0x75316420]
        %v348 = vld.sshfl [vmem:[#allocation1 + $0x30] sm:$0xff pattern:$0x75316420]
        %v349 = vld.sshfl [vmem:[#allocation1 + $0x38] sm:$0xff pattern:$0x75316420]
        %362 = vst [vmem:[#allocation1] ss:$2 sm:$0xff] %v327
        %s363 = scalar_lea.vmem [#allocation1], 16
        %364 = vst [vmem:[%s363] ss:$2 sm:$0xff] %v328
        %s365 = scalar_lea.vmem [#allocation1], 32
        %366 = vst [vmem:[%s365] ss:$2 sm:$0xff] %v329
        %s367 = scalar_lea.vmem [#allocation1], 48
        %368 = vst [vmem:[%s367] ss:$2 sm:$0xff] %v330
        %v369 = vld.sshfl [vmem:[#allocation1] sm:$0xff pattern:$0x75316420]
        %v370 = vld.sshfl [vmem:[#allocation1 + $0x8] sm:$0xff pattern:$0x75316420]
        %v371 = vld.sshfl [vmem:[#allocation1 + $0x10] sm:$0xff pattern:$0x75316420]
        %v372 = vld.sshfl [vmem:[#allocation1 + $0x18] sm:$0xff pattern:$0x75316420]
        %v373 = vld.sshfl [vmem:[#allocation1 + $0x20] sm:$0xff pattern:$0x75316420]
        %v374 = vld.sshfl [vmem:[#allocation1 + $0x28] sm:$0xff pattern:$0x75316420]
        %v375 = vld.sshfl [vmem:[#allocation1 + $0x30] sm:$0xff pattern:$0x75316420]
        %v376 = vld.sshfl [vmem:[#allocation1 + $0x38] sm:$0xff pattern:$0x75316420]
        %v377 = vrot.slane %v369, 5
        %v378 = vrot.slane %v370, 5
        %v379 = vrot.slane %v371, 5
        %v380 = vrot.slane %v372, 5
        %v381 = vrot.slane %v373, 5
        %v382 = vrot.slane %v374, 5
        %v383 = vrot.slane %v375, 5
        %v384 = vrot.slane %v376, 5
        %vm393 = vcmask 1042432
        %v394 = vsel %vm393, %v342, %v377
        %v395 = vsel %vm393, %v343, %v378
        %v396 = vsel %vm393, %v344, %v379
        %v397 = vsel %vm393, %v345, %v380
        %v398 = vsel %vm393, %v346, %v381
        %v399 = vsel %vm393, %v347, %v382
        %v400 = vsel %vm393, %v348, %v383
        %v401 = vsel %vm393, %v349, %v384
        %402 = vst [vmem:[#allocation1] ss:$2 sm:$0xff] %v323
        %s403 = scalar_lea.vmem [#allocation1], 16
        %404 = vst [vmem:[%s403] ss:$2 sm:$0xff] %v324
        %s405 = scalar_lea.vmem [#allocation1], 32
        %406 = vst [vmem:[%s405] ss:$2 sm:$0xff] %v325
        %s407 = scalar_lea.vmem [#allocation1], 48
        %408 = vst [vmem:[%s407] ss:$2 sm:$0xff] %v326
        %v409 = vld.sshfl [vmem:[#allocation1] sm:$0xff pattern:$0x75316420]
        %v410 = vld.sshfl [vmem:[#allocation1 + $0x8] sm:$0xff pattern:$0x75316420]
        %v411 = vld.sshfl [vmem:[#allocation1 + $0x10] sm:$0xff pattern:$0x75316420]
        %v412 = vld.sshfl [vmem:[#allocation1 + $0x18] sm:$0xff pattern:$0x75316420]
        %v413 = vld.sshfl [vmem:[#allocation1 + $0x20] sm:$0xff pattern:$0x75316420]
        %v414 = vld.sshfl [vmem:[#allocation1 + $0x28] sm:$0xff pattern:$0x75316420]
        %v415 = vld.sshfl [vmem:[#allocation1 + $0x30] sm:$0xff pattern:$0x75316420]
        %v416 = vld.sshfl [vmem:[#allocation1 + $0x38] sm:$0xff pattern:$0x75316420]
        %425 = vst [vmem:[#allocation2 + $0xc0] sm:$0x7] %v409
        %426 = vst [vmem:[#allocation2 + $0xc8] sm:$0x7] %v410
        %427 = vst [vmem:[#allocation2 + $0xd0] sm:$0x7] %v411
        %428 = vst [vmem:[#allocation2 + $0xd8] sm:$0x7] %v412
        %429 = vst [vmem:[#allocation2 + $0xe0] sm:$0x7] %v413
        %430 = vst [vmem:[#allocation2 + $0xe8] sm:$0x7] %v414
        %431 = vst [vmem:[#allocation2 + $0xf0] sm:$0x7] %v415
        %432 = vst [vmem:[#allocation2 + $0xf8] sm:$0x7] %v416
        %v433 = vand.u32 2147483647, %v394
        %vm434 = vcmp.le.f32.partialorder %v433, 0.7853982
        %vm435 = vcmp.lt.s32.totalorder %v394, 0
        %v436 = vand.u32 %v394, 2139095040
        %v437 = vshrl.u32 %v436, 23
        %v438 = vsub.s32 %v437, 127
        %v439 = vand.u32 2147483647, %v394
        %v440 = vand.u32 %v439, 8388607
        %v441 = vor.u32 %v440, 8388608
        %v442 = vsub.s32 0, %v441
        %v443 = vadd.s32 %v438, 1
        %vm444 = vcmp.gt.s32.totalorder %v443, 0
        %v445 = vsel %vm444, %v443, 0
        %v446 = vshrl.u32 %v445, 5
        %v447 = vand.u32 %v445, 31
        %v448 = vsub.s32 32, %v447
        %v449 = vshrl.u32 683565275, %v448
        %v450 = vshll.u32 683565275, %v447
        %v451 = vshrl.u32 2475754826, %v448
        %v452 = vor.u32 %v450, %v451
        %v453 = vshll.u32 2475754826, %v447
        %v454 = vshrl.u32 2131351028, %v448
        %v455 = vor.u32 %v453, %v454
        %v456 = vshll.u32 2131351028, %v447
        %v457 = vshrl.u32 2102212464, %v448
        %v458 = vor.u32 %v456, %v457
        %v459 = vshll.u32 2102212464, %v447
        %v460 = vshrl.u32 920167782, %v448
        %v461 = vor.u32 %v459, %v460
        %v462 = vshll.u32 920167782, %v447
        %v463 = vshrl.u32 1326507024, %v448
        %v464 = vor.u32 %v462, %v463
        %vm465 = vcmp.lt.s32.totalorder %v446, 1
        %vm466 = vcmp.lt.s32.totalorder %v446, 2
        %vm467 = vcmp.lt.s32.totalorder %v446, 3
        %vm468 = vcmp.lt.s32.totalorder %v446, 4
        %v469 = vsel %vm465, %v449, %v452
        %v470 = vsel %vm468, %v458, 2102212464
        %v471 = vsel %vm467, %v455, %v470
        %v472 = vsel %vm466, %v469, %v471
        %v473 = vsel %vm465, %v452, %v455
        %v474 = vsel %vm468, %v461, 920167782
        %v475 = vsel %vm467, %v458, %v474
        %v476 = vsel %vm466, %v473, %v475
        %v477 = vsel %vm465, %v455, %v458
        %v478 = vsel %vm468, %v464, 1326507024
        %v479 = vsel %vm467, %v461, %v478
        %v480 = vsel %vm466, %v477, %v479
        %v481 = vshll.u32 %v441, 8
        %v482 = vand.u32 %v481, 65535
        %v483 = vshrl.u32 %v481, 16
        %v484 = vand.u32 %v480, 65535
        %v485 = vshrl.u32 %v480, 16
        %v486 = vmul.u32 %v482, %v484
        %v487 = vmul.u32 %v482, %v485
        %v488 = vmul.u32 %v483, %v484
        %v489 = vmul.u32 %v483, %v485
        %v490 = vshll.u32 %v487, 16
        %v491 = vshrl.u32 %v487, 16
        %v492 = vshll.u32 %v488, 16
        %v493 = vshrl.u32 %v488, 16
        %vm494 = vc.u32 %v486, %v490
        %v495 = vsel %vm494, 1, 0
        %v496 = vadd.s32 %v486, %v490
        %v497 = vadd.s32 %v489, %v495
        %vm498 = vc.u32 %v496, %v492
        %v499 = vsel %vm498, 1, 0
        %v500 = vadd.s32 %v496, %v492
        %v501 = vadd.s32 %v497, %v499
        %v502 = vadd.s32 %v501, %v491
        %v503 = vadd.s32 %v502, %v493
        %v504 = vand.u32 %v481, 65535
        %v505 = vshrl.u32 %v481, 16
        %v506 = vand.u32 %v476, 65535
        %v507 = vshrl.u32 %v476, 16
        %v508 = vmul.u32 %v504, %v506
        %v509 = vmul.u32 %v504, %v507
        %v510 = vmul.u32 %v505, %v506
        %v511 = vmul.u32 %v505, %v507
        %v512 = vshll.u32 %v509, 16
        %v513 = vshrl.u32 %v509, 16
        %v514 = vshll.u32 %v510, 16
        %v515 = vshrl.u32 %v510, 16
        %vm516 = vc.u32 %v508, %v512
        %v517 = vsel %vm516, 1, 0
        %v518 = vadd.s32 %v508, %v512
        %v519 = vadd.s32 %v511, %v517
        %vm520 = vc.u32 %v518, %v514
        %v521 = vsel %vm520, 1, 0
        %v522 = vadd.s32 %v518, %v514
        %v523 = vadd.s32 %v519, %v521
        %v524 = vadd.s32 %v523, %v513
        %v525 = vadd.s32 %v524, %v515
        %v526 = vmul.u32 %v481, %v472
        %v527 = vadd.s32 %v503, %v522
        %vm528 = vc.u32 %v503, %v522
        %v529 = vadd.s32 %v525, 1
        %v530 = vsel %vm528, %v529, %v525
        %v531 = vadd.s32 %v526, %v530
        %v532 = vadd.s32 %v531, 536870912
        %v533 = vshrl.u32 %v532, 30
        %v534 = vshll.u32 %v533, 30
        %v535 = vsub.s32 %v531, %v534
        %vm536 = vcmp.lt.s32.totalorder %v535, 0
        %v537 = vsub.s32 0, %v535
        %v538 = vsel %vm536, %v537, %v535
        %v539 = vclz %v538
        %v540 = vsub.s32 %v539, 2
        %vm541 = vcmp.gt.s32.totalorder 0, %v540
        %v542 = vsel %vm541, 0, %v540
        %v543 = vsub.s32 32, %v542
        %v544 = vshll.u32 %v535, %v542
        %v545 = vshrl.u32 %v527, %v543
        %v546 = vor.u32 %v544, %v545
        %v547 = vsub.s32 4294967266, %v542
        %v548 = vadd.s32 %v547, 127
        %v549 = vshll.u32 %v548, 23
        %v550 = vor.u32 4788187, %v549
        %v551 = vand.u32 2147483647, %v550
        %v553 = vcvt.s32.f32 %v546
        %v554 = vmul.f32 %v553, %v551
        %v555 = vxor.u32 %v554, 2147483648
        %v556 = vsel %vm435, %v555, %v554
        %v557 = vsub.s32 4, %v533
        %v558 = vsel %vm435, %v557, %v533
        %v559 = vsel %vm434, %v394, %v556
        %v560 = vsel %vm434, 0, %v558
        %v561 = vmul.f32 %v559, %v559
        %v562 = vmul.f32 %v561, -0.001358992
        %v563 = vadd.f32 %v562, 0.041655596
        %v564 = vmul.f32 %v561, %v563
        %v565 = vadd.f32 %v564, -0.4999988
        %v566 = vmul.f32 %v561, %v565
        %v567 = vadd.f32 1.0, %v566
        %v568 = vmul.f32 %v559, %v559
        %v569 = vmul.f32 %v568, -0.00019511016
        %v570 = vadd.f32 %v569, 0.008332121
        %v571 = vmul.f32 %v568, %v570
        %v572 = vadd.f32 %v571, -0.16666654
        %v573 = vmul.f32 %v568, %v572
        %v574 = vadd.f32 %v573, 1.0
        %v575 = vmul.f32 %v574, %v559
        %vm576 = vweird.f32 %v394
        %v577 = vadd.s32 %v560, 3
        %v578 = vand.u32 %v577, 3
        %vm579 = vcmp.lt.s32.totalorder %v578, 2
        %vm580 = vcmp.eq.s32.totalorder %v578, 0
        %v581 = vxor.u32 %v575, 2147483648
        %v582 = vsel %vm580, %v567, %v581
        %vm583 = vcmp.eq.s32.totalorder %v578, 2
        %v584 = vxor.u32 %v567, 2147483648
        %v585 = vsel %vm583, %v584, %v575
        %v586 = vsel %vm579, %v582, %v585
        %v587 = vsel %vm576, nan, %v586
        %v588 = vand.u32 2147483647, %v395
        %vm589 = vcmp.le.f32.partialorder %v588, 0.7853982
        %vm590 = vcmp.lt.s32.totalorder %v395, 0
        %v591 = vand.u32 %v395, 2139095040
        %v592 = vshrl.u32 %v591, 23
        %v593 = vsub.s32 %v592, 127
        %v594 = vand.u32 2147483647, %v395
        %v595 = vand.u32 %v594, 8388607
        %v596 = vor.u32 %v595, 8388608
        %v597 = vsub.s32 0, %v596
        %v598 = vadd.s32 %v593, 1
        %vm599 = vcmp.gt.s32.totalorder %v598, 0
        %v600 = vsel %vm599, %v598, 0
        %v601 = vshrl.u32 %v600, 5
        %v602 = vand.u32 %v600, 31
        %v603 = vsub.s32 32, %v602
        %v604 = vshrl.u32 683565275, %v603
        %v605 = vshll.u32 683565275, %v602
        %v606 = vshrl.u32 2475754826, %v603
        %v607 = vor.u32 %v605, %v606
        %v608 = vshll.u32 2475754826, %v602
        %v609 = vshrl.u32 2131351028, %v603
        %v610 = vor.u32 %v608, %v609
        %v611 = vshll.u32 2131351028, %v602
        %v612 = vshrl.u32 2102212464, %v603
        %v613 = vor.u32 %v611, %v612
        %v614 = vshll.u32 2102212464, %v602
        %v615 = vshrl.u32 920167782, %v603
        %v616 = vor.u32 %v614, %v615
        %v617 = vshll.u32 920167782, %v602
        %v618 = vshrl.u32 1326507024, %v603
        %v619 = vor.u32 %v617, %v618
        %vm620 = vcmp.lt.s32.totalorder %v601, 1
        %vm621 = vcmp.lt.s32.totalorder %v601, 2
        %vm622 = vcmp.lt.s32.totalorder %v601, 3
        %vm623 = vcmp.lt.s32.totalorder %v601, 4
        %v624 = vsel %vm620, %v604, %v607
        %v625 = vsel %vm623, %v613, 2102212464
        %v626 = vsel %vm622, %v610, %v625
        %v627 = vsel %vm621, %v624, %v626
        %v628 = vsel %vm620, %v607, %v610
        %v629 = vsel %vm623, %v616, 920167782
        %v630 = vsel %vm622, %v613, %v629
        %v631 = vsel %vm621, %v628, %v630
        %v632 = vsel %vm620, %v610, %v613
        %v633 = vsel %vm623, %v619, 1326507024
        %v634 = vsel %vm622, %v616, %v633
        %v635 = vsel %vm621, %v632, %v634
        %v636 = vshll.u32 %v596, 8
        %v637 = vand.u32 %v636, 65535
        %v638 = vshrl.u32 %v636, 16
        %v639 = vand.u32 %v635, 65535
        %v640 = vshrl.u32 %v635, 16
        %v641 = vmul.u32 %v637, %v639
        %v642 = vmul.u32 %v637, %v640
        %v643 = vmul.u32 %v638, %v639
        %v644 = vmul.u32 %v638, %v640
        %v645 = vshll.u32 %v642, 16
        %v646 = vshrl.u32 %v642, 16
        %v647 = vshll.u32 %v643, 16
        %v648 = vshrl.u32 %v643, 16
        %vm649 = vc.u32 %v641, %v645
        %v650 = vsel %vm649, 1, 0
        %v651 = vadd.s32 %v641, %v645
        %v652 = vadd.s32 %v644, %v650
        %vm653 = vc.u32 %v651, %v647
        %v654 = vsel %vm653, 1, 0
        %v655 = vadd.s32 %v651, %v647
        %v656 = vadd.s32 %v652, %v654
        %v657 = vadd.s32 %v656, %v646
        %v658 = vadd.s32 %v657, %v648
        %v659 = vand.u32 %v636, 65535
        %v660 = vshrl.u32 %v636, 16
        %v661 = vand.u32 %v631, 65535
        %v662 = vshrl.u32 %v631, 16
        %v663 = vmul.u32 %v659, %v661
        %v664 = vmul.u32 %v659, %v662
        %v665 = vmul.u32 %v660, %v661
        %v666 = vmul.u32 %v660, %v662
        %v667 = vshll.u32 %v664, 16
        %v668 = vshrl.u32 %v664, 16
        %v669 = vshll.u32 %v665, 16
        %v670 = vshrl.u32 %v665, 16
        %vm671 = vc.u32 %v663, %v667
        %v672 = vsel %vm671, 1, 0
        %v673 = vadd.s32 %v663, %v667
        %v674 = vadd.s32 %v666, %v672
        %vm675 = vc.u32 %v673, %v669
        %v676 = vsel %vm675, 1, 0
        %v677 = vadd.s32 %v673, %v669
        %v678 = vadd.s32 %v674, %v676
        %v679 = vadd.s32 %v678, %v668
        %v680 = vadd.s32 %v679, %v670
        %v681 = vmul.u32 %v636, %v627
        %v682 = vadd.s32 %v658, %v677
        %vm683 = vc.u32 %v658, %v677
        %v684 = vadd.s32 %v680, 1
        %v685 = vsel %vm683, %v684, %v680
        %v686 = vadd.s32 %v681, %v685
        %v687 = vadd.s32 %v686, 536870912
        %v688 = vshrl.u32 %v687, 30
        %v689 = vshll.u32 %v688, 30
        %v690 = vsub.s32 %v686, %v689
        %vm691 = vcmp.lt.s32.totalorder %v690, 0
        %v692 = vsub.s32 0, %v690
        %v693 = vsel %vm691, %v692, %v690
        %v694 = vclz %v693
        %v695 = vsub.s32 %v694, 2
        %vm696 = vcmp.gt.s32.totalorder 0, %v695
        %v697 = vsel %vm696, 0, %v695
        %v698 = vsub.s32 32, %v697
        %v699 = vshll.u32 %v690, %v697
        %v700 = vshrl.u32 %v682, %v698
        %v701 = vor.u32 %v699, %v700
        %v702 = vsub.s32 4294967266, %v697
        %v703 = vadd.s32 %v702, 127
        %v704 = vshll.u32 %v703, 23
        %v705 = vor.u32 4788187, %v704
        %v706 = vand.u32 2147483647, %v705
        %v708 = vcvt.s32.f32 %v701
        %v709 = vmul.f32 %v708, %v706
        %v710 = vxor.u32 %v709, 2147483648
        %v711 = vsel %vm590, %v710, %v709
        %v712 = vsub.s32 4, %v688
        %v713 = vsel %vm590, %v712, %v688
        %v714 = vsel %vm589, %v395, %v711
        %v715 = vsel %vm589, 0, %v713
        %v716 = vmul.f32 %v714, %v714
        %v717 = vmul.f32 %v716, -0.001358992
        %v718 = vadd.f32 %v717, 0.041655596
        %v719 = vmul.f32 %v716, %v718
        %v720 = vadd.f32 %v719, -0.4999988
        %v721 = vmul.f32 %v716, %v720
        %v722 = vadd.f32 1.0, %v721
        %v723 = vmul.f32 %v714, %v714
        %v724 = vmul.f32 %v723, -0.00019511016
        %v725 = vadd.f32 %v724, 0.008332121
        %v726 = vmul.f32 %v723, %v725
        %v727 = vadd.f32 %v726, -0.16666654
        %v728 = vmul.f32 %v723, %v727
        %v729 = vadd.f32 %v728, 1.0
        %v730 = vmul.f32 %v729, %v714
        %vm731 = vweird.f32 %v395
        %v732 = vadd.s32 %v715, 3
        %v733 = vand.u32 %v732, 3
        %vm734 = vcmp.lt.s32.totalorder %v733, 2
        %vm735 = vcmp.eq.s32.totalorder %v733, 0
        %v736 = vxor.u32 %v730, 2147483648
        %v737 = vsel %vm735, %v722, %v736
        %vm738 = vcmp.eq.s32.totalorder %v733, 2
        %v739 = vxor.u32 %v722, 2147483648
        %v740 = vsel %vm738, %v739, %v730
        %v741 = vsel %vm734, %v737, %v740
        %v742 = vsel %vm731, nan, %v741
        %v743 = vand.u32 2147483647, %v396
        %vm744 = vcmp.le.f32.partialorder %v743, 0.7853982
        %vm745 = vcmp.lt.s32.totalorder %v396, 0
        %v746 = vand.u32 %v396, 2139095040
        %v747 = vshrl.u32 %v746, 23
        %v748 = vsub.s32 %v747, 127
        %v749 = vand.u32 2147483647, %v396
        %v750 = vand.u32 %v749, 8388607
        %v751 = vor.u32 %v750, 8388608
        %v752 = vsub.s32 0, %v751
        %v753 = vadd.s32 %v748, 1
        %vm754 = vcmp.gt.s32.totalorder %v753, 0
        %v755 = vsel %vm754, %v753, 0
        %v756 = vshrl.u32 %v755, 5
        %v757 = vand.u32 %v755, 31
        %v758 = vsub.s32 32, %v757
        %v759 = vshrl.u32 683565275, %v758
        %v760 = vshll.u32 683565275, %v757
        %v761 = vshrl.u32 2475754826, %v758
        %v762 = vor.u32 %v760, %v761
        %v763 = vshll.u32 2475754826, %v757
        %v764 = vshrl.u32 2131351028, %v758
        %v765 = vor.u32 %v763, %v764
        %v766 = vshll.u32 2131351028, %v757
        %v767 = vshrl.u32 2102212464, %v758
        %v768 = vor.u32 %v766, %v767
        %v769 = vshll.u32 2102212464, %v757
        %v770 = vshrl.u32 920167782, %v758
        %v771 = vor.u32 %v769, %v770
        %v772 = vshll.u32 920167782, %v757
        %v773 = vshrl.u32 1326507024, %v758
        %v774 = vor.u32 %v772, %v773
        %vm775 = vcmp.lt.s32.totalorder %v756, 1
        %vm776 = vcmp.lt.s32.totalorder %v756, 2
        %vm777 = vcmp.lt.s32.totalorder %v756, 3
        %vm778 = vcmp.lt.s32.totalorder %v756, 4
        %v779 = vsel %vm775, %v759, %v762
        %v780 = vsel %vm778, %v768, 2102212464
        %v781 = vsel %vm777, %v765, %v780
        %v782 = vsel %vm776, %v779, %v781
        %v783 = vsel %vm775, %v762, %v765
        %v784 = vsel %vm778, %v771, 920167782
        %v785 = vsel %vm777, %v768, %v784
        %v786 = vsel %vm776, %v783, %v785
        %v787 = vsel %vm775, %v765, %v768
        %v788 = vsel %vm778, %v774, 1326507024
        %v789 = vsel %vm777, %v771, %v788
        %v790 = vsel %vm776, %v787, %v789
        %v791 = vshll.u32 %v751, 8
        %v792 = vand.u32 %v791, 65535
        %v793 = vshrl.u32 %v791, 16
        %v794 = vand.u32 %v790, 65535
        %v795 = vshrl.u32 %v790, 16
        %v796 = vmul.u32 %v792, %v794
        %v797 = vmul.u32 %v792, %v795
        %v798 = vmul.u32 %v793, %v794
        %v799 = vmul.u32 %v793, %v795
        %v800 = vshll.u32 %v797, 16
        %v801 = vshrl.u32 %v797, 16
        %v802 = vshll.u32 %v798, 16
        %v803 = vshrl.u32 %v798, 16
        %vm804 = vc.u32 %v796, %v800
        %v805 = vsel %vm804, 1, 0
        %v806 = vadd.s32 %v796, %v800
        %v807 = vadd.s32 %v799, %v805
        %vm808 = vc.u32 %v806, %v802
        %v809 = vsel %vm808, 1, 0
        %v810 = vadd.s32 %v806, %v802
        %v811 = vadd.s32 %v807, %v809
        %v812 = vadd.s32 %v811, %v801
        %v813 = vadd.s32 %v812, %v803
        %v814 = vand.u32 %v791, 65535
        %v815 = vshrl.u32 %v791, 16
        %v816 = vand.u32 %v786, 65535
        %v817 = vshrl.u32 %v786, 16
        %v818 = vmul.u32 %v814, %v816
        %v819 = vmul.u32 %v814, %v817
        %v820 = vmul.u32 %v815, %v816
        %v821 = vmul.u32 %v815, %v817
        %v822 = vshll.u32 %v819, 16
        %v823 = vshrl.u32 %v819, 16
        %v824 = vshll.u32 %v820, 16
        %v825 = vshrl.u32 %v820, 16
        %vm826 = vc.u32 %v818, %v822
        %v827 = vsel %vm826, 1, 0
        %v828 = vadd.s32 %v818, %v822
        %v829 = vadd.s32 %v821, %v827
        %vm830 = vc.u32 %v828, %v824
        %v831 = vsel %vm830, 1, 0
        %v832 = vadd.s32 %v828, %v824
        %v833 = vadd.s32 %v829, %v831
        %v834 = vadd.s32 %v833, %v823
        %v835 = vadd.s32 %v834, %v825
        %v836 = vmul.u32 %v791, %v782
        %v837 = vadd.s32 %v813, %v832
        %vm838 = vc.u32 %v813, %v832
        %v839 = vadd.s32 %v835, 1
        %v840 = vsel %vm838, %v839, %v835
        %v841 = vadd.s32 %v836, %v840
        %v842 = vadd.s32 %v841, 536870912
        %v843 = vshrl.u32 %v842, 30
        %v844 = vshll.u32 %v843, 30
        %v845 = vsub.s32 %v841, %v844
        %vm846 = vcmp.lt.s32.totalorder %v845, 0
        %v847 = vsub.s32 0, %v845
        %v848 = vsel %vm846, %v847, %v845
        %v849 = vclz %v848
        %v850 = vsub.s32 %v849, 2
        %vm851 = vcmp.gt.s32.totalorder 0, %v850
        %v852 = vsel %vm851, 0, %v850
        %v853 = vsub.s32 32, %v852
        %v854 = vshll.u32 %v845, %v852
        %v855 = vshrl.u32 %v837, %v853
        %v856 = vor.u32 %v854, %v855
        %v857 = vsub.s32 4294967266, %v852
        %v858 = vadd.s32 %v857, 127
        %v859 = vshll.u32 %v858, 23
        %v860 = vor.u32 4788187, %v859
        %v861 = vand.u32 2147483647, %v860
        %v863 = vcvt.s32.f32 %v856
        %v864 = vmul.f32 %v863, %v861
        %v865 = vxor.u32 %v864, 2147483648
        %v866 = vsel %vm745, %v865, %v864
        %v867 = vsub.s32 4, %v843
        %v868 = vsel %vm745, %v867, %v843
        %v869 = vsel %vm744, %v396, %v866
        %v870 = vsel %vm744, 0, %v868
        %v871 = vmul.f32 %v869, %v869
        %v872 = vmul.f32 %v871, -0.001358992
        %v873 = vadd.f32 %v872, 0.041655596
        %v874 = vmul.f32 %v871, %v873
        %v875 = vadd.f32 %v874, -0.4999988
        %v876 = vmul.f32 %v871, %v875
        %v877 = vadd.f32 1.0, %v876
        %v878 = vmul.f32 %v869, %v869
        %v879 = vmul.f32 %v878, -0.00019511016
        %v880 = vadd.f32 %v879, 0.008332121
        %v881 = vmul.f32 %v878, %v880
        %v882 = vadd.f32 %v881, -0.16666654
        %v883 = vmul.f32 %v878, %v882
        %v884 = vadd.f32 %v883, 1.0
        %v885 = vmul.f32 %v884, %v869
        %vm886 = vweird.f32 %v396
        %v887 = vadd.s32 %v870, 3
        %v888 = vand.u32 %v887, 3
        %vm889 = vcmp.lt.s32.totalorder %v888, 2
        %vm890 = vcmp.eq.s32.totalorder %v888, 0
        %v891 = vxor.u32 %v885, 2147483648
        %v892 = vsel %vm890, %v877, %v891
        %vm893 = vcmp.eq.s32.totalorder %v888, 2
        %v894 = vxor.u32 %v877, 2147483648
        %v895 = vsel %vm893, %v894, %v885
        %v896 = vsel %vm889, %v892, %v895
        %v897 = vsel %vm886, nan, %v896
        %v898 = vand.u32 2147483647, %v397
        %vm899 = vcmp.le.f32.partialorder %v898, 0.7853982
        %vm900 = vcmp.lt.s32.totalorder %v397, 0
        %v901 = vand.u32 %v397, 2139095040
        %v902 = vshrl.u32 %v901, 23
        %v903 = vsub.s32 %v902, 127
        %v904 = vand.u32 2147483647, %v397
        %v905 = vand.u32 %v904, 8388607
        %v906 = vor.u32 %v905, 8388608
        %v907 = vsub.s32 0, %v906
        %v908 = vadd.s32 %v903, 1
        %vm909 = vcmp.gt.s32.totalorder %v908, 0
        %v910 = vsel %vm909, %v908, 0
        %v911 = vshrl.u32 %v910, 5
        %v912 = vand.u32 %v910, 31
        %v913 = vsub.s32 32, %v912
        %v914 = vshrl.u32 683565275, %v913
        %v915 = vshll.u32 683565275, %v912
        %v916 = vshrl.u32 2475754826, %v913
        %v917 = vor.u32 %v915, %v916
        %v918 = vshll.u32 2475754826, %v912
        %v919 = vshrl.u32 2131351028, %v913
        %v920 = vor.u32 %v918, %v919
        %v921 = vshll.u32 2131351028, %v912
        %v922 = vshrl.u32 2102212464, %v913
        %v923 = vor.u32 %v921, %v922
        %v924 = vshll.u32 2102212464, %v912
        %v925 = vshrl.u32 920167782, %v913
        %v926 = vor.u32 %v924, %v925
        %v927 = vshll.u32 920167782, %v912
        %v928 = vshrl.u32 1326507024, %v913
        %v929 = vor.u32 %v927, %v928
        %vm930 = vcmp.lt.s32.totalorder %v911, 1
        %vm931 = vcmp.lt.s32.totalorder %v911, 2
        %vm932 = vcmp.lt.s32.totalorder %v911, 3
        %vm933 = vcmp.lt.s32.totalorder %v911, 4
        %v934 = vsel %vm930, %v914, %v917
        %v935 = vsel %vm933, %v923, 2102212464
        %v936 = vsel %vm932, %v920, %v935
        %v937 = vsel %vm931, %v934, %v936
        %v938 = vsel %vm930, %v917, %v920
        %v939 = vsel %vm933, %v926, 920167782
        %v940 = vsel %vm932, %v923, %v939
        %v941 = vsel %vm931, %v938, %v940
        %v942 = vsel %vm930, %v920, %v923
        %v943 = vsel %vm933, %v929, 1326507024
        %v944 = vsel %vm932, %v926, %v943
        %v945 = vsel %vm931, %v942, %v944
        %v946 = vshll.u32 %v906, 8
        %v947 = vand.u32 %v946, 65535
        %v948 = vshrl.u32 %v946, 16
        %v949 = vand.u32 %v945, 65535
        %v950 = vshrl.u32 %v945, 16
        %v951 = vmul.u32 %v947, %v949
        %v952 = vmul.u32 %v947, %v950
        %v953 = vmul.u32 %v948, %v949
        %v954 = vmul.u32 %v948, %v950
        %v955 = vshll.u32 %v952, 16
        %v956 = vshrl.u32 %v952, 16
        %v957 = vshll.u32 %v953, 16
        %v958 = vshrl.u32 %v953, 16
        %vm959 = vc.u32 %v951, %v955
        %v960 = vsel %vm959, 1, 0
        %v961 = vadd.s32 %v951, %v955
        %v962 = vadd.s32 %v954, %v960
        %vm963 = vc.u32 %v961, %v957
        %v964 = vsel %vm963, 1, 0
        %v965 = vadd.s32 %v961, %v957
        %v966 = vadd.s32 %v962, %v964
        %v967 = vadd.s32 %v966, %v956
        %v968 = vadd.s32 %v967, %v958
        %v969 = vand.u32 %v946, 65535
        %v970 = vshrl.u32 %v946, 16
        %v971 = vand.u32 %v941, 65535
        %v972 = vshrl.u32 %v941, 16
        %v973 = vmul.u32 %v969, %v971
        %v974 = vmul.u32 %v969, %v972
        %v975 = vmul.u32 %v970, %v971
        %v976 = vmul.u32 %v970, %v972
        %v977 = vshll.u32 %v974, 16
        %v978 = vshrl.u32 %v974, 16
        %v979 = vshll.u32 %v975, 16
        %v980 = vshrl.u32 %v975, 16
        %vm981 = vc.u32 %v973, %v977
        %v982 = vsel %vm981, 1, 0
        %v983 = vadd.s32 %v973, %v977
        %v984 = vadd.s32 %v976, %v982
        %vm985 = vc.u32 %v983, %v979
        %v986 = vsel %vm985, 1, 0
        %v987 = vadd.s32 %v983, %v979
        %v988 = vadd.s32 %v984, %v986
        %v989 = vadd.s32 %v988, %v978
        %v990 = vadd.s32 %v989, %v980
        %v991 = vmul.u32 %v946, %v937
        %v992 = vadd.s32 %v968, %v987
        %vm993 = vc.u32 %v968, %v987
        %v994 = vadd.s32 %v990, 1
        %v995 = vsel %vm993, %v994, %v990
        %v996 = vadd.s32 %v991, %v995
        %v997 = vadd.s32 %v996, 536870912
        %v998 = vshrl.u32 %v997, 30
        %v999 = vshll.u32 %v998, 30
        %v1000 = vsub.s32 %v996, %v999
        %vm1001 = vcmp.lt.s32.totalorder %v1000, 0
        %v1002 = vsub.s32 0, %v1000
        %v1003 = vsel %vm1001, %v1002, %v1000
        %v1004 = vclz %v1003
        %v1005 = vsub.s32 %v1004, 2
        %vm1006 = vcmp.gt.s32.totalorder 0, %v1005
        %v1007 = vsel %vm1006, 0, %v1005
        %v1008 = vsub.s32 32, %v1007
        %v1009 = vshll.u32 %v1000, %v1007
        %v1010 = vshrl.u32 %v992, %v1008
        %v1011 = vor.u32 %v1009, %v1010
        %v1012 = vsub.s32 4294967266, %v1007
        %v1013 = vadd.s32 %v1012, 127
        %v1014 = vshll.u32 %v1013, 23
        %v1015 = vor.u32 4788187, %v1014
        %v1016 = vand.u32 2147483647, %v1015
        %v1018 = vcvt.s32.f32 %v1011
        %v1019 = vmul.f32 %v1018, %v1016
        %v1020 = vxor.u32 %v1019, 2147483648
        %v1021 = vsel %vm900, %v1020, %v1019
        %v1022 = vsub.s32 4, %v998
        %v1023 = vsel %vm900, %v1022, %v998
        %v1024 = vsel %vm899, %v397, %v1021
        %v1025 = vsel %vm899, 0, %v1023
        %v1026 = vmul.f32 %v1024, %v1024
        %v1027 = vmul.f32 %v1026, -0.001358992
        %v1028 = vadd.f32 %v1027, 0.041655596
        %v1029 = vmul.f32 %v1026, %v1028
        %v1030 = vadd.f32 %v1029, -0.4999988
        %v1031 = vmul.f32 %v1026, %v1030
        %v1032 = vadd.f32 1.0, %v1031
        %v1033 = vmul.f32 %v1024, %v1024
        %v1034 = vmul.f32 %v1033, -0.00019511016
        %v1035 = vadd.f32 %v1034, 0.008332121
        %v1036 = vmul.f32 %v1033, %v1035
        %v1037 = vadd.f32 %v1036, -0.16666654
        %v1038 = vmul.f32 %v1033, %v1037
        %v1039 = vadd.f32 %v1038, 1.0
        %v1040 = vmul.f32 %v1039, %v1024
        %vm1041 = vweird.f32 %v397
        %v1042 = vadd.s32 %v1025, 3
        %v1043 = vand.u32 %v1042, 3
        %vm1044 = vcmp.lt.s32.totalorder %v1043, 2
        %vm1045 = vcmp.eq.s32.totalorder %v1043, 0
        %v1046 = vxor.u32 %v1040, 2147483648
        %v1047 = vsel %vm1045, %v1032, %v1046
        %vm1048 = vcmp.eq.s32.totalorder %v1043, 2
        %v1049 = vxor.u32 %v1032, 2147483648
        %v1050 = vsel %vm1048, %v1049, %v1040
        %v1051 = vsel %vm1044, %v1047, %v1050
        %v1052 = vsel %vm1041, nan, %v1051
        %v1053 = vand.u32 2147483647, %v398
        %vm1054 = vcmp.le.f32.partialorder %v1053, 0.7853982
        %vm1055 = vcmp.lt.s32.totalorder %v398, 0
        %v1056 = vand.u32 %v398, 2139095040
        %v1057 = vshrl.u32 %v1056, 23
        %v1058 = vsub.s32 %v1057, 127
        %v1059 = vand.u32 2147483647, %v398
        %v1060 = vand.u32 %v1059, 8388607
        %v1061 = vor.u32 %v1060, 8388608
        %v1062 = vsub.s32 0, %v1061
        %v1063 = vadd.s32 %v1058, 1
        %vm1064 = vcmp.gt.s32.totalorder %v1063, 0
        %v1065 = vsel %vm1064, %v1063, 0
        %v1066 = vshrl.u32 %v1065, 5
        %v1067 = vand.u32 %v1065, 31
        %v1068 = vsub.s32 32, %v1067
        %v1069 = vshrl.u32 683565275, %v1068
        %v1070 = vshll.u32 683565275, %v1067
        %v1071 = vshrl.u32 2475754826, %v1068
        %v1072 = vor.u32 %v1070, %v1071
        %v1073 = vshll.u32 2475754826, %v1067
        %v1074 = vshrl.u32 2131351028, %v1068
        %v1075 = vor.u32 %v1073, %v1074
        %v1076 = vshll.u32 2131351028, %v1067
        %v1077 = vshrl.u32 2102212464, %v1068
        %v1078 = vor.u32 %v1076, %v1077
        %v1079 = vshll.u32 2102212464, %v1067
        %v1080 = vshrl.u32 920167782, %v1068
        %v1081 = vor.u32 %v1079, %v1080
        %v1082 = vshll.u32 920167782, %v1067
        %v1083 = vshrl.u32 1326507024, %v1068
        %v1084 = vor.u32 %v1082, %v1083
        %vm1085 = vcmp.lt.s32.totalorder %v1066, 1
        %vm1086 = vcmp.lt.s32.totalorder %v1066, 2
        %vm1087 = vcmp.lt.s32.totalorder %v1066, 3
        %vm1088 = vcmp.lt.s32.totalorder %v1066, 4
        %v1089 = vsel %vm1085, %v1069, %v1072
        %v1090 = vsel %vm1088, %v1078, 2102212464
        %v1091 = vsel %vm1087, %v1075, %v1090
        %v1092 = vsel %vm1086, %v1089, %v1091
        %v1093 = vsel %vm1085, %v1072, %v1075
        %v1094 = vsel %vm1088, %v1081, 920167782
        %v1095 = vsel %vm1087, %v1078, %v1094
        %v1096 = vsel %vm1086, %v1093, %v1095
        %v1097 = vsel %vm1085, %v1075, %v1078
        %v1098 = vsel %vm1088, %v1084, 1326507024
        %v1099 = vsel %vm1087, %v1081, %v1098
        %v1100 = vsel %vm1086, %v1097, %v1099
        %v1101 = vshll.u32 %v1061, 8
        %v1102 = vand.u32 %v1101, 65535
        %v1103 = vshrl.u32 %v1101, 16
        %v1104 = vand.u32 %v1100, 65535
        %v1105 = vshrl.u32 %v1100, 16
        %v1106 = vmul.u32 %v1102, %v1104
        %v1107 = vmul.u32 %v1102, %v1105
        %v1108 = vmul.u32 %v1103, %v1104
        %v1109 = vmul.u32 %v1103, %v1105
        %v1110 = vshll.u32 %v1107, 16
        %v1111 = vshrl.u32 %v1107, 16
        %v1112 = vshll.u32 %v1108, 16
        %v1113 = vshrl.u32 %v1108, 16
        %vm1114 = vc.u32 %v1106, %v1110
        %v1115 = vsel %vm1114, 1, 0
        %v1116 = vadd.s32 %v1106, %v1110
        %v1117 = vadd.s32 %v1109, %v1115
        %vm1118 = vc.u32 %v1116, %v1112
        %v1119 = vsel %vm1118, 1, 0
        %v1120 = vadd.s32 %v1116, %v1112
        %v1121 = vadd.s32 %v1117, %v1119
        %v1122 = vadd.s32 %v1121, %v1111
        %v1123 = vadd.s32 %v1122, %v1113
        %v1124 = vand.u32 %v1101, 65535
        %v1125 = vshrl.u32 %v1101, 16
        %v1126 = vand.u32 %v1096, 65535
        %v1127 = vshrl.u32 %v1096, 16
        %v1128 = vmul.u32 %v1124, %v1126
        %v1129 = vmul.u32 %v1124, %v1127
        %v1130 = vmul.u32 %v1125, %v1126
        %v1131 = vmul.u32 %v1125, %v1127
        %v1132 = vshll.u32 %v1129, 16
        %v1133 = vshrl.u32 %v1129, 16
        %v1134 = vshll.u32 %v1130, 16
        %v1135 = vshrl.u32 %v1130, 16
        %vm1136 = vc.u32 %v1128, %v1132
        %v1137 = vsel %vm1136, 1, 0
        %v1138 = vadd.s32 %v1128, %v1132
        %v1139 = vadd.s32 %v1131, %v1137
        %vm1140 = vc.u32 %v1138, %v1134
        %v1141 = vsel %vm1140, 1, 0
        %v1142 = vadd.s32 %v1138, %v1134
        %v1143 = vadd.s32 %v1139, %v1141
        %v1144 = vadd.s32 %v1143, %v1133
        %v1145 = vadd.s32 %v1144, %v1135
        %v1146 = vmul.u32 %v1101, %v1092
        %v1147 = vadd.s32 %v1123, %v1142
        %vm1148 = vc.u32 %v1123, %v1142
        %v1149 = vadd.s32 %v1145, 1
        %v1150 = vsel %vm1148, %v1149, %v1145
        %v1151 = vadd.s32 %v1146, %v1150
        %v1152 = vadd.s32 %v1151, 536870912
        %v1153 = vshrl.u32 %v1152, 30
        %v1154 = vshll.u32 %v1153, 30
        %v1155 = vsub.s32 %v1151, %v1154
        %vm1156 = vcmp.lt.s32.totalorder %v1155, 0
        %v1157 = vsub.s32 0, %v1155
        %v1158 = vsel %vm1156, %v1157, %v1155
        %v1159 = vclz %v1158
        %v1160 = vsub.s32 %v1159, 2
        %vm1161 = vcmp.gt.s32.totalorder 0, %v1160
        %v1162 = vsel %vm1161, 0, %v1160
        %v1163 = vsub.s32 32, %v1162
        %v1164 = vshll.u32 %v1155, %v1162
        %v1165 = vshrl.u32 %v1147, %v1163
        %v1166 = vor.u32 %v1164, %v1165
        %v1167 = vsub.s32 4294967266, %v1162
        %v1168 = vadd.s32 %v1167, 127
        %v1169 = vshll.u32 %v1168, 23
        %v1170 = vor.u32 4788187, %v1169
        %v1171 = vand.u32 2147483647, %v1170
        %v1173 = vcvt.s32.f32 %v1166
        %v1174 = vmul.f32 %v1173, %v1171
        %v1175 = vxor.u32 %v1174, 2147483648
        %v1176 = vsel %vm1055, %v1175, %v1174
        %v1177 = vsub.s32 4, %v1153
        %v1178 = vsel %vm1055, %v1177, %v1153
        %v1179 = vsel %vm1054, %v398, %v1176
        %v1180 = vsel %vm1054, 0, %v1178
        %v1181 = vmul.f32 %v1179, %v1179
        %v1182 = vmul.f32 %v1181, -0.001358992
        %v1183 = vadd.f32 %v1182, 0.041655596
        %v1184 = vmul.f32 %v1181, %v1183
        %v1185 = vadd.f32 %v1184, -0.4999988
        %v1186 = vmul.f32 %v1181, %v1185
        %v1187 = vadd.f32 1.0, %v1186
        %v1188 = vmul.f32 %v1179, %v1179
        %v1189 = vmul.f32 %v1188, -0.00019511016
        %v1190 = vadd.f32 %v1189, 0.008332121
        %v1191 = vmul.f32 %v1188, %v1190
        %v1192 = vadd.f32 %v1191, -0.16666654
        %v1193 = vmul.f32 %v1188, %v1192
        %v1194 = vadd.f32 %v1193, 1.0
        %v1195 = vmul.f32 %v1194, %v1179
        %vm1196 = vweird.f32 %v398
        %v1197 = vadd.s32 %v1180, 3
        %v1198 = vand.u32 %v1197, 3
        %vm1199 = vcmp.lt.s32.totalorder %v1198, 2
        %vm1200 = vcmp.eq.s32.totalorder %v1198, 0
        %v1201 = vxor.u32 %v1195, 2147483648
        %v1202 = vsel %vm1200, %v1187, %v1201
        %vm1203 = vcmp.eq.s32.totalorder %v1198, 2
        %v1204 = vxor.u32 %v1187, 2147483648
        %v1205 = vsel %vm1203, %v1204, %v1195
        %v1206 = vsel %vm1199, %v1202, %v1205
        %v1207 = vsel %vm1196, nan, %v1206
        %v1208 = vand.u32 2147483647, %v399
        %vm1209 = vcmp.le.f32.partialorder %v1208, 0.7853982
        %vm1210 = vcmp.lt.s32.totalorder %v399, 0
        %v1211 = vand.u32 %v399, 2139095040
        %v1212 = vshrl.u32 %v1211, 23
        %v1213 = vsub.s32 %v1212, 127
        %v1214 = vand.u32 2147483647, %v399
        %v1215 = vand.u32 %v1214, 8388607
        %v1216 = vor.u32 %v1215, 8388608
        %v1217 = vsub.s32 0, %v1216
        %v1218 = vadd.s32 %v1213, 1
        %vm1219 = vcmp.gt.s32.totalorder %v1218, 0
        %v1220 = vsel %vm1219, %v1218, 0
        %v1221 = vshrl.u32 %v1220, 5
        %v1222 = vand.u32 %v1220, 31
        %v1223 = vsub.s32 32, %v1222
        %v1224 = vshrl.u32 683565275, %v1223
        %v1225 = vshll.u32 683565275, %v1222
        %v1226 = vshrl.u32 2475754826, %v1223
        %v1227 = vor.u32 %v1225, %v1226
        %v1228 = vshll.u32 2475754826, %v1222
        %v1229 = vshrl.u32 2131351028, %v1223
        %v1230 = vor.u32 %v1228, %v1229
        %v1231 = vshll.u32 2131351028, %v1222
        %v1232 = vshrl.u32 2102212464, %v1223
        %v1233 = vor.u32 %v1231, %v1232
        %v1234 = vshll.u32 2102212464, %v1222
        %v1235 = vshrl.u32 920167782, %v1223
        %v1236 = vor.u32 %v1234, %v1235
        %v1237 = vshll.u32 920167782, %v1222
        %v1238 = vshrl.u32 1326507024, %v1223
        %v1239 = vor.u32 %v1237, %v1238
        %vm1240 = vcmp.lt.s32.totalorder %v1221, 1
        %vm1241 = vcmp.lt.s32.totalorder %v1221, 2
        %vm1242 = vcmp.lt.s32.totalorder %v1221, 3
        %vm1243 = vcmp.lt.s32.totalorder %v1221, 4
        %v1244 = vsel %vm1240, %v1224, %v1227
        %v1245 = vsel %vm1243, %v1233, 2102212464
        %v1246 = vsel %vm1242, %v1230, %v1245
        %v1247 = vsel %vm1241, %v1244, %v1246
        %v1248 = vsel %vm1240, %v1227, %v1230
        %v1249 = vsel %vm1243, %v1236, 920167782
        %v1250 = vsel %vm1242, %v1233, %v1249
        %v1251 = vsel %vm1241, %v1248, %v1250
        %v1252 = vsel %vm1240, %v1230, %v1233
        %v1253 = vsel %vm1243, %v1239, 1326507024
        %v1254 = vsel %vm1242, %v1236, %v1253
        %v1255 = vsel %vm1241, %v1252, %v1254
        %v1256 = vshll.u32 %v1216, 8
        %v1257 = vand.u32 %v1256, 65535
        %v1258 = vshrl.u32 %v1256, 16
        %v1259 = vand.u32 %v1255, 65535
        %v1260 = vshrl.u32 %v1255, 16
        %v1261 = vmul.u32 %v1257, %v1259
        %v1262 = vmul.u32 %v1257, %v1260
        %v1263 = vmul.u32 %v1258, %v1259
        %v1264 = vmul.u32 %v1258, %v1260
        %v1265 = vshll.u32 %v1262, 16
        %v1266 = vshrl.u32 %v1262, 16
        %v1267 = vshll.u32 %v1263, 16
        %v1268 = vshrl.u32 %v1263, 16
        %vm1269 = vc.u32 %v1261, %v1265
        %v1270 = vsel %vm1269, 1, 0
        %v1271 = vadd.s32 %v1261, %v1265
        %v1272 = vadd.s32 %v1264, %v1270
        %vm1273 = vc.u32 %v1271, %v1267
        %v1274 = vsel %vm1273, 1, 0
        %v1275 = vadd.s32 %v1271, %v1267
        %v1276 = vadd.s32 %v1272, %v1274
        %v1277 = vadd.s32 %v1276, %v1266
        %v1278 = vadd.s32 %v1277, %v1268
        %v1279 = vand.u32 %v1256, 65535
        %v1280 = vshrl.u32 %v1256, 16
        %v1281 = vand.u32 %v1251, 65535
        %v1282 = vshrl.u32 %v1251, 16
        %v1283 = vmul.u32 %v1279, %v1281
        %v1284 = vmul.u32 %v1279, %v1282
        %v1285 = vmul.u32 %v1280, %v1281
        %v1286 = vmul.u32 %v1280, %v1282
        %v1287 = vshll.u32 %v1284, 16
        %v1288 = vshrl.u32 %v1284, 16
        %v1289 = vshll.u32 %v1285, 16
        %v1290 = vshrl.u32 %v1285, 16
        %vm1291 = vc.u32 %v1283, %v1287
        %v1292 = vsel %vm1291, 1, 0
        %v1293 = vadd.s32 %v1283, %v1287
        %v1294 = vadd.s32 %v1286, %v1292
        %vm1295 = vc.u32 %v1293, %v1289
        %v1296 = vsel %vm1295, 1, 0
        %v1297 = vadd.s32 %v1293, %v1289
        %v1298 = vadd.s32 %v1294, %v1296
        %v1299 = vadd.s32 %v1298, %v1288
        %v1300 = vadd.s32 %v1299, %v1290
        %v1301 = vmul.u32 %v1256, %v1247
        %v1302 = vadd.s32 %v1278, %v1297
        %vm1303 = vc.u32 %v1278, %v1297
        %v1304 = vadd.s32 %v1300, 1
        %v1305 = vsel %vm1303, %v1304, %v1300
        %v1306 = vadd.s32 %v1301, %v1305
        %v1307 = vadd.s32 %v1306, 536870912
        %v1308 = vshrl.u32 %v1307, 30
        %v1309 = vshll.u32 %v1308, 30
        %v1310 = vsub.s32 %v1306, %v1309
        %vm1311 = vcmp.lt.s32.totalorder %v1310, 0
        %v1312 = vsub.s32 0, %v1310
        %v1313 = vsel %vm1311, %v1312, %v1310
        %v1314 = vclz %v1313
        %v1315 = vsub.s32 %v1314, 2
        %vm1316 = vcmp.gt.s32.totalorder 0, %v1315
        %v1317 = vsel %vm1316, 0, %v1315
        %v1318 = vsub.s32 32, %v1317
        %v1319 = vshll.u32 %v1310, %v1317
        %v1320 = vshrl.u32 %v1302, %v1318
        %v1321 = vor.u32 %v1319, %v1320
        %v1322 = vsub.s32 4294967266, %v1317
        %v1323 = vadd.s32 %v1322, 127
        %v1324 = vshll.u32 %v1323, 23
        %v1325 = vor.u32 4788187, %v1324
        %v1326 = vand.u32 2147483647, %v1325
        %v1328 = vcvt.s32.f32 %v1321
        %v1329 = vmul.f32 %v1328, %v1326
        %v1330 = vxor.u32 %v1329, 2147483648
        %v1331 = vsel %vm1210, %v1330, %v1329
        %v1332 = vsub.s32 4, %v1308
        %v1333 = vsel %vm1210, %v1332, %v1308
        %v1334 = vsel %vm1209, %v399, %v1331
        %v1335 = vsel %vm1209, 0, %v1333
        %v1336 = vmul.f32 %v1334, %v1334
        %v1337 = vmul.f32 %v1336, -0.001358992
        %v1338 = vadd.f32 %v1337, 0.041655596
        %v1339 = vmul.f32 %v1336, %v1338
        %v1340 = vadd.f32 %v1339, -0.4999988
        %v1341 = vmul.f32 %v1336, %v1340
        %v1342 = vadd.f32 1.0, %v1341
        %v1343 = vmul.f32 %v1334, %v1334
        %v1344 = vmul.f32 %v1343, -0.00019511016
        %v1345 = vadd.f32 %v1344, 0.008332121
        %v1346 = vmul.f32 %v1343, %v1345
        %v1347 = vadd.f32 %v1346, -0.16666654
        %v1348 = vmul.f32 %v1343, %v1347
        %v1349 = vadd.f32 %v1348, 1.0
        %v1350 = vmul.f32 %v1349, %v1334
        %vm1351 = vweird.f32 %v399
        %v1352 = vadd.s32 %v1335, 3
        %v1353 = vand.u32 %v1352, 3
        %vm1354 = vcmp.lt.s32.totalorder %v1353, 2
        %vm1355 = vcmp.eq.s32.totalorder %v1353, 0
        %v1356 = vxor.u32 %v1350, 2147483648
        %v1357 = vsel %vm1355, %v1342, %v1356
        %vm1358 = vcmp.eq.s32.totalorder %v1353, 2
        %v1359 = vxor.u32 %v1342, 2147483648
        %v1360 = vsel %vm1358, %v1359, %v1350
        %v1361 = vsel %vm1354, %v1357, %v1360
        %v1362 = vsel %vm1351, nan, %v1361
        %v1363 = vand.u32 2147483647, %v400
        %vm1364 = vcmp.le.f32.partialorder %v1363, 0.7853982
        %vm1365 = vcmp.lt.s32.totalorder %v400, 0
        %v1366 = vand.u32 %v400, 2139095040
        %v1367 = vshrl.u32 %v1366, 23
        %v1368 = vsub.s32 %v1367, 127
        %v1369 = vand.u32 2147483647, %v400
        %v1370 = vand.u32 %v1369, 8388607
        %v1371 = vor.u32 %v1370, 8388608
        %v1372 = vsub.s32 0, %v1371
        %v1373 = vadd.s32 %v1368, 1
        %vm1374 = vcmp.gt.s32.totalorder %v1373, 0
        %v1375 = vsel %vm1374, %v1373, 0
        %v1376 = vshrl.u32 %v1375, 5
        %v1377 = vand.u32 %v1375, 31
        %v1378 = vsub.s32 32, %v1377
        %v1379 = vshrl.u32 683565275, %v1378
        %v1380 = vshll.u32 683565275, %v1377
        %v1381 = vshrl.u32 2475754826, %v1378
        %v1382 = vor.u32 %v1380, %v1381
        %v1383 = vshll.u32 2475754826, %v1377
        %v1384 = vshrl.u32 2131351028, %v1378
        %v1385 = vor.u32 %v1383, %v1384
        %v1386 = vshll.u32 2131351028, %v1377
        %v1387 = vshrl.u32 2102212464, %v1378
        %v1388 = vor.u32 %v1386, %v1387
        %v1389 = vshll.u32 2102212464, %v1377
        %v1390 = vshrl.u32 920167782, %v1378
        %v1391 = vor.u32 %v1389, %v1390
        %v1392 = vshll.u32 920167782, %v1377
        %v1393 = vshrl.u32 1326507024, %v1378
        %v1394 = vor.u32 %v1392, %v1393
        %vm1395 = vcmp.lt.s32.totalorder %v1376, 1
        %vm1396 = vcmp.lt.s32.totalorder %v1376, 2
        %vm1397 = vcmp.lt.s32.totalorder %v1376, 3
        %vm1398 = vcmp.lt.s32.totalorder %v1376, 4
        %v1399 = vsel %vm1395, %v1379, %v1382
        %v1400 = vsel %vm1398, %v1388, 2102212464
        %v1401 = vsel %vm1397, %v1385, %v1400
        %v1402 = vsel %vm1396, %v1399, %v1401
        %v1403 = vsel %vm1395, %v1382, %v1385
        %v1404 = vsel %vm1398, %v1391, 920167782
        %v1405 = vsel %vm1397, %v1388, %v1404
        %v1406 = vsel %vm1396, %v1403, %v1405
        %v1407 = vsel %vm1395, %v1385, %v1388
        %v1408 = vsel %vm1398, %v1394, 1326507024
        %v1409 = vsel %vm1397, %v1391, %v1408
        %v1410 = vsel %vm1396, %v1407, %v1409
        %v1411 = vshll.u32 %v1371, 8
        %v1412 = vand.u32 %v1411, 65535
        %v1413 = vshrl.u32 %v1411, 16
        %v1414 = vand.u32 %v1410, 65535
        %v1415 = vshrl.u32 %v1410, 16
        %v1416 = vmul.u32 %v1412, %v1414
        %v1417 = vmul.u32 %v1412, %v1415
        %v1418 = vmul.u32 %v1413, %v1414
        %v1419 = vmul.u32 %v1413, %v1415
        %v1420 = vshll.u32 %v1417, 16
        %v1421 = vshrl.u32 %v1417, 16
        %v1422 = vshll.u32 %v1418, 16
        %v1423 = vshrl.u32 %v1418, 16
        %vm1424 = vc.u32 %v1416, %v1420
        %v1425 = vsel %vm1424, 1, 0
        %v1426 = vadd.s32 %v1416, %v1420
        %v1427 = vadd.s32 %v1419, %v1425
        %vm1428 = vc.u32 %v1426, %v1422
        %v1429 = vsel %vm1428, 1, 0
        %v1430 = vadd.s32 %v1426, %v1422
        %v1431 = vadd.s32 %v1427, %v1429
        %v1432 = vadd.s32 %v1431, %v1421
        %v1433 = vadd.s32 %v1432, %v1423
        %v1434 = vand.u32 %v1411, 65535
        %v1435 = vshrl.u32 %v1411, 16
        %v1436 = vand.u32 %v1406, 65535
        %v1437 = vshrl.u32 %v1406, 16
        %v1438 = vmul.u32 %v1434, %v1436
        %v1439 = vmul.u32 %v1434, %v1437
        %v1440 = vmul.u32 %v1435, %v1436
        %v1441 = vmul.u32 %v1435, %v1437
        %v1442 = vshll.u32 %v1439, 16
        %v1443 = vshrl.u32 %v1439, 16
        %v1444 = vshll.u32 %v1440, 16
        %v1445 = vshrl.u32 %v1440, 16
        %vm1446 = vc.u32 %v1438, %v1442
        %v1447 = vsel %vm1446, 1, 0
        %v1448 = vadd.s32 %v1438, %v1442
        %v1449 = vadd.s32 %v1441, %v1447
        %vm1450 = vc.u32 %v1448, %v1444
        %v1451 = vsel %vm1450, 1, 0
        %v1452 = vadd.s32 %v1448, %v1444
        %v1453 = vadd.s32 %v1449, %v1451
        %v1454 = vadd.s32 %v1453, %v1443
        %v1455 = vadd.s32 %v1454, %v1445
        %v1456 = vmul.u32 %v1411, %v1402
        %v1457 = vadd.s32 %v1433, %v1452
        %vm1458 = vc.u32 %v1433, %v1452
        %v1459 = vadd.s32 %v1455, 1
        %v1460 = vsel %vm1458, %v1459, %v1455
        %v1461 = vadd.s32 %v1456, %v1460
        %v1462 = vadd.s32 %v1461, 536870912
        %v1463 = vshrl.u32 %v1462, 30
        %v1464 = vshll.u32 %v1463, 30
        %v1465 = vsub.s32 %v1461, %v1464
        %vm1466 = vcmp.lt.s32.totalorder %v1465, 0
        %v1467 = vsub.s32 0, %v1465
        %v1468 = vsel %vm1466, %v1467, %v1465
        %v1469 = vclz %v1468
        %v1470 = vsub.s32 %v1469, 2
        %vm1471 = vcmp.gt.s32.totalorder 0, %v1470
        %v1472 = vsel %vm1471, 0, %v1470
        %v1473 = vsub.s32 32, %v1472
        %v1474 = vshll.u32 %v1465, %v1472
        %v1475 = vshrl.u32 %v1457, %v1473
        %v1476 = vor.u32 %v1474, %v1475
        %v1477 = vsub.s32 4294967266, %v1472
        %v1478 = vadd.s32 %v1477, 127
        %v1479 = vshll.u32 %v1478, 23
        %v1480 = vor.u32 4788187, %v1479
        %v1481 = vand.u32 2147483647, %v1480
        %v1483 = vcvt.s32.f32 %v1476
        %v1484 = vmul.f32 %v1483, %v1481
        %v1485 = vxor.u32 %v1484, 2147483648
        %v1486 = vsel %vm1365, %v1485, %v1484
        %v1487 = vsub.s32 4, %v1463
        %v1488 = vsel %vm1365, %v1487, %v1463
        %v1489 = vsel %vm1364, %v400, %v1486
        %v1490 = vsel %vm1364, 0, %v1488
        %v1491 = vmul.f32 %v1489, %v1489
        %v1492 = vmul.f32 %v1491, -0.001358992
        %v1493 = vadd.f32 %v1492, 0.041655596
        %v1494 = vmul.f32 %v1491, %v1493
        %v1495 = vadd.f32 %v1494, -0.4999988
        %v1496 = vmul.f32 %v1491, %v1495
        %v1497 = vadd.f32 1.0, %v1496
        %v1498 = vmul.f32 %v1489, %v1489
        %v1499 = vmul.f32 %v1498, -0.00019511016
        %v1500 = vadd.f32 %v1499, 0.008332121
        %v1501 = vmul.f32 %v1498, %v1500
        %v1502 = vadd.f32 %v1501, -0.16666654
        %v1503 = vmul.f32 %v1498, %v1502
        %v1504 = vadd.f32 %v1503, 1.0
        %v1505 = vmul.f32 %v1504, %v1489
        %vm1506 = vweird.f32 %v400
        %v1507 = vadd.s32 %v1490, 3
        %v1508 = vand.u32 %v1507, 3
        %vm1509 = vcmp.lt.s32.totalorder %v1508, 2
        %vm1510 = vcmp.eq.s32.totalorder %v1508, 0
        %v1511 = vxor.u32 %v1505, 2147483648
        %v1512 = vsel %vm1510, %v1497, %v1511
        %vm1513 = vcmp.eq.s32.totalorder %v1508, 2
        %v1514 = vxor.u32 %v1497, 2147483648
        %v1515 = vsel %vm1513, %v1514, %v1505
        %v1516 = vsel %vm1509, %v1512, %v1515
        %v1517 = vsel %vm1506, nan, %v1516
        %v1518 = vand.u32 2147483647, %v401
        %vm1519 = vcmp.le.f32.partialorder %v1518, 0.7853982
        %vm1520 = vcmp.lt.s32.totalorder %v401, 0
        %v1521 = vand.u32 %v401, 2139095040
        %v1522 = vshrl.u32 %v1521, 23
        %v1523 = vsub.s32 %v1522, 127
        %v1524 = vand.u32 2147483647, %v401
        %v1525 = vand.u32 %v1524, 8388607
        %v1526 = vor.u32 %v1525, 8388608
        %v1527 = vsub.s32 0, %v1526
        %v1528 = vadd.s32 %v1523, 1
        %vm1529 = vcmp.gt.s32.totalorder %v1528, 0
        %v1530 = vsel %vm1529, %v1528, 0
        %v1531 = vshrl.u32 %v1530, 5
        %v1532 = vand.u32 %v1530, 31
        %v1533 = vsub.s32 32, %v1532
        %v1534 = vshrl.u32 683565275, %v1533
        %v1535 = vshll.u32 683565275, %v1532
        %v1536 = vshrl.u32 2475754826, %v1533
        %v1537 = vor.u32 %v1535, %v1536
        %v1538 = vshll.u32 2475754826, %v1532
        %v1539 = vshrl.u32 2131351028, %v1533
        %v1540 = vor.u32 %v1538, %v1539
        %v1541 = vshll.u32 2131351028, %v1532
        %v1542 = vshrl.u32 2102212464, %v1533
        %v1543 = vor.u32 %v1541, %v1542
        %v1544 = vshll.u32 2102212464, %v1532
        %v1545 = vshrl.u32 920167782, %v1533
        %v1546 = vor.u32 %v1544, %v1545
        %v1547 = vshll.u32 920167782, %v1532
        %v1548 = vshrl.u32 1326507024, %v1533
        %v1549 = vor.u32 %v1547, %v1548
        %vm1550 = vcmp.lt.s32.totalorder %v1531, 1
        %vm1551 = vcmp.lt.s32.totalorder %v1531, 2
        %vm1552 = vcmp.lt.s32.totalorder %v1531, 3
        %vm1553 = vcmp.lt.s32.totalorder %v1531, 4
        %v1554 = vsel %vm1550, %v1534, %v1537
        %v1555 = vsel %vm1553, %v1543, 2102212464
        %v1556 = vsel %vm1552, %v1540, %v1555
        %v1557 = vsel %vm1551, %v1554, %v1556
        %v1558 = vsel %vm1550, %v1537, %v1540
        %v1559 = vsel %vm1553, %v1546, 920167782
        %v1560 = vsel %vm1552, %v1543, %v1559
        %v1561 = vsel %vm1551, %v1558, %v1560
        %v1562 = vsel %vm1550, %v1540, %v1543
        %v1563 = vsel %vm1553, %v1549, 1326507024
        %v1564 = vsel %vm1552, %v1546, %v1563
        %v1565 = vsel %vm1551, %v1562, %v1564
        %v1566 = vshll.u32 %v1526, 8
        %v1567 = vand.u32 %v1566, 65535
        %v1568 = vshrl.u32 %v1566, 16
        %v1569 = vand.u32 %v1565, 65535
        %v1570 = vshrl.u32 %v1565, 16
        %v1571 = vmul.u32 %v1567, %v1569
        %v1572 = vmul.u32 %v1567, %v1570
        %v1573 = vmul.u32 %v1568, %v1569
        %v1574 = vmul.u32 %v1568, %v1570
        %v1575 = vshll.u32 %v1572, 16
        %v1576 = vshrl.u32 %v1572, 16
        %v1577 = vshll.u32 %v1573, 16
        %v1578 = vshrl.u32 %v1573, 16
        %vm1579 = vc.u32 %v1571, %v1575
        %v1580 = vsel %vm1579, 1, 0
        %v1581 = vadd.s32 %v1571, %v1575
        %v1582 = vadd.s32 %v1574, %v1580
        %vm1583 = vc.u32 %v1581, %v1577
        %v1584 = vsel %vm1583, 1, 0
        %v1585 = vadd.s32 %v1581, %v1577
        %v1586 = vadd.s32 %v1582, %v1584
        %v1587 = vadd.s32 %v1586, %v1576
        %v1588 = vadd.s32 %v1587, %v1578
        %v1589 = vand.u32 %v1566, 65535
        %v1590 = vshrl.u32 %v1566, 16
        %v1591 = vand.u32 %v1561, 65535
        %v1592 = vshrl.u32 %v1561, 16
        %v1593 = vmul.u32 %v1589, %v1591
        %v1594 = vmul.u32 %v1589, %v1592
        %v1595 = vmul.u32 %v1590, %v1591
        %v1596 = vmul.u32 %v1590, %v1592
        %v1597 = vshll.u32 %v1594, 16
        %v1598 = vshrl.u32 %v1594, 16
        %v1599 = vshll.u32 %v1595, 16
        %v1600 = vshrl.u32 %v1595, 16
        %vm1601 = vc.u32 %v1593, %v1597
        %v1602 = vsel %vm1601, 1, 0
        %v1603 = vadd.s32 %v1593, %v1597
        %v1604 = vadd.s32 %v1596, %v1602
        %vm1605 = vc.u32 %v1603, %v1599
        %v1606 = vsel %vm1605, 1, 0
        %v1607 = vadd.s32 %v1603, %v1599
        %v1608 = vadd.s32 %v1604, %v1606
        %v1609 = vadd.s32 %v1608, %v1598
        %v1610 = vadd.s32 %v1609, %v1600
        %v1611 = vmul.u32 %v1566, %v1557
        %v1612 = vadd.s32 %v1588, %v1607
        %vm1613 = vc.u32 %v1588, %v1607
        %v1614 = vadd.s32 %v1610, 1
        %v1615 = vsel %vm1613, %v1614, %v1610
        %v1616 = vadd.s32 %v1611, %v1615
        %v1617 = vadd.s32 %v1616, 536870912
        %v1618 = vshrl.u32 %v1617, 30
        %v1619 = vshll.u32 %v1618, 30
        %v1620 = vsub.s32 %v1616, %v1619
        %vm1621 = vcmp.lt.s32.totalorder %v1620, 0
        %v1622 = vsub.s32 0, %v1620
        %v1623 = vsel %vm1621, %v1622, %v1620
        %v1624 = vclz %v1623
        %v1625 = vsub.s32 %v1624, 2
        %vm1626 = vcmp.gt.s32.totalorder 0, %v1625
        %v1627 = vsel %vm1626, 0, %v1625
        %v1628 = vsub.s32 32, %v1627
        %v1629 = vshll.u32 %v1620, %v1627
        %v1630 = vshrl.u32 %v1612, %v1628
        %v1631 = vor.u32 %v1629, %v1630
        %v1632 = vsub.s32 4294967266, %v1627
        %v1633 = vadd.s32 %v1632, 127
        %v1634 = vshll.u32 %v1633, 23
        %v1635 = vor.u32 4788187, %v1634
        %v1636 = vand.u32 2147483647, %v1635
        %v1638 = vcvt.s32.f32 %v1631
        %v1639 = vmul.f32 %v1638, %v1636
        %v1640 = vxor.u32 %v1639, 2147483648
        %v1641 = vsel %vm1520, %v1640, %v1639
        %v1642 = vsub.s32 4, %v1618
        %v1643 = vsel %vm1520, %v1642, %v1618
        %v1644 = vsel %vm1519, %v401, %v1641
        %v1645 = vsel %vm1519, 0, %v1643
        %v1646 = vmul.f32 %v1644, %v1644
        %v1647 = vmul.f32 %v1646, -0.001358992
        %v1648 = vadd.f32 %v1647, 0.041655596
        %v1649 = vmul.f32 %v1646, %v1648
        %v1650 = vadd.f32 %v1649, -0.4999988
        %v1651 = vmul.f32 %v1646, %v1650
        %v1652 = vadd.f32 1.0, %v1651
        %v1653 = vmul.f32 %v1644, %v1644
        %v1654 = vmul.f32 %v1653, -0.00019511016
        %v1655 = vadd.f32 %v1654, 0.008332121
        %v1656 = vmul.f32 %v1653, %v1655
        %v1657 = vadd.f32 %v1656, -0.16666654
        %v1658 = vmul.f32 %v1653, %v1657
        %v1659 = vadd.f32 %v1658, 1.0
        %v1660 = vmul.f32 %v1659, %v1644
        %vm1661 = vweird.f32 %v401
        %v1662 = vadd.s32 %v1645, 3
        %v1663 = vand.u32 %v1662, 3
        %vm1664 = vcmp.lt.s32.totalorder %v1663, 2
        %vm1665 = vcmp.eq.s32.totalorder %v1663, 0
        %v1666 = vxor.u32 %v1660, 2147483648
        %v1667 = vsel %vm1665, %v1652, %v1666
        %vm1668 = vcmp.eq.s32.totalorder %v1663, 2
        %v1669 = vxor.u32 %v1652, 2147483648
        %v1670 = vsel %vm1668, %v1669, %v1660
        %v1671 = vsel %vm1664, %v1667, %v1670
        %v1672 = vsel %vm1661, nan, %v1671
        %v1681 = vrot.slane %v587, 5
        %v1682 = vrot.slane %v742, 5
        %v1683 = vrot.slane %v897, 5
        %v1684 = vrot.slane %v1052, 5
        %v1685 = vrot.slane %v1207, 5
        %v1686 = vrot.slane %v1362, 5
        %v1687 = vrot.slane %v1517, 5
        %v1688 = vrot.slane %v1672, 5
        %1697 = vst [vmem:[#allocation2 + $0xc0] sm:$0xf8] %v1681
        %1698 = vst [vmem:[#allocation2 + $0xc8] sm:$0xf8] %v1682
        %1699 = vst [vmem:[#allocation2 + $0xd0] sm:$0xf8] %v1683
        %1700 = vst [vmem:[#allocation2 + $0xd8] sm:$0xf8] %v1684
        %1701 = vst [vmem:[#allocation2 + $0xe0] sm:$0xf8] %v1685
        %1702 = vst [vmem:[#allocation2 + $0xe8] sm:$0xf8] %v1686
        %1703 = vst [vmem:[#allocation2 + $0xf0] sm:$0xf8] %v1687
        %1704 = vst [vmem:[#allocation2 + $0xf8] sm:$0xf8] %v1688
        %1705 = vst [vmem:[#allocation2 + $0x100] sm:$0x1] %v1681
        %1706 = vst [vmem:[#allocation2 + $0x108] sm:$0x1] %v1682
        %1707 = vst [vmem:[#allocation2 + $0x110] sm:$0x1] %v1683
        %1708 = vst [vmem:[#allocation2 + $0x118] sm:$0x1] %v1684
        %1709 = vst [vmem:[#allocation2 + $0x120] sm:$0x1] %v1685
        %1710 = vst [vmem:[#allocation2 + $0x128] sm:$0x1] %v1686
        %1711 = vst [vmem:[#allocation2 + $0x130] sm:$0x1] %v1687
        %1712 = vst [vmem:[#allocation2 + $0x138] sm:$0x1] %v1688
        %v1713 = vand.u32 2147483647, %v394
        %vm1714 = vcmp.le.f32.partialorder %v1713, 0.7853982
        %vm1715 = vcmp.lt.s32.totalorder %v394, 0
        %v1716 = vand.u32 %v394, 2139095040
        %v1717 = vshrl.u32 %v1716, 23
        %v1718 = vsub.s32 %v1717, 127
        %v1719 = vand.u32 2147483647, %v394
        %v1720 = vand.u32 %v1719, 8388607
        %v1721 = vor.u32 %v1720, 8388608
        %v1722 = vsub.s32 0, %v1721
        %v1723 = vadd.s32 %v1718, 1
        %vm1724 = vcmp.gt.s32.totalorder %v1723, 0
        %v1725 = vsel %vm1724, %v1723, 0
        %v1726 = vshrl.u32 %v1725, 5
        %v1727 = vand.u32 %v1725, 31
        %v1728 = vsub.s32 32, %v1727
        %v1729 = vshrl.u32 683565275, %v1728
        %v1730 = vshll.u32 683565275, %v1727
        %v1731 = vshrl.u32 2475754826, %v1728
        %v1732 = vor.u32 %v1730, %v1731
        %v1733 = vshll.u32 2475754826, %v1727
        %v1734 = vshrl.u32 2131351028, %v1728
        %v1735 = vor.u32 %v1733, %v1734
        %v1736 = vshll.u32 2131351028, %v1727
        %v1737 = vshrl.u32 2102212464, %v1728
        %v1738 = vor.u32 %v1736, %v1737
        %v1739 = vshll.u32 2102212464, %v1727
        %v1740 = vshrl.u32 920167782, %v1728
        %v1741 = vor.u32 %v1739, %v1740
        %v1742 = vshll.u32 920167782, %v1727
        %v1743 = vshrl.u32 1326507024, %v1728
        %v1744 = vor.u32 %v1742, %v1743
        %vm1745 = vcmp.lt.s32.totalorder %v1726, 1
        %vm1746 = vcmp.lt.s32.totalorder %v1726, 2
        %vm1747 = vcmp.lt.s32.totalorder %v1726, 3
        %vm1748 = vcmp.lt.s32.totalorder %v1726, 4
        %v1749 = vsel %vm1745, %v1729, %v1732
        %v1750 = vsel %vm1748, %v1738, 2102212464
        %v1751 = vsel %vm1747, %v1735, %v1750
        %v1752 = vsel %vm1746, %v1749, %v1751
        %v1753 = vsel %vm1745, %v1732, %v1735
        %v1754 = vsel %vm1748, %v1741, 920167782
        %v1755 = vsel %vm1747, %v1738, %v1754
        %v1756 = vsel %vm1746, %v1753, %v1755
        %v1757 = vsel %vm1745, %v1735, %v1738
        %v1758 = vsel %vm1748, %v1744, 1326507024
        %v1759 = vsel %vm1747, %v1741, %v1758
        %v1760 = vsel %vm1746, %v1757, %v1759
        %v1761 = vshll.u32 %v1721, 8
        %v1762 = vand.u32 %v1761, 65535
        %v1763 = vshrl.u32 %v1761, 16
        %v1764 = vand.u32 %v1760, 65535
        %v1765 = vshrl.u32 %v1760, 16
        %v1766 = vmul.u32 %v1762, %v1764
        %v1767 = vmul.u32 %v1762, %v1765
        %v1768 = vmul.u32 %v1763, %v1764
        %v1769 = vmul.u32 %v1763, %v1765
        %v1770 = vshll.u32 %v1767, 16
        %v1771 = vshrl.u32 %v1767, 16
        %v1772 = vshll.u32 %v1768, 16
        %v1773 = vshrl.u32 %v1768, 16
        %vm1774 = vc.u32 %v1766, %v1770
        %v1775 = vsel %vm1774, 1, 0
        %v1776 = vadd.s32 %v1766, %v1770
        %v1777 = vadd.s32 %v1769, %v1775
        %vm1778 = vc.u32 %v1776, %v1772
        %v1779 = vsel %vm1778, 1, 0
        %v1780 = vadd.s32 %v1776, %v1772
        %v1781 = vadd.s32 %v1777, %v1779
        %v1782 = vadd.s32 %v1781, %v1771
        %v1783 = vadd.s32 %v1782, %v1773
        %v1784 = vand.u32 %v1761, 65535
        %v1785 = vshrl.u32 %v1761, 16
        %v1786 = vand.u32 %v1756, 65535
        %v1787 = vshrl.u32 %v1756, 16
        %v1788 = vmul.u32 %v1784, %v1786
        %v1789 = vmul.u32 %v1784, %v1787
        %v1790 = vmul.u32 %v1785, %v1786
        %v1791 = vmul.u32 %v1785, %v1787
        %v1792 = vshll.u32 %v1789, 16
        %v1793 = vshrl.u32 %v1789, 16
        %v1794 = vshll.u32 %v1790, 16
        %v1795 = vshrl.u32 %v1790, 16
        %vm1796 = vc.u32 %v1788, %v1792
        %v1797 = vsel %vm1796, 1, 0
        %v1798 = vadd.s32 %v1788, %v1792
        %v1799 = vadd.s32 %v1791, %v1797
        %vm1800 = vc.u32 %v1798, %v1794
        %v1801 = vsel %vm1800, 1, 0
        %v1802 = vadd.s32 %v1798, %v1794
        %v1803 = vadd.s32 %v1799, %v1801
        %v1804 = vadd.s32 %v1803, %v1793
        %v1805 = vadd.s32 %v1804, %v1795
        %v1806 = vmul.u32 %v1761, %v1752
        %v1807 = vadd.s32 %v1783, %v1802
        %vm1808 = vc.u32 %v1783, %v1802
        %v1809 = vadd.s32 %v1805, 1
        %v1810 = vsel %vm1808, %v1809, %v1805
        %v1811 = vadd.s32 %v1806, %v1810
        %v1812 = vadd.s32 %v1811, 536870912
        %v1813 = vshrl.u32 %v1812, 30
        %v1814 = vshll.u32 %v1813, 30
        %v1815 = vsub.s32 %v1811, %v1814
        %vm1816 = vcmp.lt.s32.totalorder %v1815, 0
        %v1817 = vsub.s32 0, %v1815
        %v1818 = vsel %vm1816, %v1817, %v1815
        %v1819 = vclz %v1818
        %v1820 = vsub.s32 %v1819, 2
        %vm1821 = vcmp.gt.s32.totalorder 0, %v1820
        %v1822 = vsel %vm1821, 0, %v1820
        %v1823 = vsub.s32 32, %v1822
        %v1824 = vshll.u32 %v1815, %v1822
        %v1825 = vshrl.u32 %v1807, %v1823
        %v1826 = vor.u32 %v1824, %v1825
        %v1827 = vsub.s32 4294967266, %v1822
        %v1828 = vadd.s32 %v1827, 127
        %v1829 = vshll.u32 %v1828, 23
        %v1830 = vor.u32 4788187, %v1829
        %v1831 = vand.u32 2147483647, %v1830
        %v1833 = vcvt.s32.f32 %v1826
        %v1834 = vmul.f32 %v1833, %v1831
        %v1835 = vxor.u32 %v1834, 2147483648
        %v1836 = vsel %vm1715, %v1835, %v1834
        %v1837 = vsub.s32 4, %v1813
        %v1838 = vsel %vm1715, %v1837, %v1813
        %v1839 = vsel %vm1714, %v394, %v1836
        %v1840 = vsel %vm1714, 0, %v1838
        %v1841 = vmul.f32 %v1839, %v1839
        %v1842 = vmul.f32 %v1841, -0.001358992
        %v1843 = vadd.f32 %v1842, 0.041655596
        %v1844 = vmul.f32 %v1841, %v1843
        %v1845 = vadd.f32 %v1844, -0.4999988
        %v1846 = vmul.f32 %v1841, %v1845
        %v1847 = vadd.f32 1.0, %v1846
        %v1848 = vmul.f32 %v1839, %v1839
        %v1849 = vmul.f32 %v1848, -0.00019511016
        %v1850 = vadd.f32 %v1849, 0.008332121
        %v1851 = vmul.f32 %v1848, %v1850
        %v1852 = vadd.f32 %v1851, -0.16666654
        %v1853 = vmul.f32 %v1848, %v1852
        %v1854 = vadd.f32 %v1853, 1.0
        %v1855 = vmul.f32 %v1854, %v1839
        %vm1856 = vweird.f32 %v394
        %v1857 = vand.u32 %v1840, 3
        %vm1858 = vcmp.lt.s32.totalorder %v1857, 2
        %vm1859 = vcmp.eq.s32.totalorder %v1857, 0
        %v1860 = vxor.u32 %v1855, 2147483648
        %v1861 = vsel %vm1859, %v1847, %v1860
        %vm1862 = vcmp.eq.s32.totalorder %v1857, 2
        %v1863 = vxor.u32 %v1847, 2147483648
        %v1864 = vsel %vm1862, %v1863, %v1855
        %v1865 = vsel %vm1858, %v1861, %v1864
        %v1866 = vsel %vm1856, nan, %v1865
        %v1867 = vand.u32 2147483647, %v395
        %vm1868 = vcmp.le.f32.partialorder %v1867, 0.7853982
        %vm1869 = vcmp.lt.s32.totalorder %v395, 0
        %v1870 = vand.u32 %v395, 2139095040
        %v1871 = vshrl.u32 %v1870, 23
        %v1872 = vsub.s32 %v1871, 127
        %v1873 = vand.u32 2147483647, %v395
        %v1874 = vand.u32 %v1873, 8388607
        %v1875 = vor.u32 %v1874, 8388608
        %v1876 = vsub.s32 0, %v1875
        %v1877 = vadd.s32 %v1872, 1
        %vm1878 = vcmp.gt.s32.totalorder %v1877, 0
        %v1879 = vsel %vm1878, %v1877, 0
        %v1880 = vshrl.u32 %v1879, 5
        %v1881 = vand.u32 %v1879, 31
        %v1882 = vsub.s32 32, %v1881
        %v1883 = vshrl.u32 683565275, %v1882
        %v1884 = vshll.u32 683565275, %v1881
        %v1885 = vshrl.u32 2475754826, %v1882
        %v1886 = vor.u32 %v1884, %v1885
        %v1887 = vshll.u32 2475754826, %v1881
        %v1888 = vshrl.u32 2131351028, %v1882
        %v1889 = vor.u32 %v1887, %v1888
        %v1890 = vshll.u32 2131351028, %v1881
        %v1891 = vshrl.u32 2102212464, %v1882
        %v1892 = vor.u32 %v1890, %v1891
        %v1893 = vshll.u32 2102212464, %v1881
        %v1894 = vshrl.u32 920167782, %v1882
        %v1895 = vor.u32 %v1893, %v1894
        %v1896 = vshll.u32 920167782, %v1881
        %v1897 = vshrl.u32 1326507024, %v1882
        %v1898 = vor.u32 %v1896, %v1897
        %vm1899 = vcmp.lt.s32.totalorder %v1880, 1
        %vm1900 = vcmp.lt.s32.totalorder %v1880, 2
        %vm1901 = vcmp.lt.s32.totalorder %v1880, 3
        %vm1902 = vcmp.lt.s32.totalorder %v1880, 4
        %v1903 = vsel %vm1899, %v1883, %v1886
        %v1904 = vsel %vm1902, %v1892, 2102212464
        %v1905 = vsel %vm1901, %v1889, %v1904
        %v1906 = vsel %vm1900, %v1903, %v1905
        %v1907 = vsel %vm1899, %v1886, %v1889
        %v1908 = vsel %vm1902, %v1895, 920167782
        %v1909 = vsel %vm1901, %v1892, %v1908
        %v1910 = vsel %vm1900, %v1907, %v1909
        %v1911 = vsel %vm1899, %v1889, %v1892
        %v1912 = vsel %vm1902, %v1898, 1326507024
        %v1913 = vsel %vm1901, %v1895, %v1912
        %v1914 = vsel %vm1900, %v1911, %v1913
        %v1915 = vshll.u32 %v1875, 8
        %v1916 = vand.u32 %v1915, 65535
        %v1917 = vshrl.u32 %v1915, 16
        %v1918 = vand.u32 %v1914, 65535
        %v1919 = vshrl.u32 %v1914, 16
        %v1920 = vmul.u32 %v1916, %v1918
        %v1921 = vmul.u32 %v1916, %v1919
        %v1922 = vmul.u32 %v1917, %v1918
        %v1923 = vmul.u32 %v1917, %v1919
        %v1924 = vshll.u32 %v1921, 16
        %v1925 = vshrl.u32 %v1921, 16
        %v1926 = vshll.u32 %v1922, 16
        %v1927 = vshrl.u32 %v1922, 16
        %vm1928 = vc.u32 %v1920, %v1924
        %v1929 = vsel %vm1928, 1, 0
        %v1930 = vadd.s32 %v1920, %v1924
        %v1931 = vadd.s32 %v1923, %v1929
        %vm1932 = vc.u32 %v1930, %v1926
        %v1933 = vsel %vm1932, 1, 0
        %v1934 = vadd.s32 %v1930, %v1926
        %v1935 = vadd.s32 %v1931, %v1933
        %v1936 = vadd.s32 %v1935, %v1925
        %v1937 = vadd.s32 %v1936, %v1927
        %v1938 = vand.u32 %v1915, 65535
        %v1939 = vshrl.u32 %v1915, 16
        %v1940 = vand.u32 %v1910, 65535
        %v1941 = vshrl.u32 %v1910, 16
        %v1942 = vmul.u32 %v1938, %v1940
        %v1943 = vmul.u32 %v1938, %v1941
        %v1944 = vmul.u32 %v1939, %v1940
        %v1945 = vmul.u32 %v1939, %v1941
        %v1946 = vshll.u32 %v1943, 16
        %v1947 = vshrl.u32 %v1943, 16
        %v1948 = vshll.u32 %v1944, 16
        %v1949 = vshrl.u32 %v1944, 16
        %vm1950 = vc.u32 %v1942, %v1946
        %v1951 = vsel %vm1950, 1, 0
        %v1952 = vadd.s32 %v1942, %v1946
        %v1953 = vadd.s32 %v1945, %v1951
        %vm1954 = vc.u32 %v1952, %v1948
        %v1955 = vsel %vm1954, 1, 0
        %v1956 = vadd.s32 %v1952, %v1948
        %v1957 = vadd.s32 %v1953, %v1955
        %v1958 = vadd.s32 %v1957, %v1947
        %v1959 = vadd.s32 %v1958, %v1949
        %v1960 = vmul.u32 %v1915, %v1906
        %v1961 = vadd.s32 %v1937, %v1956
        %vm1962 = vc.u32 %v1937, %v1956
        %v1963 = vadd.s32 %v1959, 1
        %v1964 = vsel %vm1962, %v1963, %v1959
        %v1965 = vadd.s32 %v1960, %v1964
        %v1966 = vadd.s32 %v1965, 536870912
        %v1967 = vshrl.u32 %v1966, 30
        %v1968 = vshll.u32 %v1967, 30
        %v1969 = vsub.s32 %v1965, %v1968
        %vm1970 = vcmp.lt.s32.totalorder %v1969, 0
        %v1971 = vsub.s32 0, %v1969
        %v1972 = vsel %vm1970, %v1971, %v1969
        %v1973 = vclz %v1972
        %v1974 = vsub.s32 %v1973, 2
        %vm1975 = vcmp.gt.s32.totalorder 0, %v1974
        %v1976 = vsel %vm1975, 0, %v1974
        %v1977 = vsub.s32 32, %v1976
        %v1978 = vshll.u32 %v1969, %v1976
        %v1979 = vshrl.u32 %v1961, %v1977
        %v1980 = vor.u32 %v1978, %v1979
        %v1981 = vsub.s32 4294967266, %v1976
        %v1982 = vadd.s32 %v1981, 127
        %v1983 = vshll.u32 %v1982, 23
        %v1984 = vor.u32 4788187, %v1983
        %v1985 = vand.u32 2147483647, %v1984
        %v1987 = vcvt.s32.f32 %v1980
        %v1988 = vmul.f32 %v1987, %v1985
        %v1989 = vxor.u32 %v1988, 2147483648
        %v1990 = vsel %vm1869, %v1989, %v1988
        %v1991 = vsub.s32 4, %v1967
        %v1992 = vsel %vm1869, %v1991, %v1967
        %v1993 = vsel %vm1868, %v395, %v1990
        %v1994 = vsel %vm1868, 0, %v1992
        %v1995 = vmul.f32 %v1993, %v1993
        %v1996 = vmul.f32 %v1995, -0.001358992
        %v1997 = vadd.f32 %v1996, 0.041655596
        %v1998 = vmul.f32 %v1995, %v1997
        %v1999 = vadd.f32 %v1998, -0.4999988
        %v2000 = vmul.f32 %v1995, %v1999
        %v2001 = vadd.f32 1.0, %v2000
        %v2002 = vmul.f32 %v1993, %v1993
        %v2003 = vmul.f32 %v2002, -0.00019511016
        %v2004 = vadd.f32 %v2003, 0.008332121
        %v2005 = vmul.f32 %v2002, %v2004
        %v2006 = vadd.f32 %v2005, -0.16666654
        %v2007 = vmul.f32 %v2002, %v2006
        %v2008 = vadd.f32 %v2007, 1.0
        %v2009 = vmul.f32 %v2008, %v1993
        %vm2010 = vweird.f32 %v395
        %v2011 = vand.u32 %v1994, 3
        %vm2012 = vcmp.lt.s32.totalorder %v2011, 2
        %vm2013 = vcmp.eq.s32.totalorder %v2011, 0
        %v2014 = vxor.u32 %v2009, 2147483648
        %v2015 = vsel %vm2013, %v2001, %v2014
        %vm2016 = vcmp.eq.s32.totalorder %v2011, 2
        %v2017 = vxor.u32 %v2001, 2147483648
        %v2018 = vsel %vm2016, %v2017, %v2009
        %v2019 = vsel %vm2012, %v2015, %v2018
        %v2020 = vsel %vm2010, nan, %v2019
        %v2021 = vand.u32 2147483647, %v396
        %vm2022 = vcmp.le.f32.partialorder %v2021, 0.7853982
        %vm2023 = vcmp.lt.s32.totalorder %v396, 0
        %v2024 = vand.u32 %v396, 2139095040
        %v2025 = vshrl.u32 %v2024, 23
        %v2026 = vsub.s32 %v2025, 127
        %v2027 = vand.u32 2147483647, %v396
        %v2028 = vand.u32 %v2027, 8388607
        %v2029 = vor.u32 %v2028, 8388608
        %v2030 = vsub.s32 0, %v2029
        %v2031 = vadd.s32 %v2026, 1
        %vm2032 = vcmp.gt.s32.totalorder %v2031, 0
        %v2033 = vsel %vm2032, %v2031, 0
        %v2034 = vshrl.u32 %v2033, 5
        %v2035 = vand.u32 %v2033, 31
        %v2036 = vsub.s32 32, %v2035
        %v2037 = vshrl.u32 683565275, %v2036
        %v2038 = vshll.u32 683565275, %v2035
        %v2039 = vshrl.u32 2475754826, %v2036
        %v2040 = vor.u32 %v2038, %v2039
        %v2041 = vshll.u32 2475754826, %v2035
        %v2042 = vshrl.u32 2131351028, %v2036
        %v2043 = vor.u32 %v2041, %v2042
        %v2044 = vshll.u32 2131351028, %v2035
        %v2045 = vshrl.u32 2102212464, %v2036
        %v2046 = vor.u32 %v2044, %v2045
        %v2047 = vshll.u32 2102212464, %v2035
        %v2048 = vshrl.u32 920167782, %v2036
        %v2049 = vor.u32 %v2047, %v2048
        %v2050 = vshll.u32 920167782, %v2035
        %v2051 = vshrl.u32 1326507024, %v2036
        %v2052 = vor.u32 %v2050, %v2051
        %vm2053 = vcmp.lt.s32.totalorder %v2034, 1
        %vm2054 = vcmp.lt.s32.totalorder %v2034, 2
        %vm2055 = vcmp.lt.s32.totalorder %v2034, 3
        %vm2056 = vcmp.lt.s32.totalorder %v2034, 4
        %v2057 = vsel %vm2053, %v2037, %v2040
        %v2058 = vsel %vm2056, %v2046, 2102212464
        %v2059 = vsel %vm2055, %v2043, %v2058
        %v2060 = vsel %vm2054, %v2057, %v2059
        %v2061 = vsel %vm2053, %v2040, %v2043
        %v2062 = vsel %vm2056, %v2049, 920167782
        %v2063 = vsel %vm2055, %v2046, %v2062
        %v2064 = vsel %vm2054, %v2061, %v2063
        %v2065 = vsel %vm2053, %v2043, %v2046
        %v2066 = vsel %vm2056, %v2052, 1326507024
        %v2067 = vsel %vm2055, %v2049, %v2066
        %v2068 = vsel %vm2054, %v2065, %v2067
        %v2069 = vshll.u32 %v2029, 8
        %v2070 = vand.u32 %v2069, 65535
        %v2071 = vshrl.u32 %v2069, 16
        %v2072 = vand.u32 %v2068, 65535
        %v2073 = vshrl.u32 %v2068, 16
        %v2074 = vmul.u32 %v2070, %v2072
        %v2075 = vmul.u32 %v2070, %v2073
        %v2076 = vmul.u32 %v2071, %v2072
        %v2077 = vmul.u32 %v2071, %v2073
        %v2078 = vshll.u32 %v2075, 16
        %v2079 = vshrl.u32 %v2075, 16
        %v2080 = vshll.u32 %v2076, 16
        %v2081 = vshrl.u32 %v2076, 16
        %vm2082 = vc.u32 %v2074, %v2078
        %v2083 = vsel %vm2082, 1, 0
        %v2084 = vadd.s32 %v2074, %v2078
        %v2085 = vadd.s32 %v2077, %v2083
        %vm2086 = vc.u32 %v2084, %v2080
        %v2087 = vsel %vm2086, 1, 0
        %v2088 = vadd.s32 %v2084, %v2080
        %v2089 = vadd.s32 %v2085, %v2087
        %v2090 = vadd.s32 %v2089, %v2079
        %v2091 = vadd.s32 %v2090, %v2081
        %v2092 = vand.u32 %v2069, 65535
        %v2093 = vshrl.u32 %v2069, 16
        %v2094 = vand.u32 %v2064, 65535
        %v2095 = vshrl.u32 %v2064, 16
        %v2096 = vmul.u32 %v2092, %v2094
        %v2097 = vmul.u32 %v2092, %v2095
        %v2098 = vmul.u32 %v2093, %v2094
        %v2099 = vmul.u32 %v2093, %v2095
        %v2100 = vshll.u32 %v2097, 16
        %v2101 = vshrl.u32 %v2097, 16
        %v2102 = vshll.u32 %v2098, 16
        %v2103 = vshrl.u32 %v2098, 16
        %vm2104 = vc.u32 %v2096, %v2100
        %v2105 = vsel %vm2104, 1, 0
        %v2106 = vadd.s32 %v2096, %v2100
        %v2107 = vadd.s32 %v2099, %v2105
        %vm2108 = vc.u32 %v2106, %v2102
        %v2109 = vsel %vm2108, 1, 0
        %v2110 = vadd.s32 %v2106, %v2102
        %v2111 = vadd.s32 %v2107, %v2109
        %v2112 = vadd.s32 %v2111, %v2101
        %v2113 = vadd.s32 %v2112, %v2103
        %v2114 = vmul.u32 %v2069, %v2060
        %v2115 = vadd.s32 %v2091, %v2110
        %vm2116 = vc.u32 %v2091, %v2110
        %v2117 = vadd.s32 %v2113, 1
        %v2118 = vsel %vm2116, %v2117, %v2113
        %v2119 = vadd.s32 %v2114, %v2118
        %v2120 = vadd.s32 %v2119, 536870912
        %v2121 = vshrl.u32 %v2120, 30
        %v2122 = vshll.u32 %v2121, 30
        %v2123 = vsub.s32 %v2119, %v2122
        %vm2124 = vcmp.lt.s32.totalorder %v2123, 0
        %v2125 = vsub.s32 0, %v2123
        %v2126 = vsel %vm2124, %v2125, %v2123
        %v2127 = vclz %v2126
        %v2128 = vsub.s32 %v2127, 2
        %vm2129 = vcmp.gt.s32.totalorder 0, %v2128
        %v2130 = vsel %vm2129, 0, %v2128
        %v2131 = vsub.s32 32, %v2130
        %v2132 = vshll.u32 %v2123, %v2130
        %v2133 = vshrl.u32 %v2115, %v2131
        %v2134 = vor.u32 %v2132, %v2133
        %v2135 = vsub.s32 4294967266, %v2130
        %v2136 = vadd.s32 %v2135, 127
        %v2137 = vshll.u32 %v2136, 23
        %v2138 = vor.u32 4788187, %v2137
        %v2139 = vand.u32 2147483647, %v2138
        %v2141 = vcvt.s32.f32 %v2134
        %v2142 = vmul.f32 %v2141, %v2139
        %v2143 = vxor.u32 %v2142, 2147483648
        %v2144 = vsel %vm2023, %v2143, %v2142
        %v2145 = vsub.s32 4, %v2121
        %v2146 = vsel %vm2023, %v2145, %v2121
        %v2147 = vsel %vm2022, %v396, %v2144
        %v2148 = vsel %vm2022, 0, %v2146
        %v2149 = vmul.f32 %v2147, %v2147
        %v2150 = vmul.f32 %v2149, -0.001358992
        %v2151 = vadd.f32 %v2150, 0.041655596
        %v2152 = vmul.f32 %v2149, %v2151
        %v2153 = vadd.f32 %v2152, -0.4999988
        %v2154 = vmul.f32 %v2149, %v2153
        %v2155 = vadd.f32 1.0, %v2154
        %v2156 = vmul.f32 %v2147, %v2147
        %v2157 = vmul.f32 %v2156, -0.00019511016
        %v2158 = vadd.f32 %v2157, 0.008332121
        %v2159 = vmul.f32 %v2156, %v2158
        %v2160 = vadd.f32 %v2159, -0.16666654
        %v2161 = vmul.f32 %v2156, %v2160
        %v2162 = vadd.f32 %v2161, 1.0
        %v2163 = vmul.f32 %v2162, %v2147
        %vm2164 = vweird.f32 %v396
        %v2165 = vand.u32 %v2148, 3
        %vm2166 = vcmp.lt.s32.totalorder %v2165, 2
        %vm2167 = vcmp.eq.s32.totalorder %v2165, 0
        %v2168 = vxor.u32 %v2163, 2147483648
        %v2169 = vsel %vm2167, %v2155, %v2168
        %vm2170 = vcmp.eq.s32.totalorder %v2165, 2
        %v2171 = vxor.u32 %v2155, 2147483648
        %v2172 = vsel %vm2170, %v2171, %v2163
        %v2173 = vsel %vm2166, %v2169, %v2172
        %v2174 = vsel %vm2164, nan, %v2173
        %v2175 = vand.u32 2147483647, %v397
        %vm2176 = vcmp.le.f32.partialorder %v2175, 0.7853982
        %vm2177 = vcmp.lt.s32.totalorder %v397, 0
        %v2178 = vand.u32 %v397, 2139095040
        %v2179 = vshrl.u32 %v2178, 23
        %v2180 = vsub.s32 %v2179, 127
        %v2181 = vand.u32 2147483647, %v397
        %v2182 = vand.u32 %v2181, 8388607
        %v2183 = vor.u32 %v2182, 8388608
        %v2184 = vsub.s32 0, %v2183
        %v2185 = vadd.s32 %v2180, 1
        %vm2186 = vcmp.gt.s32.totalorder %v2185, 0
        %v2187 = vsel %vm2186, %v2185, 0
        %v2188 = vshrl.u32 %v2187, 5
        %v2189 = vand.u32 %v2187, 31
        %v2190 = vsub.s32 32, %v2189
        %v2191 = vshrl.u32 683565275, %v2190
        %v2192 = vshll.u32 683565275, %v2189
        %v2193 = vshrl.u32 2475754826, %v2190
        %v2194 = vor.u32 %v2192, %v2193
        %v2195 = vshll.u32 2475754826, %v2189
        %v2196 = vshrl.u32 2131351028, %v2190
        %v2197 = vor.u32 %v2195, %v2196
        %v2198 = vshll.u32 2131351028, %v2189
        %v2199 = vshrl.u32 2102212464, %v2190
        %v2200 = vor.u32 %v2198, %v2199
        %v2201 = vshll.u32 2102212464, %v2189
        %v2202 = vshrl.u32 920167782, %v2190
        %v2203 = vor.u32 %v2201, %v2202
        %v2204 = vshll.u32 920167782, %v2189
        %v2205 = vshrl.u32 1326507024, %v2190
        %v2206 = vor.u32 %v2204, %v2205
        %vm2207 = vcmp.lt.s32.totalorder %v2188, 1
        %vm2208 = vcmp.lt.s32.totalorder %v2188, 2
        %vm2209 = vcmp.lt.s32.totalorder %v2188, 3
        %vm2210 = vcmp.lt.s32.totalorder %v2188, 4
        %v2211 = vsel %vm2207, %v2191, %v2194
        %v2212 = vsel %vm2210, %v2200, 2102212464
        %v2213 = vsel %vm2209, %v2197, %v2212
        %v2214 = vsel %vm2208, %v2211, %v2213
        %v2215 = vsel %vm2207, %v2194, %v2197
        %v2216 = vsel %vm2210, %v2203, 920167782
        %v2217 = vsel %vm2209, %v2200, %v2216
        %v2218 = vsel %vm2208, %v2215, %v2217
        %v2219 = vsel %vm2207, %v2197, %v2200
        %v2220 = vsel %vm2210, %v2206, 1326507024
        %v2221 = vsel %vm2209, %v2203, %v2220
        %v2222 = vsel %vm2208, %v2219, %v2221
        %v2223 = vshll.u32 %v2183, 8
        %v2224 = vand.u32 %v2223, 65535
        %v2225 = vshrl.u32 %v2223, 16
        %v2226 = vand.u32 %v2222, 65535
        %v2227 = vshrl.u32 %v2222, 16
        %v2228 = vmul.u32 %v2224, %v2226
        %v2229 = vmul.u32 %v2224, %v2227
        %v2230 = vmul.u32 %v2225, %v2226
        %v2231 = vmul.u32 %v2225, %v2227
        %v2232 = vshll.u32 %v2229, 16
        %v2233 = vshrl.u32 %v2229, 16
        %v2234 = vshll.u32 %v2230, 16
        %v2235 = vshrl.u32 %v2230, 16
        %vm2236 = vc.u32 %v2228, %v2232
        %v2237 = vsel %vm2236, 1, 0
        %v2238 = vadd.s32 %v2228, %v2232
        %v2239 = vadd.s32 %v2231, %v2237
        %vm2240 = vc.u32 %v2238, %v2234
        %v2241 = vsel %vm2240, 1, 0
        %v2242 = vadd.s32 %v2238, %v2234
        %v2243 = vadd.s32 %v2239, %v2241
        %v2244 = vadd.s32 %v2243, %v2233
        %v2245 = vadd.s32 %v2244, %v2235
        %v2246 = vand.u32 %v2223, 65535
        %v2247 = vshrl.u32 %v2223, 16
        %v2248 = vand.u32 %v2218, 65535
        %v2249 = vshrl.u32 %v2218, 16
        %v2250 = vmul.u32 %v2246, %v2248
        %v2251 = vmul.u32 %v2246, %v2249
        %v2252 = vmul.u32 %v2247, %v2248
        %v2253 = vmul.u32 %v2247, %v2249
        %v2254 = vshll.u32 %v2251, 16
        %v2255 = vshrl.u32 %v2251, 16
        %v2256 = vshll.u32 %v2252, 16
        %v2257 = vshrl.u32 %v2252, 16
        %vm2258 = vc.u32 %v2250, %v2254
        %v2259 = vsel %vm2258, 1, 0
        %v2260 = vadd.s32 %v2250, %v2254
        %v2261 = vadd.s32 %v2253, %v2259
        %vm2262 = vc.u32 %v2260, %v2256
        %v2263 = vsel %vm2262, 1, 0
        %v2264 = vadd.s32 %v2260, %v2256
        %v2265 = vadd.s32 %v2261, %v2263
        %v2266 = vadd.s32 %v2265, %v2255
        %v2267 = vadd.s32 %v2266, %v2257
        %v2268 = vmul.u32 %v2223, %v2214
        %v2269 = vadd.s32 %v2245, %v2264
        %vm2270 = vc.u32 %v2245, %v2264
        %v2271 = vadd.s32 %v2267, 1
        %v2272 = vsel %vm2270, %v2271, %v2267
        %v2273 = vadd.s32 %v2268, %v2272
        %v2274 = vadd.s32 %v2273, 536870912
        %v2275 = vshrl.u32 %v2274, 30
        %v2276 = vshll.u32 %v2275, 30
        %v2277 = vsub.s32 %v2273, %v2276
        %vm2278 = vcmp.lt.s32.totalorder %v2277, 0
        %v2279 = vsub.s32 0, %v2277
        %v2280 = vsel %vm2278, %v2279, %v2277
        %v2281 = vclz %v2280
        %v2282 = vsub.s32 %v2281, 2
        %vm2283 = vcmp.gt.s32.totalorder 0, %v2282
        %v2284 = vsel %vm2283, 0, %v2282
        %v2285 = vsub.s32 32, %v2284
        %v2286 = vshll.u32 %v2277, %v2284
        %v2287 = vshrl.u32 %v2269, %v2285
        %v2288 = vor.u32 %v2286, %v2287
        %v2289 = vsub.s32 4294967266, %v2284
        %v2290 = vadd.s32 %v2289, 127
        %v2291 = vshll.u32 %v2290, 23
        %v2292 = vor.u32 4788187, %v2291
        %v2293 = vand.u32 2147483647, %v2292
        %v2295 = vcvt.s32.f32 %v2288
        %v2296 = vmul.f32 %v2295, %v2293
        %v2297 = vxor.u32 %v2296, 2147483648
        %v2298 = vsel %vm2177, %v2297, %v2296
        %v2299 = vsub.s32 4, %v2275
        %v2300 = vsel %vm2177, %v2299, %v2275
        %v2301 = vsel %vm2176, %v397, %v2298
        %v2302 = vsel %vm2176, 0, %v2300
        %v2303 = vmul.f32 %v2301, %v2301
        %v2304 = vmul.f32 %v2303, -0.001358992
        %v2305 = vadd.f32 %v2304, 0.041655596
        %v2306 = vmul.f32 %v2303, %v2305
        %v2307 = vadd.f32 %v2306, -0.4999988
        %v2308 = vmul.f32 %v2303, %v2307
        %v2309 = vadd.f32 1.0, %v2308
        %v2310 = vmul.f32 %v2301, %v2301
        %v2311 = vmul.f32 %v2310, -0.00019511016
        %v2312 = vadd.f32 %v2311, 0.008332121
        %v2313 = vmul.f32 %v2310, %v2312
        %v2314 = vadd.f32 %v2313, -0.16666654
        %v2315 = vmul.f32 %v2310, %v2314
        %v2316 = vadd.f32 %v2315, 1.0
        %v2317 = vmul.f32 %v2316, %v2301
        %vm2318 = vweird.f32 %v397
        %v2319 = vand.u32 %v2302, 3
        %vm2320 = vcmp.lt.s32.totalorder %v2319, 2
        %vm2321 = vcmp.eq.s32.totalorder %v2319, 0
        %v2322 = vxor.u32 %v2317, 2147483648
        %v2323 = vsel %vm2321, %v2309, %v2322
        %vm2324 = vcmp.eq.s32.totalorder %v2319, 2
        %v2325 = vxor.u32 %v2309, 2147483648
        %v2326 = vsel %vm2324, %v2325, %v2317
        %v2327 = vsel %vm2320, %v2323, %v2326
        %v2328 = vsel %vm2318, nan, %v2327
        %v2329 = vand.u32 2147483647, %v398
        %vm2330 = vcmp.le.f32.partialorder %v2329, 0.7853982
        %vm2331 = vcmp.lt.s32.totalorder %v398, 0
        %v2332 = vand.u32 %v398, 2139095040
        %v2333 = vshrl.u32 %v2332, 23
        %v2334 = vsub.s32 %v2333, 127
        %v2335 = vand.u32 2147483647, %v398
        %v2336 = vand.u32 %v2335, 8388607
        %v2337 = vor.u32 %v2336, 8388608
        %v2338 = vsub.s32 0, %v2337
        %v2339 = vadd.s32 %v2334, 1
        %vm2340 = vcmp.gt.s32.totalorder %v2339, 0
        %v2341 = vsel %vm2340, %v2339, 0
        %v2342 = vshrl.u32 %v2341, 5
        %v2343 = vand.u32 %v2341, 31
        %v2344 = vsub.s32 32, %v2343
        %v2345 = vshrl.u32 683565275, %v2344
        %v2346 = vshll.u32 683565275, %v2343
        %v2347 = vshrl.u32 2475754826, %v2344
        %v2348 = vor.u32 %v2346, %v2347
        %v2349 = vshll.u32 2475754826, %v2343
        %v2350 = vshrl.u32 2131351028, %v2344
        %v2351 = vor.u32 %v2349, %v2350
        %v2352 = vshll.u32 2131351028, %v2343
        %v2353 = vshrl.u32 2102212464, %v2344
        %v2354 = vor.u32 %v2352, %v2353
        %v2355 = vshll.u32 2102212464, %v2343
        %v2356 = vshrl.u32 920167782, %v2344
        %v2357 = vor.u32 %v2355, %v2356
        %v2358 = vshll.u32 920167782, %v2343
        %v2359 = vshrl.u32 1326507024, %v2344
        %v2360 = vor.u32 %v2358, %v2359
        %vm2361 = vcmp.lt.s32.totalorder %v2342, 1
        %vm2362 = vcmp.lt.s32.totalorder %v2342, 2
        %vm2363 = vcmp.lt.s32.totalorder %v2342, 3
        %vm2364 = vcmp.lt.s32.totalorder %v2342, 4
        %v2365 = vsel %vm2361, %v2345, %v2348
        %v2366 = vsel %vm2364, %v2354, 2102212464
        %v2367 = vsel %vm2363, %v2351, %v2366
        %v2368 = vsel %vm2362, %v2365, %v2367
        %v2369 = vsel %vm2361, %v2348, %v2351
        %v2370 = vsel %vm2364, %v2357, 920167782
        %v2371 = vsel %vm2363, %v2354, %v2370
        %v2372 = vsel %vm2362, %v2369, %v2371
        %v2373 = vsel %vm2361, %v2351, %v2354
        %v2374 = vsel %vm2364, %v2360, 1326507024
        %v2375 = vsel %vm2363, %v2357, %v2374
        %v2376 = vsel %vm2362, %v2373, %v2375
        %v2377 = vshll.u32 %v2337, 8
        %v2378 = vand.u32 %v2377, 65535
        %v2379 = vshrl.u32 %v2377, 16
        %v2380 = vand.u32 %v2376, 65535
        %v2381 = vshrl.u32 %v2376, 16
        %v2382 = vmul.u32 %v2378, %v2380
        %v2383 = vmul.u32 %v2378, %v2381
        %v2384 = vmul.u32 %v2379, %v2380
        %v2385 = vmul.u32 %v2379, %v2381
        %v2386 = vshll.u32 %v2383, 16
        %v2387 = vshrl.u32 %v2383, 16
        %v2388 = vshll.u32 %v2384, 16
        %v2389 = vshrl.u32 %v2384, 16
        %vm2390 = vc.u32 %v2382, %v2386
        %v2391 = vsel %vm2390, 1, 0
        %v2392 = vadd.s32 %v2382, %v2386
        %v2393 = vadd.s32 %v2385, %v2391
        %vm2394 = vc.u32 %v2392, %v2388
        %v2395 = vsel %vm2394, 1, 0
        %v2396 = vadd.s32 %v2392, %v2388
        %v2397 = vadd.s32 %v2393, %v2395
        %v2398 = vadd.s32 %v2397, %v2387
        %v2399 = vadd.s32 %v2398, %v2389
        %v2400 = vand.u32 %v2377, 65535
        %v2401 = vshrl.u32 %v2377, 16
        %v2402 = vand.u32 %v2372, 65535
        %v2403 = vshrl.u32 %v2372, 16
        %v2404 = vmul.u32 %v2400, %v2402
        %v2405 = vmul.u32 %v2400, %v2403
        %v2406 = vmul.u32 %v2401, %v2402
        %v2407 = vmul.u32 %v2401, %v2403
        %v2408 = vshll.u32 %v2405, 16
        %v2409 = vshrl.u32 %v2405, 16
        %v2410 = vshll.u32 %v2406, 16
        %v2411 = vshrl.u32 %v2406, 16
        %vm2412 = vc.u32 %v2404, %v2408
        %v2413 = vsel %vm2412, 1, 0
        %v2414 = vadd.s32 %v2404, %v2408
        %v2415 = vadd.s32 %v2407, %v2413
        %vm2416 = vc.u32 %v2414, %v2410
        %v2417 = vsel %vm2416, 1, 0
        %v2418 = vadd.s32 %v2414, %v2410
        %v2419 = vadd.s32 %v2415, %v2417
        %v2420 = vadd.s32 %v2419, %v2409
        %v2421 = vadd.s32 %v2420, %v2411
        %v2422 = vmul.u32 %v2377, %v2368
        %v2423 = vadd.s32 %v2399, %v2418
        %vm2424 = vc.u32 %v2399, %v2418
        %v2425 = vadd.s32 %v2421, 1
        %v2426 = vsel %vm2424, %v2425, %v2421
        %v2427 = vadd.s32 %v2422, %v2426
        %v2428 = vadd.s32 %v2427, 536870912
        %v2429 = vshrl.u32 %v2428, 30
        %v2430 = vshll.u32 %v2429, 30
        %v2431 = vsub.s32 %v2427, %v2430
        %vm2432 = vcmp.lt.s32.totalorder %v2431, 0
        %v2433 = vsub.s32 0, %v2431
        %v2434 = vsel %vm2432, %v2433, %v2431
        %v2435 = vclz %v2434
        %v2436 = vsub.s32 %v2435, 2
        %vm2437 = vcmp.gt.s32.totalorder 0, %v2436
        %v2438 = vsel %vm2437, 0, %v2436
        %v2439 = vsub.s32 32, %v2438
        %v2440 = vshll.u32 %v2431, %v2438
        %v2441 = vshrl.u32 %v2423, %v2439
        %v2442 = vor.u32 %v2440, %v2441
        %v2443 = vsub.s32 4294967266, %v2438
        %v2444 = vadd.s32 %v2443, 127
        %v2445 = vshll.u32 %v2444, 23
        %v2446 = vor.u32 4788187, %v2445
        %v2447 = vand.u32 2147483647, %v2446
        %v2449 = vcvt.s32.f32 %v2442
        %v2450 = vmul.f32 %v2449, %v2447
        %v2451 = vxor.u32 %v2450, 2147483648
        %v2452 = vsel %vm2331, %v2451, %v2450
        %v2453 = vsub.s32 4, %v2429
        %v2454 = vsel %vm2331, %v2453, %v2429
        %v2455 = vsel %vm2330, %v398, %v2452
        %v2456 = vsel %vm2330, 0, %v2454
        %v2457 = vmul.f32 %v2455, %v2455
        %v2458 = vmul.f32 %v2457, -0.001358992
        %v2459 = vadd.f32 %v2458, 0.041655596
        %v2460 = vmul.f32 %v2457, %v2459
        %v2461 = vadd.f32 %v2460, -0.4999988
        %v2462 = vmul.f32 %v2457, %v2461
        %v2463 = vadd.f32 1.0, %v2462
        %v2464 = vmul.f32 %v2455, %v2455
        %v2465 = vmul.f32 %v2464, -0.00019511016
        %v2466 = vadd.f32 %v2465, 0.008332121
        %v2467 = vmul.f32 %v2464, %v2466
        %v2468 = vadd.f32 %v2467, -0.16666654
        %v2469 = vmul.f32 %v2464, %v2468
        %v2470 = vadd.f32 %v2469, 1.0
        %v2471 = vmul.f32 %v2470, %v2455
        %vm2472 = vweird.f32 %v398
        %v2473 = vand.u32 %v2456, 3
        %vm2474 = vcmp.lt.s32.totalorder %v2473, 2
        %vm2475 = vcmp.eq.s32.totalorder %v2473, 0
        %v2476 = vxor.u32 %v2471, 2147483648
        %v2477 = vsel %vm2475, %v2463, %v2476
        %vm2478 = vcmp.eq.s32.totalorder %v2473, 2
        %v2479 = vxor.u32 %v2463, 2147483648
        %v2480 = vsel %vm2478, %v2479, %v2471
        %v2481 = vsel %vm2474, %v2477, %v2480
        %v2482 = vsel %vm2472, nan, %v2481
        %v2483 = vand.u32 2147483647, %v399
        %vm2484 = vcmp.le.f32.partialorder %v2483, 0.7853982
        %vm2485 = vcmp.lt.s32.totalorder %v399, 0
        %v2486 = vand.u32 %v399, 2139095040
        %v2487 = vshrl.u32 %v2486, 23
        %v2488 = vsub.s32 %v2487, 127
        %v2489 = vand.u32 2147483647, %v399
        %v2490 = vand.u32 %v2489, 8388607
        %v2491 = vor.u32 %v2490, 8388608
        %v2492 = vsub.s32 0, %v2491
        %v2493 = vadd.s32 %v2488, 1
        %vm2494 = vcmp.gt.s32.totalorder %v2493, 0
        %v2495 = vsel %vm2494, %v2493, 0
        %v2496 = vshrl.u32 %v2495, 5
        %v2497 = vand.u32 %v2495, 31
        %v2498 = vsub.s32 32, %v2497
        %v2499 = vshrl.u32 683565275, %v2498
        %v2500 = vshll.u32 683565275, %v2497
        %v2501 = vshrl.u32 2475754826, %v2498
        %v2502 = vor.u32 %v2500, %v2501
        %v2503 = vshll.u32 2475754826, %v2497
        %v2504 = vshrl.u32 2131351028, %v2498
        %v2505 = vor.u32 %v2503, %v2504
        %v2506 = vshll.u32 2131351028, %v2497
        %v2507 = vshrl.u32 2102212464, %v2498
        %v2508 = vor.u32 %v2506, %v2507
        %v2509 = vshll.u32 2102212464, %v2497
        %v2510 = vshrl.u32 920167782, %v2498
        %v2511 = vor.u32 %v2509, %v2510
        %v2512 = vshll.u32 920167782, %v2497
        %v2513 = vshrl.u32 1326507024, %v2498
        %v2514 = vor.u32 %v2512, %v2513
        %vm2515 = vcmp.lt.s32.totalorder %v2496, 1
        %vm2516 = vcmp.lt.s32.totalorder %v2496, 2
        %vm2517 = vcmp.lt.s32.totalorder %v2496, 3
        %vm2518 = vcmp.lt.s32.totalorder %v2496, 4
        %v2519 = vsel %vm2515, %v2499, %v2502
        %v2520 = vsel %vm2518, %v2508, 2102212464
        %v2521 = vsel %vm2517, %v2505, %v2520
        %v2522 = vsel %vm2516, %v2519, %v2521
        %v2523 = vsel %vm2515, %v2502, %v2505
        %v2524 = vsel %vm2518, %v2511, 920167782
        %v2525 = vsel %vm2517, %v2508, %v2524
        %v2526 = vsel %vm2516, %v2523, %v2525
        %v2527 = vsel %vm2515, %v2505, %v2508
        %v2528 = vsel %vm2518, %v2514, 1326507024
        %v2529 = vsel %vm2517, %v2511, %v2528
        %v2530 = vsel %vm2516, %v2527, %v2529
        %v2531 = vshll.u32 %v2491, 8
        %v2532 = vand.u32 %v2531, 65535
        %v2533 = vshrl.u32 %v2531, 16
        %v2534 = vand.u32 %v2530, 65535
        %v2535 = vshrl.u32 %v2530, 16
        %v2536 = vmul.u32 %v2532, %v2534
        %v2537 = vmul.u32 %v2532, %v2535
        %v2538 = vmul.u32 %v2533, %v2534
        %v2539 = vmul.u32 %v2533, %v2535
        %v2540 = vshll.u32 %v2537, 16
        %v2541 = vshrl.u32 %v2537, 16
        %v2542 = vshll.u32 %v2538, 16
        %v2543 = vshrl.u32 %v2538, 16
        %vm2544 = vc.u32 %v2536, %v2540
        %v2545 = vsel %vm2544, 1, 0
        %v2546 = vadd.s32 %v2536, %v2540
        %v2547 = vadd.s32 %v2539, %v2545
        %vm2548 = vc.u32 %v2546, %v2542
        %v2549 = vsel %vm2548, 1, 0
        %v2550 = vadd.s32 %v2546, %v2542
        %v2551 = vadd.s32 %v2547, %v2549
        %v2552 = vadd.s32 %v2551, %v2541
        %v2553 = vadd.s32 %v2552, %v2543
        %v2554 = vand.u32 %v2531, 65535
        %v2555 = vshrl.u32 %v2531, 16
        %v2556 = vand.u32 %v2526, 65535
        %v2557 = vshrl.u32 %v2526, 16
        %v2558 = vmul.u32 %v2554, %v2556
        %v2559 = vmul.u32 %v2554, %v2557
        %v2560 = vmul.u32 %v2555, %v2556
        %v2561 = vmul.u32 %v2555, %v2557
        %v2562 = vshll.u32 %v2559, 16
        %v2563 = vshrl.u32 %v2559, 16
        %v2564 = vshll.u32 %v2560, 16
        %v2565 = vshrl.u32 %v2560, 16
        %vm2566 = vc.u32 %v2558, %v2562
        %v2567 = vsel %vm2566, 1, 0
        %v2568 = vadd.s32 %v2558, %v2562
        %v2569 = vadd.s32 %v2561, %v2567
        %vm2570 = vc.u32 %v2568, %v2564
        %v2571 = vsel %vm2570, 1, 0
        %v2572 = vadd.s32 %v2568, %v2564
        %v2573 = vadd.s32 %v2569, %v2571
        %v2574 = vadd.s32 %v2573, %v2563
        %v2575 = vadd.s32 %v2574, %v2565
        %v2576 = vmul.u32 %v2531, %v2522
        %v2577 = vadd.s32 %v2553, %v2572
        %vm2578 = vc.u32 %v2553, %v2572
        %v2579 = vadd.s32 %v2575, 1
        %v2580 = vsel %vm2578, %v2579, %v2575
        %v2581 = vadd.s32 %v2576, %v2580
        %v2582 = vadd.s32 %v2581, 536870912
        %v2583 = vshrl.u32 %v2582, 30
        %v2584 = vshll.u32 %v2583, 30
        %v2585 = vsub.s32 %v2581, %v2584
        %vm2586 = vcmp.lt.s32.totalorder %v2585, 0
        %v2587 = vsub.s32 0, %v2585
        %v2588 = vsel %vm2586, %v2587, %v2585
        %v2589 = vclz %v2588
        %v2590 = vsub.s32 %v2589, 2
        %vm2591 = vcmp.gt.s32.totalorder 0, %v2590
        %v2592 = vsel %vm2591, 0, %v2590
        %v2593 = vsub.s32 32, %v2592
        %v2594 = vshll.u32 %v2585, %v2592
        %v2595 = vshrl.u32 %v2577, %v2593
        %v2596 = vor.u32 %v2594, %v2595
        %v2597 = vsub.s32 4294967266, %v2592
        %v2598 = vadd.s32 %v2597, 127
        %v2599 = vshll.u32 %v2598, 23
        %v2600 = vor.u32 4788187, %v2599
        %v2601 = vand.u32 2147483647, %v2600
        %v2603 = vcvt.s32.f32 %v2596
        %v2604 = vmul.f32 %v2603, %v2601
        %v2605 = vxor.u32 %v2604, 2147483648
        %v2606 = vsel %vm2485, %v2605, %v2604
        %v2607 = vsub.s32 4, %v2583
        %v2608 = vsel %vm2485, %v2607, %v2583
        %v2609 = vsel %vm2484, %v399, %v2606
        %v2610 = vsel %vm2484, 0, %v2608
        %v2611 = vmul.f32 %v2609, %v2609
        %v2612 = vmul.f32 %v2611, -0.001358992
        %v2613 = vadd.f32 %v2612, 0.041655596
        %v2614 = vmul.f32 %v2611, %v2613
        %v2615 = vadd.f32 %v2614, -0.4999988
        %v2616 = vmul.f32 %v2611, %v2615
        %v2617 = vadd.f32 1.0, %v2616
        %v2618 = vmul.f32 %v2609, %v2609
        %v2619 = vmul.f32 %v2618, -0.00019511016
        %v2620 = vadd.f32 %v2619, 0.008332121
        %v2621 = vmul.f32 %v2618, %v2620
        %v2622 = vadd.f32 %v2621, -0.16666654
        %v2623 = vmul.f32 %v2618, %v2622
        %v2624 = vadd.f32 %v2623, 1.0
        %v2625 = vmul.f32 %v2624, %v2609
        %vm2626 = vweird.f32 %v399
        %v2627 = vand.u32 %v2610, 3
        %vm2628 = vcmp.lt.s32.totalorder %v2627, 2
        %vm2629 = vcmp.eq.s32.totalorder %v2627, 0
        %v2630 = vxor.u32 %v2625, 2147483648
        %v2631 = vsel %vm2629, %v2617, %v2630
        %vm2632 = vcmp.eq.s32.totalorder %v2627, 2
        %v2633 = vxor.u32 %v2617, 2147483648
        %v2634 = vsel %vm2632, %v2633, %v2625
        %v2635 = vsel %vm2628, %v2631, %v2634
        %v2636 = vsel %vm2626, nan, %v2635
        %v2637 = vand.u32 2147483647, %v400
        %vm2638 = vcmp.le.f32.partialorder %v2637, 0.7853982
        %vm2639 = vcmp.lt.s32.totalorder %v400, 0
        %v2640 = vand.u32 %v400, 2139095040
        %v2641 = vshrl.u32 %v2640, 23
        %v2642 = vsub.s32 %v2641, 127
        %v2643 = vand.u32 2147483647, %v400
        %v2644 = vand.u32 %v2643, 8388607
        %v2645 = vor.u32 %v2644, 8388608
        %v2646 = vsub.s32 0, %v2645
        %v2647 = vadd.s32 %v2642, 1
        %vm2648 = vcmp.gt.s32.totalorder %v2647, 0
        %v2649 = vsel %vm2648, %v2647, 0
        %v2650 = vshrl.u32 %v2649, 5
        %v2651 = vand.u32 %v2649, 31
        %v2652 = vsub.s32 32, %v2651
        %v2653 = vshrl.u32 683565275, %v2652
        %v2654 = vshll.u32 683565275, %v2651
        %v2655 = vshrl.u32 2475754826, %v2652
        %v2656 = vor.u32 %v2654, %v2655
        %v2657 = vshll.u32 2475754826, %v2651
        %v2658 = vshrl.u32 2131351028, %v2652
        %v2659 = vor.u32 %v2657, %v2658
        %v2660 = vshll.u32 2131351028, %v2651
        %v2661 = vshrl.u32 2102212464, %v2652
        %v2662 = vor.u32 %v2660, %v2661
        %v2663 = vshll.u32 2102212464, %v2651
        %v2664 = vshrl.u32 920167782, %v2652
        %v2665 = vor.u32 %v2663, %v2664
        %v2666 = vshll.u32 920167782, %v2651
        %v2667 = vshrl.u32 1326507024, %v2652
        %v2668 = vor.u32 %v2666, %v2667
        %vm2669 = vcmp.lt.s32.totalorder %v2650, 1
        %vm2670 = vcmp.lt.s32.totalorder %v2650, 2
        %vm2671 = vcmp.lt.s32.totalorder %v2650, 3
        %vm2672 = vcmp.lt.s32.totalorder %v2650, 4
        %v2673 = vsel %vm2669, %v2653, %v2656
        %v2674 = vsel %vm2672, %v2662, 2102212464
        %v2675 = vsel %vm2671, %v2659, %v2674
        %v2676 = vsel %vm2670, %v2673, %v2675
        %v2677 = vsel %vm2669, %v2656, %v2659
        %v2678 = vsel %vm2672, %v2665, 920167782
        %v2679 = vsel %vm2671, %v2662, %v2678
        %v2680 = vsel %vm2670, %v2677, %v2679
        %v2681 = vsel %vm2669, %v2659, %v2662
        %v2682 = vsel %vm2672, %v2668, 1326507024
        %v2683 = vsel %vm2671, %v2665, %v2682
        %v2684 = vsel %vm2670, %v2681, %v2683
        %v2685 = vshll.u32 %v2645, 8
        %v2686 = vand.u32 %v2685, 65535
        %v2687 = vshrl.u32 %v2685, 16
        %v2688 = vand.u32 %v2684, 65535
        %v2689 = vshrl.u32 %v2684, 16
        %v2690 = vmul.u32 %v2686, %v2688
        %v2691 = vmul.u32 %v2686, %v2689
        %v2692 = vmul.u32 %v2687, %v2688
        %v2693 = vmul.u32 %v2687, %v2689
        %v2694 = vshll.u32 %v2691, 16
        %v2695 = vshrl.u32 %v2691, 16
        %v2696 = vshll.u32 %v2692, 16
        %v2697 = vshrl.u32 %v2692, 16
        %vm2698 = vc.u32 %v2690, %v2694
        %v2699 = vsel %vm2698, 1, 0
        %v2700 = vadd.s32 %v2690, %v2694
        %v2701 = vadd.s32 %v2693, %v2699
        %vm2702 = vc.u32 %v2700, %v2696
        %v2703 = vsel %vm2702, 1, 0
        %v2704 = vadd.s32 %v2700, %v2696
        %v2705 = vadd.s32 %v2701, %v2703
        %v2706 = vadd.s32 %v2705, %v2695
        %v2707 = vadd.s32 %v2706, %v2697
        %v2708 = vand.u32 %v2685, 65535
        %v2709 = vshrl.u32 %v2685, 16
        %v2710 = vand.u32 %v2680, 65535
        %v2711 = vshrl.u32 %v2680, 16
        %v2712 = vmul.u32 %v2708, %v2710
        %v2713 = vmul.u32 %v2708, %v2711
        %v2714 = vmul.u32 %v2709, %v2710
        %v2715 = vmul.u32 %v2709, %v2711
        %v2716 = vshll.u32 %v2713, 16
        %v2717 = vshrl.u32 %v2713, 16
        %v2718 = vshll.u32 %v2714, 16
        %v2719 = vshrl.u32 %v2714, 16
        %vm2720 = vc.u32 %v2712, %v2716
        %v2721 = vsel %vm2720, 1, 0
        %v2722 = vadd.s32 %v2712, %v2716
        %v2723 = vadd.s32 %v2715, %v2721
        %vm2724 = vc.u32 %v2722, %v2718
        %v2725 = vsel %vm2724, 1, 0
        %v2726 = vadd.s32 %v2722, %v2718
        %v2727 = vadd.s32 %v2723, %v2725
        %v2728 = vadd.s32 %v2727, %v2717
        %v2729 = vadd.s32 %v2728, %v2719
        %v2730 = vmul.u32 %v2685, %v2676
        %v2731 = vadd.s32 %v2707, %v2726
        %vm2732 = vc.u32 %v2707, %v2726
        %v2733 = vadd.s32 %v2729, 1
        %v2734 = vsel %vm2732, %v2733, %v2729
        %v2735 = vadd.s32 %v2730, %v2734
        %v2736 = vadd.s32 %v2735, 536870912
        %v2737 = vshrl.u32 %v2736, 30
        %v2738 = vshll.u32 %v2737, 30
        %v2739 = vsub.s32 %v2735, %v2738
        %vm2740 = vcmp.lt.s32.totalorder %v2739, 0
        %v2741 = vsub.s32 0, %v2739
        %v2742 = vsel %vm2740, %v2741, %v2739
        %v2743 = vclz %v2742
        %v2744 = vsub.s32 %v2743, 2
        %vm2745 = vcmp.gt.s32.totalorder 0, %v2744
        %v2746 = vsel %vm2745, 0, %v2744
        %v2747 = vsub.s32 32, %v2746
        %v2748 = vshll.u32 %v2739, %v2746
        %v2749 = vshrl.u32 %v2731, %v2747
        %v2750 = vor.u32 %v2748, %v2749
        %v2751 = vsub.s32 4294967266, %v2746
        %v2752 = vadd.s32 %v2751, 127
        %v2753 = vshll.u32 %v2752, 23
        %v2754 = vor.u32 4788187, %v2753
        %v2755 = vand.u32 2147483647, %v2754
        %v2757 = vcvt.s32.f32 %v2750
        %v2758 = vmul.f32 %v2757, %v2755
        %v2759 = vxor.u32 %v2758, 2147483648
        %v2760 = vsel %vm2639, %v2759, %v2758
        %v2761 = vsub.s32 4, %v2737
        %v2762 = vsel %vm2639, %v2761, %v2737
        %v2763 = vsel %vm2638, %v400, %v2760
        %v2764 = vsel %vm2638, 0, %v2762
        %v2765 = vmul.f32 %v2763, %v2763
        %v2766 = vmul.f32 %v2765, -0.001358992
        %v2767 = vadd.f32 %v2766, 0.041655596
        %v2768 = vmul.f32 %v2765, %v2767
        %v2769 = vadd.f32 %v2768, -0.4999988
        %v2770 = vmul.f32 %v2765, %v2769
        %v2771 = vadd.f32 1.0, %v2770
        %v2772 = vmul.f32 %v2763, %v2763
        %v2773 = vmul.f32 %v2772, -0.00019511016
        %v2774 = vadd.f32 %v2773, 0.008332121
        %v2775 = vmul.f32 %v2772, %v2774
        %v2776 = vadd.f32 %v2775, -0.16666654
        %v2777 = vmul.f32 %v2772, %v2776
        %v2778 = vadd.f32 %v2777, 1.0
        %v2779 = vmul.f32 %v2778, %v2763
        %vm2780 = vweird.f32 %v400
        %v2781 = vand.u32 %v2764, 3
        %vm2782 = vcmp.lt.s32.totalorder %v2781, 2
        %vm2783 = vcmp.eq.s32.totalorder %v2781, 0
        %v2784 = vxor.u32 %v2779, 2147483648
        %v2785 = vsel %vm2783, %v2771, %v2784
        %vm2786 = vcmp.eq.s32.totalorder %v2781, 2
        %v2787 = vxor.u32 %v2771, 2147483648
        %v2788 = vsel %vm2786, %v2787, %v2779
        %v2789 = vsel %vm2782, %v2785, %v2788
        %v2790 = vsel %vm2780, nan, %v2789
        %v2791 = vand.u32 2147483647, %v401
        %vm2792 = vcmp.le.f32.partialorder %v2791, 0.7853982
        %vm2793 = vcmp.lt.s32.totalorder %v401, 0
        %v2794 = vand.u32 %v401, 2139095040
        %v2795 = vshrl.u32 %v2794, 23
        %v2796 = vsub.s32 %v2795, 127
        %v2797 = vand.u32 2147483647, %v401
        %v2798 = vand.u32 %v2797, 8388607
        %v2799 = vor.u32 %v2798, 8388608
        %v2800 = vsub.s32 0, %v2799
        %v2801 = vadd.s32 %v2796, 1
        %vm2802 = vcmp.gt.s32.totalorder %v2801, 0
        %v2803 = vsel %vm2802, %v2801, 0
        %v2804 = vshrl.u32 %v2803, 5
        %v2805 = vand.u32 %v2803, 31
        %v2806 = vsub.s32 32, %v2805
        %v2807 = vshrl.u32 683565275, %v2806
        %v2808 = vshll.u32 683565275, %v2805
        %v2809 = vshrl.u32 2475754826, %v2806
        %v2810 = vor.u32 %v2808, %v2809
        %v2811 = vshll.u32 2475754826, %v2805
        %v2812 = vshrl.u32 2131351028, %v2806
        %v2813 = vor.u32 %v2811, %v2812
        %v2814 = vshll.u32 2131351028, %v2805
        %v2815 = vshrl.u32 2102212464, %v2806
        %v2816 = vor.u32 %v2814, %v2815
        %v2817 = vshll.u32 2102212464, %v2805
        %v2818 = vshrl.u32 920167782, %v2806
        %v2819 = vor.u32 %v2817, %v2818
        %v2820 = vshll.u32 920167782, %v2805
        %v2821 = vshrl.u32 1326507024, %v2806
        %v2822 = vor.u32 %v2820, %v2821
        %vm2823 = vcmp.lt.s32.totalorder %v2804, 1
        %vm2824 = vcmp.lt.s32.totalorder %v2804, 2
        %vm2825 = vcmp.lt.s32.totalorder %v2804, 3
        %vm2826 = vcmp.lt.s32.totalorder %v2804, 4
        %v2827 = vsel %vm2823, %v2807, %v2810
        %v2828 = vsel %vm2826, %v2816, 2102212464
        %v2829 = vsel %vm2825, %v2813, %v2828
        %v2830 = vsel %vm2824, %v2827, %v2829
        %v2831 = vsel %vm2823, %v2810, %v2813
        %v2832 = vsel %vm2826, %v2819, 920167782
        %v2833 = vsel %vm2825, %v2816, %v2832
        %v2834 = vsel %vm2824, %v2831, %v2833
        %v2835 = vsel %vm2823, %v2813, %v2816
        %v2836 = vsel %vm2826, %v2822, 1326507024
        %v2837 = vsel %vm2825, %v2819, %v2836
        %v2838 = vsel %vm2824, %v2835, %v2837
        %v2839 = vshll.u32 %v2799, 8
        %v2840 = vand.u32 %v2839, 65535
        %v2841 = vshrl.u32 %v2839, 16
        %v2842 = vand.u32 %v2838, 65535
        %v2843 = vshrl.u32 %v2838, 16
        %v2844 = vmul.u32 %v2840, %v2842
        %v2845 = vmul.u32 %v2840, %v2843
        %v2846 = vmul.u32 %v2841, %v2842
        %v2847 = vmul.u32 %v2841, %v2843
        %v2848 = vshll.u32 %v2845, 16
        %v2849 = vshrl.u32 %v2845, 16
        %v2850 = vshll.u32 %v2846, 16
        %v2851 = vshrl.u32 %v2846, 16
        %vm2852 = vc.u32 %v2844, %v2848
        %v2853 = vsel %vm2852, 1, 0
        %v2854 = vadd.s32 %v2844, %v2848
        %v2855 = vadd.s32 %v2847, %v2853
        %vm2856 = vc.u32 %v2854, %v2850
        %v2857 = vsel %vm2856, 1, 0
        %v2858 = vadd.s32 %v2854, %v2850
        %v2859 = vadd.s32 %v2855, %v2857
        %v2860 = vadd.s32 %v2859, %v2849
        %v2861 = vadd.s32 %v2860, %v2851
        %v2862 = vand.u32 %v2839, 65535
        %v2863 = vshrl.u32 %v2839, 16
        %v2864 = vand.u32 %v2834, 65535
        %v2865 = vshrl.u32 %v2834, 16
        %v2866 = vmul.u32 %v2862, %v2864
        %v2867 = vmul.u32 %v2862, %v2865
        %v2868 = vmul.u32 %v2863, %v2864
        %v2869 = vmul.u32 %v2863, %v2865
        %v2870 = vshll.u32 %v2867, 16
        %v2871 = vshrl.u32 %v2867, 16
        %v2872 = vshll.u32 %v2868, 16
        %v2873 = vshrl.u32 %v2868, 16
        %vm2874 = vc.u32 %v2866, %v2870
        %v2875 = vsel %vm2874, 1, 0
        %v2876 = vadd.s32 %v2866, %v2870
        %v2877 = vadd.s32 %v2869, %v2875
        %vm2878 = vc.u32 %v2876, %v2872
        %v2879 = vsel %vm2878, 1, 0
        %v2880 = vadd.s32 %v2876, %v2872
        %v2881 = vadd.s32 %v2877, %v2879
        %v2882 = vadd.s32 %v2881, %v2871
        %v2883 = vadd.s32 %v2882, %v2873
        %v2884 = vmul.u32 %v2839, %v2830
        %v2885 = vadd.s32 %v2861, %v2880
        %vm2886 = vc.u32 %v2861, %v2880
        %v2887 = vadd.s32 %v2883, 1
        %v2888 = vsel %vm2886, %v2887, %v2883
        %v2889 = vadd.s32 %v2884, %v2888
        %v2890 = vadd.s32 %v2889, 536870912
        %v2891 = vshrl.u32 %v2890, 30
        %v2892 = vshll.u32 %v2891, 30
        %v2893 = vsub.s32 %v2889, %v2892
        %vm2894 = vcmp.lt.s32.totalorder %v2893, 0
        %v2895 = vsub.s32 0, %v2893
        %v2896 = vsel %vm2894, %v2895, %v2893
        %v2897 = vclz %v2896
        %v2898 = vsub.s32 %v2897, 2
        %vm2899 = vcmp.gt.s32.totalorder 0, %v2898
        %v2900 = vsel %vm2899, 0, %v2898
        %v2901 = vsub.s32 32, %v2900
        %v2902 = vshll.u32 %v2893, %v2900
        %v2903 = vshrl.u32 %v2885, %v2901
        %v2904 = vor.u32 %v2902, %v2903
        %v2905 = vsub.s32 4294967266, %v2900
        %v2906 = vadd.s32 %v2905, 127
        %v2907 = vshll.u32 %v2906, 23
        %v2908 = vor.u32 4788187, %v2907
        %v2909 = vand.u32 2147483647, %v2908
        %v2911 = vcvt.s32.f32 %v2904
        %v2912 = vmul.f32 %v2911, %v2909
        %v2913 = vxor.u32 %v2912, 2147483648
        %v2914 = vsel %vm2793, %v2913, %v2912
        %v2915 = vsub.s32 4, %v2891
        %v2916 = vsel %vm2793, %v2915, %v2891
        %v2917 = vsel %vm2792, %v401, %v2914
        %v2918 = vsel %vm2792, 0, %v2916
        %v2919 = vmul.f32 %v2917, %v2917
        %v2920 = vmul.f32 %v2919, -0.001358992
        %v2921 = vadd.f32 %v2920, 0.041655596
        %v2922 = vmul.f32 %v2919, %v2921
        %v2923 = vadd.f32 %v2922, -0.4999988
        %v2924 = vmul.f32 %v2919, %v2923
        %v2925 = vadd.f32 1.0, %v2924
        %v2926 = vmul.f32 %v2917, %v2917
        %v2927 = vmul.f32 %v2926, -0.00019511016
        %v2928 = vadd.f32 %v2927, 0.008332121
        %v2929 = vmul.f32 %v2926, %v2928
        %v2930 = vadd.f32 %v2929, -0.16666654
        %v2931 = vmul.f32 %v2926, %v2930
        %v2932 = vadd.f32 %v2931, 1.0
        %v2933 = vmul.f32 %v2932, %v2917
        %vm2934 = vweird.f32 %v401
        %v2935 = vand.u32 %v2918, 3
        %vm2936 = vcmp.lt.s32.totalorder %v2935, 2
        %vm2937 = vcmp.eq.s32.totalorder %v2935, 0
        %v2938 = vxor.u32 %v2933, 2147483648
        %v2939 = vsel %vm2937, %v2925, %v2938
        %vm2940 = vcmp.eq.s32.totalorder %v2935, 2
        %v2941 = vxor.u32 %v2925, 2147483648
        %v2942 = vsel %vm2940, %v2941, %v2933
        %v2943 = vsel %vm2936, %v2939, %v2942
        %v2944 = vsel %vm2934, nan, %v2943
        %v2953 = vrot.slane %v1866, 7
        %v2954 = vrot.slane %v2020, 7
        %v2955 = vrot.slane %v2174, 7
        %v2956 = vrot.slane %v2328, 7
        %v2957 = vrot.slane %v2482, 7
        %v2958 = vrot.slane %v2636, 7
        %v2959 = vrot.slane %v2790, 7
        %v2960 = vrot.slane %v2944, 7
        %2969 = vst [vmem:[#allocation2 + $0x100] sm:$0x7e] %v2953
        %2970 = vst [vmem:[#allocation2 + $0x108] sm:$0x7e] %v2954
        %2971 = vst [vmem:[#allocation2 + $0x110] sm:$0x7e] %v2955
        %2972 = vst [vmem:[#allocation2 + $0x118] sm:$0x7e] %v2956
        %2973 = vst [vmem:[#allocation2 + $0x120] sm:$0x7e] %v2957
        %2974 = vst [vmem:[#allocation2 + $0x128] sm:$0x7e] %v2958
        %2975 = vst [vmem:[#allocation2 + $0x130] sm:$0x7e] %v2959
        %2976 = vst [vmem:[#allocation2 + $0x138] sm:$0x7e] %v2960
        %v2977 = vld [vmem:[#allocation2 + $0xc0] sm:$0xff]
        %v2978 = vld [vmem:[#allocation2 + $0xc8] sm:$0xff]
        %v2979 = vld [vmem:[#allocation2 + $0xd0] sm:$0xff]
        %v2980 = vld [vmem:[#allocation2 + $0xd8] sm:$0xff]
        %v2981 = vld [vmem:[#allocation2 + $0xe0] sm:$0xff]
        %v2982 = vld [vmem:[#allocation2 + $0xe8] sm:$0xff]
        %v2983 = vld [vmem:[#allocation2 + $0xf0] sm:$0xff]
        %v2984 = vld [vmem:[#allocation2 + $0xf8] sm:$0xff]
        %v2985 = vld [vmem:[#allocation2 + $0x100] sm:$0xff]
        %v2986 = vld [vmem:[#allocation2 + $0x108] sm:$0xff]
        %v2987 = vld [vmem:[#allocation2 + $0x110] sm:$0xff]
        %v2988 = vld [vmem:[#allocation2 + $0x118] sm:$0xff]
        %v2989 = vld [vmem:[#allocation2 + $0x120] sm:$0xff]
        %v2990 = vld [vmem:[#allocation2 + $0x128] sm:$0xff]
        %v2991 = vld [vmem:[#allocation2 + $0x130] sm:$0xff]
        %v2992 = vld [vmem:[#allocation2 + $0x138] sm:$0xff]
        %v2993 = vpack.c.bf16 %v2985, %v2977
        %v2994 = vpack.c.bf16 %v2986, %v2978
        %v2995 = vpack.c.bf16 %v2987, %v2979
        %v2996 = vpack.c.bf16 %v2988, %v2980
        %v2997 = vpack.c.bf16 %v2989, %v2981
        %v2998 = vpack.c.bf16 %v2990, %v2982
        %v2999 = vpack.c.bf16 %v2991, %v2983
        %v3000 = vpack.c.bf16 %v2992, %v2984
        %v3005 = vunpack.c.l.b16 %v300
        %v3006 = vunpack.c.l.b16 %v301
        %v3007 = vunpack.c.l.b16 %v302
        %v3008 = vunpack.c.l.b16 %v303
        %v3009 = vpack.c.b16 %v3006, %v3005
        %v3010 = vpack.c.b16 %v3008, %v3007
        %vm3011 = vcmask 130048
        %v3013 = vsel %vm3011, %v3009, 0
        %v3016 = vsel %vm3011, %v3010, 0
        %3018 = vmatpush.bf16.msra.mxu0 0
        %3019 = vmatpush.bf16.msra.mxu0 0
        %3020 = vmatpush.bf16.msra.mxu0 0
        %3021 = vmatpush.bf16.msra.mxu0 0
        %3022 = vmatpush.bf16.msra.mxu0 0
        %3023 = vmatpush.bf16.msra.mxu0 0
        %3024 = vmatpush.bf16.msra.mxu0 0
        %3025 = vmatpush.bf16.msra.mxu0 %v2993
        %3026 = vmatmul.bf16.gmra.mxu0 %v3013
        %v3027 = vpop.f32.mrf.mxu0
        %v3028 = vadd.f32 0.0, %v3027
        %v3029 = vpop.f32.mrf.mxu0
        %v3030 = vadd.f32 0.0, %v3029
        %3031 = vmatmul.bf16.gmra.mxu0 %v3016
        %v3032 = vpop.f32.mrf.mxu0
        %v3033 = vadd.f32 0.0, %v3032
        %v3034 = vpop.f32.mrf.mxu0
        %v3035 = vadd.f32 0.0, %v3034
        %3036 = vdwg.mxu0
        %3037 = vmatpush.bf16.msra.mxu0 0
        %3038 = vmatpush.bf16.msra.mxu0 0
        %3039 = vmatpush.bf16.msra.mxu0 0
        %3040 = vmatpush.bf16.msra.mxu0 0
        %3041 = vmatpush.bf16.msra.mxu0 0
        %3042 = vmatpush.bf16.msra.mxu0 0
        %3043 = vmatpush.bf16.msra.mxu0 0
        %3044 = vmatpush.bf16.msra.mxu0 %v2994
        %3045 = vmatmul.bf16.gmra.mxu0 %v3013
        %v3046 = vpop.f32.mrf.mxu0
        %v3047 = vadd.f32 0.0, %v3046
        %v3048 = vpop.f32.mrf.mxu0
        %v3049 = vadd.f32 0.0, %v3048
        %3050 = vmatmul.bf16.gmra.mxu0 %v3016
        %v3051 = vpop.f32.mrf.mxu0
        %v3052 = vadd.f32 0.0, %v3051
        %v3053 = vpop.f32.mrf.mxu0
        %v3054 = vadd.f32 0.0, %v3053
        %3055 = vdwg.mxu0
        %3056 = vmatpush.bf16.msra.mxu0 0
        %3057 = vmatpush.bf16.msra.mxu0 0
        %3058 = vmatpush.bf16.msra.mxu0 0
        %3059 = vmatpush.bf16.msra.mxu0 0
        %3060 = vmatpush.bf16.msra.mxu0 0
        %3061 = vmatpush.bf16.msra.mxu0 0
        %3062 = vmatpush.bf16.msra.mxu0 0
        %3063 = vmatpush.bf16.msra.mxu0 %v2995
        %3064 = vmatmul.bf16.gmra.mxu0 %v3013
        %v3065 = vpop.f32.mrf.mxu0
        %v3066 = vadd.f32 0.0, %v3065
        %v3067 = vpop.f32.mrf.mxu0
        %v3068 = vadd.f32 0.0, %v3067
        %3069 = vmatmul.bf16.gmra.mxu0 %v3016
        %v3070 = vpop.f32.mrf.mxu0
        %v3071 = vadd.f32 0.0, %v3070
        %v3072 = vpop.f32.mrf.mxu0
        %v3073 = vadd.f32 0.0, %v3072
        %3074 = vdwg.mxu0
        %3075 = vmatpush.bf16.msra.mxu0 0
        %3076 = vmatpush.bf16.msra.mxu0 0
        %3077 = vmatpush.bf16.msra.mxu0 0
        %3078 = vmatpush.bf16.msra.mxu0 0
        %3079 = vmatpush.bf16.msra.mxu0 0
        %3080 = vmatpush.bf16.msra.mxu0 0
        %3081 = vmatpush.bf16.msra.mxu0 0
        %3082 = vmatpush.bf16.msra.mxu0 %v2996
        %3083 = vmatmul.bf16.gmra.mxu0 %v3013
        %v3084 = vpop.f32.mrf.mxu0
        %v3085 = vadd.f32 0.0, %v3084
        %v3086 = vpop.f32.mrf.mxu0
        %v3087 = vadd.f32 0.0, %v3086
        %3088 = vmatmul.bf16.gmra.mxu0 %v3016
        %v3089 = vpop.f32.mrf.mxu0
        %v3090 = vadd.f32 0.0, %v3089
        %v3091 = vpop.f32.mrf.mxu0
        %v3092 = vadd.f32 0.0, %v3091
        %3093 = vdwg.mxu0
        %3094 = vmatpush.bf16.msra.mxu0 0
        %3095 = vmatpush.bf16.msra.mxu0 0
        %3096 = vmatpush.bf16.msra.mxu0 0
        %3097 = vmatpush.bf16.msra.mxu0 0
        %3098 = vmatpush.bf16.msra.mxu0 0
        %3099 = vmatpush.bf16.msra.mxu0 0
        %3100 = vmatpush.bf16.msra.mxu0 0
        %3101 = vmatpush.bf16.msra.mxu0 %v2997
        %3102 = vmatmul.bf16.gmra.mxu0 %v3013
        %v3103 = vpop.f32.mrf.mxu0
        %v3104 = vadd.f32 0.0, %v3103
        %v3105 = vpop.f32.mrf.mxu0
        %v3106 = vadd.f32 0.0, %v3105
        %3107 = vmatmul.bf16.gmra.mxu0 %v3016
        %v3108 = vpop.f32.mrf.mxu0
        %v3109 = vadd.f32 0.0, %v3108
        %v3110 = vpop.f32.mrf.mxu0
        %v3111 = vadd.f32 0.0, %v3110
        %3112 = vdwg.mxu0
        %3113 = vmatpush.bf16.msra.mxu0 0
        %3114 = vmatpush.bf16.msra.mxu0 0
        %3115 = vmatpush.bf16.msra.mxu0 0
        %3116 = vmatpush.bf16.msra.mxu0 0
        %3117 = vmatpush.bf16.msra.mxu0 0
        %3118 = vmatpush.bf16.msra.mxu0 0
        %3119 = vmatpush.bf16.msra.mxu0 0
        %3120 = vmatpush.bf16.msra.mxu0 %v2998
        %3121 = vmatmul.bf16.gmra.mxu0 %v3013
        %v3122 = vpop.f32.mrf.mxu0
        %v3123 = vadd.f32 0.0, %v3122
        %v3124 = vpop.f32.mrf.mxu0
        %v3125 = vadd.f32 0.0, %v3124
        %3126 = vmatmul.bf16.gmra.mxu0 %v3016
        %v3127 = vpop.f32.mrf.mxu0
        %v3128 = vadd.f32 0.0, %v3127
        %v3129 = vpop.f32.mrf.mxu0
        %v3130 = vadd.f32 0.0, %v3129
        %3131 = vdwg.mxu0
        %3132 = vmatpush.bf16.msra.mxu0 0
        %3133 = vmatpush.bf16.msra.mxu0 0
        %3134 = vmatpush.bf16.msra.mxu0 0
        %3135 = vmatpush.bf16.msra.mxu0 0
        %3136 = vmatpush.bf16.msra.mxu0 0
        %3137 = vmatpush.bf16.msra.mxu0 0
        %3138 = vmatpush.bf16.msra.mxu0 0
        %3139 = vmatpush.bf16.msra.mxu0 %v2999
        %3140 = vmatmul.bf16.gmra.mxu0 %v3013
        %v3141 = vpop.f32.mrf.mxu0
        %v3142 = vadd.f32 0.0, %v3141
        %v3143 = vpop.f32.mrf.mxu0
        %v3144 = vadd.f32 0.0, %v3143
        %3145 = vmatmul.bf16.gmra.mxu0 %v3016
        %v3146 = vpop.f32.mrf.mxu0
        %v3147 = vadd.f32 0.0, %v3146
        %v3148 = vpop.f32.mrf.mxu0
        %v3149 = vadd.f32 0.0, %v3148
        %3150 = vdwg.mxu0
        %3151 = vmatpush.bf16.msra.mxu0 0
        %3152 = vmatpush.bf16.msra.mxu0 0
        %3153 = vmatpush.bf16.msra.mxu0 0
        %3154 = vmatpush.bf16.msra.mxu0 0
        %3155 = vmatpush.bf16.msra.mxu0 0
        %3156 = vmatpush.bf16.msra.mxu0 0
        %3157 = vmatpush.bf16.msra.mxu0 0
        %3158 = vmatpush.bf16.msra.mxu0 %v3000
        %3159 = vmatmul.bf16.gmra.mxu0 %v3013
        %v3160 = vpop.f32.mrf.mxu0
        %v3161 = vadd.f32 0.0, %v3160
        %v3162 = vpop.f32.mrf.mxu0
        %v3163 = vadd.f32 0.0, %v3162
        %3164 = vmatmul.bf16.gmra.mxu0 %v3016
        %v3165 = vpop.f32.mrf.mxu0
        %v3166 = vadd.f32 0.0, %v3165
        %v3167 = vpop.f32.mrf.mxu0
        %v3168 = vadd.f32 0.0, %v3167
        %3169 = vdwg.mxu0
        %v3170 = vmul.f32 %v3028, 100.0
        %v3171 = vmul.f32 %v3047, 100.0
        %v3172 = vmul.f32 %v3066, 100.0
        %v3173 = vmul.f32 %v3085, 100.0
        %v3174 = vmul.f32 %v3104, 100.0
        %v3175 = vmul.f32 %v3123, 100.0
        %v3176 = vmul.f32 %v3142, 100.0
        %v3177 = vmul.f32 %v3161, 100.0
        %v3178 = vmul.f32 %v3030, 100.0
        %v3179 = vmul.f32 %v3049, 100.0
        %v3180 = vmul.f32 %v3068, 100.0
        %v3181 = vmul.f32 %v3087, 100.0
        %v3182 = vmul.f32 %v3106, 100.0
        %v3183 = vmul.f32 %v3125, 100.0
        %v3184 = vmul.f32 %v3144, 100.0
        %v3185 = vmul.f32 %v3163, 100.0
        %v3186 = vmul.f32 %v3033, 100.0
        %v3187 = vmul.f32 %v3052, 100.0
        %v3188 = vmul.f32 %v3071, 100.0
        %v3189 = vmul.f32 %v3090, 100.0
        %v3190 = vmul.f32 %v3109, 100.0
        %v3191 = vmul.f32 %v3128, 100.0
        %v3192 = vmul.f32 %v3147, 100.0
        %v3193 = vmul.f32 %v3166, 100.0
        %v3194 = vmul.f32 %v3035, 100.0
        %v3195 = vmul.f32 %v3054, 100.0
        %v3196 = vmul.f32 %v3073, 100.0
        %v3197 = vmul.f32 %v3092, 100.0
        %v3198 = vmul.f32 %v3111, 100.0
        %v3199 = vmul.f32 %v3130, 100.0
        %v3200 = vmul.f32 %v3149, 100.0
        %v3201 = vmul.f32 %v3168, 100.0
        %vm3202 = vcmp.gt.f32.partialorder %v3170, 20.0
        %vm3203 = vcmp.gt.f32.partialorder %v3171, 20.0
        %vm3204 = vcmp.gt.f32.partialorder %v3172, 20.0
        %vm3205 = vcmp.gt.f32.partialorder %v3173, 20.0
        %vm3206 = vcmp.gt.f32.partialorder %v3174, 20.0
        %vm3207 = vcmp.gt.f32.partialorder %v3175, 20.0
        %vm3208 = vcmp.gt.f32.partialorder %v3176, 20.0
        %vm3209 = vcmp.gt.f32.partialorder %v3177, 20.0
        %vm3210 = vcmp.gt.f32.partialorder %v3178, 20.0
        %vm3211 = vcmp.gt.f32.partialorder %v3179, 20.0
        %vm3212 = vcmp.gt.f32.partialorder %v3180, 20.0
        %vm3213 = vcmp.gt.f32.partialorder %v3181, 20.0
        %vm3214 = vcmp.gt.f32.partialorder %v3182, 20.0
        %vm3215 = vcmp.gt.f32.partialorder %v3183, 20.0
        %vm3216 = vcmp.gt.f32.partialorder %v3184, 20.0
        %vm3217 = vcmp.gt.f32.partialorder %v3185, 20.0
        %vm3218 = vcmp.gt.f32.partialorder %v3186, 20.0
        %vm3219 = vcmp.gt.f32.partialorder %v3187, 20.0
        %vm3220 = vcmp.gt.f32.partialorder %v3188, 20.0
        %vm3221 = vcmp.gt.f32.partialorder %v3189, 20.0
        %vm3222 = vcmp.gt.f32.partialorder %v3190, 20.0
        %vm3223 = vcmp.gt.f32.partialorder %v3191, 20.0
        %vm3224 = vcmp.gt.f32.partialorder %v3192, 20.0
        %vm3225 = vcmp.gt.f32.partialorder %v3193, 20.0
        %vm3226 = vcmp.gt.f32.partialorder %v3194, 20.0
        %vm3227 = vcmp.gt.f32.partialorder %v3195, 20.0
        %vm3228 = vcmp.gt.f32.partialorder %v3196, 20.0
        %vm3229 = vcmp.gt.f32.partialorder %v3197, 20.0
        %vm3230 = vcmp.gt.f32.partialorder %v3198, 20.0
        %vm3231 = vcmp.gt.f32.partialorder %v3199, 20.0
        %vm3232 = vcmp.gt.f32.partialorder %v3200, 20.0
        %vm3233 = vcmp.gt.f32.partialorder %v3201, 20.0
        %v3234 = vmin.f32 %v3170, 20.0
        %v3235 = vmin.f32 %v3171, 20.0
        %v3236 = vmin.f32 %v3172, 20.0
        %v3237 = vmin.f32 %v3173, 20.0
        %v3238 = vmin.f32 %v3174, 20.0
        %v3239 = vmin.f32 %v3175, 20.0
        %v3240 = vmin.f32 %v3176, 20.0
        %v3241 = vmin.f32 %v3177, 20.0
        %v3242 = vmin.f32 %v3178, 20.0
        %v3243 = vmin.f32 %v3179, 20.0
        %v3244 = vmin.f32 %v3180, 20.0
        %v3245 = vmin.f32 %v3181, 20.0
        %v3246 = vmin.f32 %v3182, 20.0
        %v3247 = vmin.f32 %v3183, 20.0
        %v3248 = vmin.f32 %v3184, 20.0
        %v3249 = vmin.f32 %v3185, 20.0
        %v3250 = vmin.f32 %v3186, 20.0
        %v3251 = vmin.f32 %v3187, 20.0
        %v3252 = vmin.f32 %v3188, 20.0
        %v3253 = vmin.f32 %v3189, 20.0
        %v3254 = vmin.f32 %v3190, 20.0
        %v3255 = vmin.f32 %v3191, 20.0
        %v3256 = vmin.f32 %v3192, 20.0
        %v3257 = vmin.f32 %v3193, 20.0
        %v3258 = vmin.f32 %v3194, 20.0
        %v3259 = vmin.f32 %v3195, 20.0
        %v3260 = vmin.f32 %v3196, 20.0
        %v3261 = vmin.f32 %v3197, 20.0
        %v3262 = vmin.f32 %v3198, 20.0
        %v3263 = vmin.f32 %v3199, 20.0
        %v3264 = vmin.f32 %v3200, 20.0
        %v3265 = vmin.f32 %v3201, 20.0
        %v3266 = vmul.f32 %v3234, 1.442695
        %v3267 = vpow.pop %v3266
        %v3268 = vmul.f32 %v3235, 1.442695
        %v3269 = vpow.pop %v3268
        %v3270 = vmul.f32 %v3236, 1.442695
        %v3271 = vpow.pop %v3270
        %v3272 = vmul.f32 %v3237, 1.442695
        %v3273 = vpow.pop %v3272
        %v3274 = vmul.f32 %v3238, 1.442695
        %v3275 = vpow.pop %v3274
        %v3276 = vmul.f32 %v3239, 1.442695
        %v3277 = vpow.pop %v3276
        %v3278 = vmul.f32 %v3240, 1.442695
        %v3279 = vpow.pop %v3278
        %v3280 = vmul.f32 %v3241, 1.442695
        %v3281 = vpow.pop %v3280
        %v3282 = vmul.f32 %v3242, 1.442695
        %v3283 = vpow.pop %v3282
        %v3284 = vmul.f32 %v3243, 1.442695
        %v3285 = vpow.pop %v3284
        %v3286 = vmul.f32 %v3244, 1.442695
        %v3287 = vpow.pop %v3286
        %v3288 = vmul.f32 %v3245, 1.442695
        %v3289 = vpow.pop %v3288
        %v3290 = vmul.f32 %v3246, 1.442695
        %v3291 = vpow.pop %v3290
        %v3292 = vmul.f32 %v3247, 1.442695
        %v3293 = vpow.pop %v3292
        %v3294 = vmul.f32 %v3248, 1.442695
        %v3295 = vpow.pop %v3294
        %v3296 = vmul.f32 %v3249, 1.442695
        %v3297 = vpow.pop %v3296
        %v3298 = vmul.f32 %v3250, 1.442695
        %v3299 = vpow.pop %v3298
        %v3300 = vmul.f32 %v3251, 1.442695
        %v3301 = vpow.pop %v3300
        %v3302 = vmul.f32 %v3252, 1.442695
        %v3303 = vpow.pop %v3302
        %v3304 = vmul.f32 %v3253, 1.442695
        %v3305 = vpow.pop %v3304
        %v3306 = vmul.f32 %v3254, 1.442695
        %v3307 = vpow.pop %v3306
        %v3308 = vmul.f32 %v3255, 1.442695
        %v3309 = vpow.pop %v3308
        %v3310 = vmul.f32 %v3256, 1.442695
        %v3311 = vpow.pop %v3310
        %v3312 = vmul.f32 %v3257, 1.442695
        %v3313 = vpow.pop %v3312
        %v3314 = vmul.f32 %v3258, 1.442695
        %v3315 = vpow.pop %v3314
        %v3316 = vmul.f32 %v3259, 1.442695
        %v3317 = vpow.pop %v3316
        %v3318 = vmul.f32 %v3260, 1.442695
        %v3319 = vpow.pop %v3318
        %v3320 = vmul.f32 %v3261, 1.442695
        %v3321 = vpow.pop %v3320
        %v3322 = vmul.f32 %v3262, 1.442695
        %v3323 = vpow.pop %v3322
        %v3324 = vmul.f32 %v3263, 1.442695
        %v3325 = vpow.pop %v3324
        %v3326 = vmul.f32 %v3264, 1.442695
        %v3327 = vpow.pop %v3326
        %v3328 = vmul.f32 %v3265, 1.442695
        %v3329 = vpow.pop %v3328
        %v3330 = vadd.f32 %v3267, 1.0
        %v3331 = vlog2.pop %v3330
        %v3332 = vmul.f32 %v3331, 0.6931472
        %v3333 = vmul.f32 -0.5, %v3267
        %v3334 = vadd.f32 %v3333, 1.0
        %v3335 = vmul.f32 %v3334, %v3267
        %v3336 = vand.u32 2147483647, %v3267
        %vm3337 = vcmp.lt.f32.partialorder %v3336, 0.0004427343
        %v3338 = vsel %vm3337, %v3335, %v3332
        %v3339 = vadd.f32 %v3269, 1.0
        %v3340 = vlog2.pop %v3339
        %v3341 = vmul.f32 %v3340, 0.6931472
        %v3342 = vmul.f32 -0.5, %v3269
        %v3343 = vadd.f32 %v3342, 1.0
        %v3344 = vmul.f32 %v3343, %v3269
        %v3345 = vand.u32 2147483647, %v3269
        %vm3346 = vcmp.lt.f32.partialorder %v3345, 0.0004427343
        %v3347 = vsel %vm3346, %v3344, %v3341
        %v3348 = vadd.f32 %v3271, 1.0
        %v3349 = vlog2.pop %v3348
        %v3350 = vmul.f32 %v3349, 0.6931472
        %v3351 = vmul.f32 -0.5, %v3271
        %v3352 = vadd.f32 %v3351, 1.0
        %v3353 = vmul.f32 %v3352, %v3271
        %v3354 = vand.u32 2147483647, %v3271
        %vm3355 = vcmp.lt.f32.partialorder %v3354, 0.0004427343
        %v3356 = vsel %vm3355, %v3353, %v3350
        %v3357 = vadd.f32 %v3273, 1.0
        %v3358 = vlog2.pop %v3357
        %v3359 = vmul.f32 %v3358, 0.6931472
        %v3360 = vmul.f32 -0.5, %v3273
        %v3361 = vadd.f32 %v3360, 1.0
        %v3362 = vmul.f32 %v3361, %v3273
        %v3363 = vand.u32 2147483647, %v3273
        %vm3364 = vcmp.lt.f32.partialorder %v3363, 0.0004427343
        %v3365 = vsel %vm3364, %v3362, %v3359
        %v3366 = vadd.f32 %v3275, 1.0
        %v3367 = vlog2.pop %v3366
        %v3368 = vmul.f32 %v3367, 0.6931472
        %v3369 = vmul.f32 -0.5, %v3275
        %v3370 = vadd.f32 %v3369, 1.0
        %v3371 = vmul.f32 %v3370, %v3275
        %v3372 = vand.u32 2147483647, %v3275
        %vm3373 = vcmp.lt.f32.partialorder %v3372, 0.0004427343
        %v3374 = vsel %vm3373, %v3371, %v3368
        %v3375 = vadd.f32 %v3277, 1.0
        %v3376 = vlog2.pop %v3375
        %v3377 = vmul.f32 %v3376, 0.6931472
        %v3378 = vmul.f32 -0.5, %v3277
        %v3379 = vadd.f32 %v3378, 1.0
        %v3380 = vmul.f32 %v3379, %v3277
        %v3381 = vand.u32 2147483647, %v3277
        %vm3382 = vcmp.lt.f32.partialorder %v3381, 0.0004427343
        %v3383 = vsel %vm3382, %v3380, %v3377
        %v3384 = vadd.f32 %v3279, 1.0
        %v3385 = vlog2.pop %v3384
        %v3386 = vmul.f32 %v3385, 0.6931472
        %v3387 = vmul.f32 -0.5, %v3279
        %v3388 = vadd.f32 %v3387, 1.0
        %v3389 = vmul.f32 %v3388, %v3279
        %v3390 = vand.u32 2147483647, %v3279
        %vm3391 = vcmp.lt.f32.partialorder %v3390, 0.0004427343
        %v3392 = vsel %vm3391, %v3389, %v3386
        %v3393 = vadd.f32 %v3281, 1.0
        %v3394 = vlog2.pop %v3393
        %v3395 = vmul.f32 %v3394, 0.6931472
        %v3396 = vmul.f32 -0.5, %v3281
        %v3397 = vadd.f32 %v3396, 1.0
        %v3398 = vmul.f32 %v3397, %v3281
        %v3399 = vand.u32 2147483647, %v3281
        %vm3400 = vcmp.lt.f32.partialorder %v3399, 0.0004427343
        %v3401 = vsel %vm3400, %v3398, %v3395
        %v3402 = vadd.f32 %v3283, 1.0
        %v3403 = vlog2.pop %v3402
        %v3404 = vmul.f32 %v3403, 0.6931472
        %v3405 = vmul.f32 -0.5, %v3283
        %v3406 = vadd.f32 %v3405, 1.0
        %v3407 = vmul.f32 %v3406, %v3283
        %v3408 = vand.u32 2147483647, %v3283
        %vm3409 = vcmp.lt.f32.partialorder %v3408, 0.0004427343
        %v3410 = vsel %vm3409, %v3407, %v3404
        %v3411 = vadd.f32 %v3285, 1.0
        %v3412 = vlog2.pop %v3411
        %v3413 = vmul.f32 %v3412, 0.6931472
        %v3414 = vmul.f32 -0.5, %v3285
        %v3415 = vadd.f32 %v3414, 1.0
        %v3416 = vmul.f32 %v3415, %v3285
        %v3417 = vand.u32 2147483647, %v3285
        %vm3418 = vcmp.lt.f32.partialorder %v3417, 0.0004427343
        %v3419 = vsel %vm3418, %v3416, %v3413
        %v3420 = vadd.f32 %v3287, 1.0
        %v3421 = vlog2.pop %v3420
        %v3422 = vmul.f32 %v3421, 0.6931472
        %v3423 = vmul.f32 -0.5, %v3287
        %v3424 = vadd.f32 %v3423, 1.0
        %v3425 = vmul.f32 %v3424, %v3287
        %v3426 = vand.u32 2147483647, %v3287
        %vm3427 = vcmp.lt.f32.partialorder %v3426, 0.0004427343
        %v3428 = vsel %vm3427, %v3425, %v3422
        %v3429 = vadd.f32 %v3289, 1.0
        %v3430 = vlog2.pop %v3429
        %v3431 = vmul.f32 %v3430, 0.6931472
        %v3432 = vmul.f32 -0.5, %v3289
        %v3433 = vadd.f32 %v3432, 1.0
        %v3434 = vmul.f32 %v3433, %v3289
        %v3435 = vand.u32 2147483647, %v3289
        %vm3436 = vcmp.lt.f32.partialorder %v3435, 0.0004427343
        %v3437 = vsel %vm3436, %v3434, %v3431
        %v3438 = vadd.f32 %v3291, 1.0
        %v3439 = vlog2.pop %v3438
        %v3440 = vmul.f32 %v3439, 0.6931472
        %v3441 = vmul.f32 -0.5, %v3291
        %v3442 = vadd.f32 %v3441, 1.0
        %v3443 = vmul.f32 %v3442, %v3291
        %v3444 = vand.u32 2147483647, %v3291
        %vm3445 = vcmp.lt.f32.partialorder %v3444, 0.0004427343
        %v3446 = vsel %vm3445, %v3443, %v3440
        %v3447 = vadd.f32 %v3293, 1.0
        %v3448 = vlog2.pop %v3447
        %v3449 = vmul.f32 %v3448, 0.6931472
        %v3450 = vmul.f32 -0.5, %v3293
        %v3451 = vadd.f32 %v3450, 1.0
        %v3452 = vmul.f32 %v3451, %v3293
        %v3453 = vand.u32 2147483647, %v3293
        %vm3454 = vcmp.lt.f32.partialorder %v3453, 0.0004427343
        %v3455 = vsel %vm3454, %v3452, %v3449
        %v3456 = vadd.f32 %v3295, 1.0
        %v3457 = vlog2.pop %v3456
        %v3458 = vmul.f32 %v3457, 0.6931472
        %v3459 = vmul.f32 -0.5, %v3295
        %v3460 = vadd.f32 %v3459, 1.0
        %v3461 = vmul.f32 %v3460, %v3295
        %v3462 = vand.u32 2147483647, %v3295
        %vm3463 = vcmp.lt.f32.partialorder %v3462, 0.0004427343
        %v3464 = vsel %vm3463, %v3461, %v3458
        %v3465 = vadd.f32 %v3297, 1.0
        %v3466 = vlog2.pop %v3465
        %v3467 = vmul.f32 %v3466, 0.6931472
        %v3468 = vmul.f32 -0.5, %v3297
        %v3469 = vadd.f32 %v3468, 1.0
        %v3470 = vmul.f32 %v3469, %v3297
        %v3471 = vand.u32 2147483647, %v3297
        %vm3472 = vcmp.lt.f32.partialorder %v3471, 0.0004427343
        %v3473 = vsel %vm3472, %v3470, %v3467
        %v3474 = vadd.f32 %v3299, 1.0
        %v3475 = vlog2.pop %v3474
        %v3476 = vmul.f32 %v3475, 0.6931472
        %v3477 = vmul.f32 -0.5, %v3299
        %v3478 = vadd.f32 %v3477, 1.0
        %v3479 = vmul.f32 %v3478, %v3299
        %v3480 = vand.u32 2147483647, %v3299
        %vm3481 = vcmp.lt.f32.partialorder %v3480, 0.0004427343
        %v3482 = vsel %vm3481, %v3479, %v3476
        %v3483 = vadd.f32 %v3301, 1.0
        %v3484 = vlog2.pop %v3483
        %v3485 = vmul.f32 %v3484, 0.6931472
        %v3486 = vmul.f32 -0.5, %v3301
        %v3487 = vadd.f32 %v3486, 1.0
        %v3488 = vmul.f32 %v3487, %v3301
        %v3489 = vand.u32 2147483647, %v3301
        %vm3490 = vcmp.lt.f32.partialorder %v3489, 0.0004427343
        %v3491 = vsel %vm3490, %v3488, %v3485
        %v3492 = vadd.f32 %v3303, 1.0
        %v3493 = vlog2.pop %v3492
        %v3494 = vmul.f32 %v3493, 0.6931472
        %v3495 = vmul.f32 -0.5, %v3303
        %v3496 = vadd.f32 %v3495, 1.0
        %v3497 = vmul.f32 %v3496, %v3303
        %v3498 = vand.u32 2147483647, %v3303
        %vm3499 = vcmp.lt.f32.partialorder %v3498, 0.0004427343
        %v3500 = vsel %vm3499, %v3497, %v3494
        %v3501 = vadd.f32 %v3305, 1.0
        %v3502 = vlog2.pop %v3501
        %v3503 = vmul.f32 %v3502, 0.6931472
        %v3504 = vmul.f32 -0.5, %v3305
        %v3505 = vadd.f32 %v3504, 1.0
        %v3506 = vmul.f32 %v3505, %v3305
        %v3507 = vand.u32 2147483647, %v3305
        %vm3508 = vcmp.lt.f32.partialorder %v3507, 0.0004427343
        %v3509 = vsel %vm3508, %v3506, %v3503
        %v3510 = vadd.f32 %v3307, 1.0
        %v3511 = vlog2.pop %v3510
        %v3512 = vmul.f32 %v3511, 0.6931472
        %v3513 = vmul.f32 -0.5, %v3307
        %v3514 = vadd.f32 %v3513, 1.0
        %v3515 = vmul.f32 %v3514, %v3307
        %v3516 = vand.u32 2147483647, %v3307
        %vm3517 = vcmp.lt.f32.partialorder %v3516, 0.0004427343
        %v3518 = vsel %vm3517, %v3515, %v3512
        %v3519 = vadd.f32 %v3309, 1.0
        %v3520 = vlog2.pop %v3519
        %v3521 = vmul.f32 %v3520, 0.6931472
        %v3522 = vmul.f32 -0.5, %v3309
        %v3523 = vadd.f32 %v3522, 1.0
        %v3524 = vmul.f32 %v3523, %v3309
        %v3525 = vand.u32 2147483647, %v3309
        %vm3526 = vcmp.lt.f32.partialorder %v3525, 0.0004427343
        %v3527 = vsel %vm3526, %v3524, %v3521
        %v3528 = vadd.f32 %v3311, 1.0
        %v3529 = vlog2.pop %v3528
        %v3530 = vmul.f32 %v3529, 0.6931472
        %v3531 = vmul.f32 -0.5, %v3311
        %v3532 = vadd.f32 %v3531, 1.0
        %v3533 = vmul.f32 %v3532, %v3311
        %v3534 = vand.u32 2147483647, %v3311
        %vm3535 = vcmp.lt.f32.partialorder %v3534, 0.0004427343
        %v3536 = vsel %vm3535, %v3533, %v3530
        %v3537 = vadd.f32 %v3313, 1.0
        %v3538 = vlog2.pop %v3537
        %v3539 = vmul.f32 %v3538, 0.6931472
        %v3540 = vmul.f32 -0.5, %v3313
        %v3541 = vadd.f32 %v3540, 1.0
        %v3542 = vmul.f32 %v3541, %v3313
        %v3543 = vand.u32 2147483647, %v3313
        %vm3544 = vcmp.lt.f32.partialorder %v3543, 0.0004427343
        %v3545 = vsel %vm3544, %v3542, %v3539
        %v3546 = vadd.f32 %v3315, 1.0
        %v3547 = vlog2.pop %v3546
        %v3548 = vmul.f32 %v3547, 0.6931472
        %v3549 = vmul.f32 -0.5, %v3315
        %v3550 = vadd.f32 %v3549, 1.0
        %v3551 = vmul.f32 %v3550, %v3315
        %v3552 = vand.u32 2147483647, %v3315
        %vm3553 = vcmp.lt.f32.partialorder %v3552, 0.0004427343
        %v3554 = vsel %vm3553, %v3551, %v3548
        %v3555 = vadd.f32 %v3317, 1.0
        %v3556 = vlog2.pop %v3555
        %v3557 = vmul.f32 %v3556, 0.6931472
        %v3558 = vmul.f32 -0.5, %v3317
        %v3559 = vadd.f32 %v3558, 1.0
        %v3560 = vmul.f32 %v3559, %v3317
        %v3561 = vand.u32 2147483647, %v3317
        %vm3562 = vcmp.lt.f32.partialorder %v3561, 0.0004427343
        %v3563 = vsel %vm3562, %v3560, %v3557
        %v3564 = vadd.f32 %v3319, 1.0
        %v3565 = vlog2.pop %v3564
        %v3566 = vmul.f32 %v3565, 0.6931472
        %v3567 = vmul.f32 -0.5, %v3319
        %v3568 = vadd.f32 %v3567, 1.0
        %v3569 = vmul.f32 %v3568, %v3319
        %v3570 = vand.u32 2147483647, %v3319
        %vm3571 = vcmp.lt.f32.partialorder %v3570, 0.0004427343
        %v3572 = vsel %vm3571, %v3569, %v3566
        %v3573 = vadd.f32 %v3321, 1.0
        %v3574 = vlog2.pop %v3573
        %v3575 = vmul.f32 %v3574, 0.6931472
        %v3576 = vmul.f32 -0.5, %v3321
        %v3577 = vadd.f32 %v3576, 1.0
        %v3578 = vmul.f32 %v3577, %v3321
        %v3579 = vand.u32 2147483647, %v3321
        %vm3580 = vcmp.lt.f32.partialorder %v3579, 0.0004427343
        %v3581 = vsel %vm3580, %v3578, %v3575
        %v3582 = vadd.f32 %v3323, 1.0
        %v3583 = vlog2.pop %v3582
        %v3584 = vmul.f32 %v3583, 0.6931472
        %v3585 = vmul.f32 -0.5, %v3323
        %v3586 = vadd.f32 %v3585, 1.0
        %v3587 = vmul.f32 %v3586, %v3323
        %v3588 = vand.u32 2147483647, %v3323
        %vm3589 = vcmp.lt.f32.partialorder %v3588, 0.0004427343
        %v3590 = vsel %vm3589, %v3587, %v3584
        %v3591 = vadd.f32 %v3325, 1.0
        %v3592 = vlog2.pop %v3591
        %v3593 = vmul.f32 %v3592, 0.6931472
        %v3594 = vmul.f32 -0.5, %v3325
        %v3595 = vadd.f32 %v3594, 1.0
        %v3596 = vmul.f32 %v3595, %v3325
        %v3597 = vand.u32 2147483647, %v3325
        %vm3598 = vcmp.lt.f32.partialorder %v3597, 0.0004427343
        %v3599 = vsel %vm3598, %v3596, %v3593
        %v3600 = vadd.f32 %v3327, 1.0
        %v3601 = vlog2.pop %v3600
        %v3602 = vmul.f32 %v3601, 0.6931472
        %v3603 = vmul.f32 -0.5, %v3327
        %v3604 = vadd.f32 %v3603, 1.0
        %v3605 = vmul.f32 %v3604, %v3327
        %v3606 = vand.u32 2147483647, %v3327
        %vm3607 = vcmp.lt.f32.partialorder %v3606, 0.0004427343
        %v3608 = vsel %vm3607, %v3605, %v3602
        %v3609 = vadd.f32 %v3329, 1.0
        %v3610 = vlog2.pop %v3609
        %v3611 = vmul.f32 %v3610, 0.6931472
        %v3612 = vmul.f32 -0.5, %v3329
        %v3613 = vadd.f32 %v3612, 1.0
        %v3614 = vmul.f32 %v3613, %v3329
        %v3615 = vand.u32 2147483647, %v3329
        %vm3616 = vcmp.lt.f32.partialorder %v3615, 0.0004427343
        %v3617 = vsel %vm3616, %v3614, %v3611
        %v3618 = vrcp.pop 100.0
        %v3619 = vmul.f32 100.0, %v3618
        %v3620 = vsub.f32 1.0, %v3619
        %v3621 = vmul.f32 %v3618, %v3620
        %v3622 = vadd.f32 %v3618, %v3621
        %vm3623 = vweird.f32 %v3618
        %v3624 = vsel %vm3623, %v3618, %v3622
        %v3625 = vmul.f32 %v3338, %v3624
        %v3626 = vmul.f32 %v3347, %v3624
        %v3627 = vmul.f32 %v3356, %v3624
        %v3628 = vmul.f32 %v3365, %v3624
        %v3629 = vmul.f32 %v3374, %v3624
        %v3630 = vmul.f32 %v3383, %v3624
        %v3631 = vmul.f32 %v3392, %v3624
        %v3632 = vmul.f32 %v3401, %v3624
        %v3633 = vmul.f32 %v3410, %v3624
        %v3634 = vmul.f32 %v3419, %v3624
        %v3635 = vmul.f32 %v3428, %v3624
        %v3636 = vmul.f32 %v3437, %v3624
        %v3637 = vmul.f32 %v3446, %v3624
        %v3638 = vmul.f32 %v3455, %v3624
        %v3639 = vmul.f32 %v3464, %v3624
        %v3640 = vmul.f32 %v3473, %v3624
        %v3641 = vmul.f32 %v3482, %v3624
        %v3642 = vmul.f32 %v3491, %v3624
        %v3643 = vmul.f32 %v3500, %v3624
        %v3644 = vmul.f32 %v3509, %v3624
        %v3645 = vmul.f32 %v3518, %v3624
        %v3646 = vmul.f32 %v3527, %v3624
        %v3647 = vmul.f32 %v3536, %v3624
        %v3648 = vmul.f32 %v3545, %v3624
        %v3649 = vmul.f32 %v3554, %v3624
        %v3650 = vmul.f32 %v3563, %v3624
        %v3651 = vmul.f32 %v3572, %v3624
        %v3652 = vmul.f32 %v3581, %v3624
        %v3653 = vmul.f32 %v3590, %v3624
        %v3654 = vmul.f32 %v3599, %v3624
        %v3655 = vmul.f32 %v3608, %v3624
        %v3656 = vmul.f32 %v3617, %v3624
        %v3657 = vsel %vm3202, %v3028, %v3625
        %v3658 = vsel %vm3203, %v3047, %v3626
        %v3659 = vsel %vm3204, %v3066, %v3627
        %v3660 = vsel %vm3205, %v3085, %v3628
        %v3661 = vsel %vm3206, %v3104, %v3629
        %v3662 = vsel %vm3207, %v3123, %v3630
        %v3663 = vsel %vm3208, %v3142, %v3631
        %v3664 = vsel %vm3209, %v3161, %v3632
        %v3665 = vsel %vm3210, %v3030, %v3633
        %v3666 = vsel %vm3211, %v3049, %v3634
        %v3667 = vsel %vm3212, %v3068, %v3635
        %v3668 = vsel %vm3213, %v3087, %v3636
        %v3669 = vsel %vm3214, %v3106, %v3637
        %v3670 = vsel %vm3215, %v3125, %v3638
        %v3671 = vsel %vm3216, %v3144, %v3639
        %v3672 = vsel %vm3217, %v3163, %v3640
        %v3673 = vsel %vm3218, %v3033, %v3641
        %v3674 = vsel %vm3219, %v3052, %v3642
        %v3675 = vsel %vm3220, %v3071, %v3643
        %v3676 = vsel %vm3221, %v3090, %v3644
        %v3677 = vsel %vm3222, %v3109, %v3645
        %v3678 = vsel %vm3223, %v3128, %v3646
        %v3679 = vsel %vm3224, %v3147, %v3647
        %v3680 = vsel %vm3225, %v3166, %v3648
        %v3681 = vsel %vm3226, %v3035, %v3649
        %v3682 = vsel %vm3227, %v3054, %v3650
        %v3683 = vsel %vm3228, %v3073, %v3651
        %v3684 = vsel %vm3229, %v3092, %v3652
        %v3685 = vsel %vm3230, %v3111, %v3653
        %v3686 = vsel %vm3231, %v3130, %v3654
        %v3687 = vsel %vm3232, %v3149, %v3655
        %v3688 = vsel %vm3233, %v3168, %v3656
        %v3689 = vpack.c.bf16 %v3665, %v3657
        %v3690 = vpack.c.bf16 %v3666, %v3658
        %v3691 = vpack.c.bf16 %v3667, %v3659
        %v3692 = vpack.c.bf16 %v3668, %v3660
        %v3693 = vpack.c.bf16 %v3669, %v3661
        %v3694 = vpack.c.bf16 %v3670, %v3662
        %v3695 = vpack.c.bf16 %v3671, %v3663
        %v3696 = vpack.c.bf16 %v3672, %v3664
        %v3697 = vpack.c.bf16 %v3681, %v3673
        %v3698 = vpack.c.bf16 %v3682, %v3674
        %v3699 = vpack.c.bf16 %v3683, %v3675
        %v3700 = vpack.c.bf16 %v3684, %v3676
        %v3701 = vpack.c.bf16 %v3685, %v3677
        %v3702 = vpack.c.bf16 %v3686, %v3678
        %v3703 = vpack.c.bf16 %v3687, %v3679
        %v3704 = vpack.c.bf16 %v3688, %v3680
        %3706 = vset.pattern.permute.xlu0 0
        %3707 = vperm.xlu0 %3706, %v307
        %v3708 = vpop.permute.xlu0 %3707
        %3711 = vset.pattern.permute.xlu0 0
        %3712 = vperm.xlu0 %3711, %v308
        %v3713 = vpop.permute.xlu0 %3712
        %3716 = vset.pattern.permute.xlu0 0
        %3717 = vperm.xlu0 %3716, %v309
        %v3718 = vpop.permute.xlu0 %3717
        %v3723 = vunpack.c.l.b16 %v304
        %v3724 = vunpack.c.l.b16 %v305
        %v3725 = vunpack.c.l.b16 %v306
        %v3726 = vpack.c.b16 %v3724, %v3723
        %v3727 = vpack.c.b16 %v3725, %v3725
        %vm3728 = vcmask 261120
        %v3730 = vsel %vm3728, %v3726, 0
        %v3733 = vsel %vm3728, %v3727, 0
        %3735 = vmatpush.bf16.msra.mxu0 0
        %3736 = vmatpush.bf16.msra.mxu0 0
        %3737 = vmatpush.bf16.msra.mxu0 0
        %3738 = vmatpush.bf16.msra.mxu0 0
        %3739 = vmatpush.bf16.msra.mxu0 0
        %3740 = vmatpush.bf16.msra.mxu0 0
        %3741 = vmatpush.bf16.msra.mxu0 %v3697
        %3742 = vmatpush.bf16.msra.mxu0 %v3689
        %3743 = vmatmul.bf16.gmra.mxu0 %v3730
        %v3744 = vpop.f32.mrf.mxu0
        %v3745 = vadd.f32 %v3708, %v3744
        %v3746 = vpop.f32.mrf.mxu0
        %v3747 = vadd.f32 %v3713, %v3746
        %3748 = vmatmul.bf16.gmra.mxu0 %v3733
        %v3749 = vpop.f32.mrf.mxu0
        %v3750 = vadd.f32 %v3718, %v3749
        %v3751 = vpop.f32.mrf.mxu0
        %3752 = vdwg.mxu0
        %3753 = vmatpush.bf16.msra.mxu0 0
        %3754 = vmatpush.bf16.msra.mxu0 0
        %3755 = vmatpush.bf16.msra.mxu0 0
        %3756 = vmatpush.bf16.msra.mxu0 0
        %3757 = vmatpush.bf16.msra.mxu0 0
        %3758 = vmatpush.bf16.msra.mxu0 0
        %3759 = vmatpush.bf16.msra.mxu0 %v3698
        %3760 = vmatpush.bf16.msra.mxu0 %v3690
        %3761 = vmatmul.bf16.gmra.mxu0 %v3730
        %v3762 = vpop.f32.mrf.mxu0
        %v3763 = vadd.f32 %v3708, %v3762
        %v3764 = vpop.f32.mrf.mxu0
        %v3765 = vadd.f32 %v3713, %v3764
        %3766 = vmatmul.bf16.gmra.mxu0 %v3733
        %v3767 = vpop.f32.mrf.mxu0
        %v3768 = vadd.f32 %v3718, %v3767
        %v3769 = vpop.f32.mrf.mxu0
        %3770 = vdwg.mxu0
        %3771 = vmatpush.bf16.msra.mxu0 0
        %3772 = vmatpush.bf16.msra.mxu0 0
        %3773 = vmatpush.bf16.msra.mxu0 0
        %3774 = vmatpush.bf16.msra.mxu0 0
        %3775 = vmatpush.bf16.msra.mxu0 0
        %3776 = vmatpush.bf16.msra.mxu0 0
        %3777 = vmatpush.bf16.msra.mxu0 %v3699
        %3778 = vmatpush.bf16.msra.mxu0 %v3691
        %3779 = vmatmul.bf16.gmra.mxu0 %v3730
        %v3780 = vpop.f32.mrf.mxu0
        %v3781 = vadd.f32 %v3708, %v3780
        %v3782 = vpop.f32.mrf.mxu0
        %v3783 = vadd.f32 %v3713, %v3782
        %3784 = vmatmul.bf16.gmra.mxu0 %v3733
        %v3785 = vpop.f32.mrf.mxu0
        %v3786 = vadd.f32 %v3718, %v3785
        %v3787 = vpop.f32.mrf.mxu0
        %3788 = vdwg.mxu0
        %3789 = vmatpush.bf16.msra.mxu0 0
        %3790 = vmatpush.bf16.msra.mxu0 0
        %3791 = vmatpush.bf16.msra.mxu0 0
        %3792 = vmatpush.bf16.msra.mxu0 0
        %3793 = vmatpush.bf16.msra.mxu0 0
        %3794 = vmatpush.bf16.msra.mxu0 0
        %3795 = vmatpush.bf16.msra.mxu0 %v3700
        %3796 = vmatpush.bf16.msra.mxu0 %v3692
        %3797 = vmatmul.bf16.gmra.mxu0 %v3730
        %v3798 = vpop.f32.mrf.mxu0
        %v3799 = vadd.f32 %v3708, %v3798
        %v3800 = vpop.f32.mrf.mxu0
        %v3801 = vadd.f32 %v3713, %v3800
        %3802 = vmatmul.bf16.gmra.mxu0 %v3733
        %v3803 = vpop.f32.mrf.mxu0
        %v3804 = vadd.f32 %v3718, %v3803
        %v3805 = vpop.f32.mrf.mxu0
        %3806 = vdwg.mxu0
        %3807 = vmatpush.bf16.msra.mxu0 0
        %3808 = vmatpush.bf16.msra.mxu0 0
        %3809 = vmatpush.bf16.msra.mxu0 0
        %3810 = vmatpush.bf16.msra.mxu0 0
        %3811 = vmatpush.bf16.msra.mxu0 0
        %3812 = vmatpush.bf16.msra.mxu0 0
        %3813 = vmatpush.bf16.msra.mxu0 %v3701
        %3814 = vmatpush.bf16.msra.mxu0 %v3693
        %3815 = vmatmul.bf16.gmra.mxu0 %v3730
        %v3816 = vpop.f32.mrf.mxu0
        %v3817 = vadd.f32 %v3708, %v3816
        %v3818 = vpop.f32.mrf.mxu0
        %v3819 = vadd.f32 %v3713, %v3818
        %3820 = vmatmul.bf16.gmra.mxu0 %v3733
        %v3821 = vpop.f32.mrf.mxu0
        %v3822 = vadd.f32 %v3718, %v3821
        %v3823 = vpop.f32.mrf.mxu0
        %3824 = vdwg.mxu0
        %3825 = vmatpush.bf16.msra.mxu0 0
        %3826 = vmatpush.bf16.msra.mxu0 0
        %3827 = vmatpush.bf16.msra.mxu0 0
        %3828 = vmatpush.bf16.msra.mxu0 0
        %3829 = vmatpush.bf16.msra.mxu0 0
        %3830 = vmatpush.bf16.msra.mxu0 0
        %3831 = vmatpush.bf16.msra.mxu0 %v3702
        %3832 = vmatpush.bf16.msra.mxu0 %v3694
        %3833 = vmatmul.bf16.gmra.mxu0 %v3730
        %v3834 = vpop.f32.mrf.mxu0
        %v3835 = vadd.f32 %v3708, %v3834
        %v3836 = vpop.f32.mrf.mxu0
        %v3837 = vadd.f32 %v3713, %v3836
        %3838 = vmatmul.bf16.gmra.mxu0 %v3733
        %v3839 = vpop.f32.mrf.mxu0
        %v3840 = vadd.f32 %v3718, %v3839
        %v3841 = vpop.f32.mrf.mxu0
        %3842 = vdwg.mxu0
        %3843 = vmatpush.bf16.msra.mxu0 0
        %3844 = vmatpush.bf16.msra.mxu0 0
        %3845 = vmatpush.bf16.msra.mxu0 0
        %3846 = vmatpush.bf16.msra.mxu0 0
        %3847 = vmatpush.bf16.msra.mxu0 0
        %3848 = vmatpush.bf16.msra.mxu0 0
        %3849 = vmatpush.bf16.msra.mxu0 %v3703
        %3850 = vmatpush.bf16.msra.mxu0 %v3695
        %3851 = vmatmul.bf16.gmra.mxu0 %v3730
        %v3852 = vpop.f32.mrf.mxu0
        %v3853 = vadd.f32 %v3708, %v3852
        %v3854 = vpop.f32.mrf.mxu0
        %v3855 = vadd.f32 %v3713, %v3854
        %3856 = vmatmul.bf16.gmra.mxu0 %v3733
        %v3857 = vpop.f32.mrf.mxu0
        %v3858 = vadd.f32 %v3718, %v3857
        %v3859 = vpop.f32.mrf.mxu0
        %3860 = vdwg.mxu0
        %3861 = vmatpush.bf16.msra.mxu0 0
        %3862 = vmatpush.bf16.msra.mxu0 0
        %3863 = vmatpush.bf16.msra.mxu0 0
        %3864 = vmatpush.bf16.msra.mxu0 0
        %3865 = vmatpush.bf16.msra.mxu0 0
        %3866 = vmatpush.bf16.msra.mxu0 0
        %3867 = vmatpush.bf16.msra.mxu0 %v3704
        %3868 = vmatpush.bf16.msra.mxu0 %v3696
        %3869 = vmatmul.bf16.gmra.mxu0 %v3730
        %v3870 = vpop.f32.mrf.mxu0
        %v3871 = vadd.f32 %v3708, %v3870
        %v3872 = vpop.f32.mrf.mxu0
        %v3873 = vadd.f32 %v3713, %v3872
        %3874 = vmatmul.bf16.gmra.mxu0 %v3733
        %v3875 = vpop.f32.mrf.mxu0
        %v3876 = vadd.f32 %v3718, %v3875
        %v3877 = vpop.f32.mrf.mxu0
        %3878 = vdwg.mxu0
        %v3879 = vmul.f32 %v3745, 100.0
        %v3880 = vmul.f32 %v3763, 100.0
        %v3881 = vmul.f32 %v3781, 100.0
        %v3882 = vmul.f32 %v3799, 100.0
        %v3883 = vmul.f32 %v3817, 100.0
        %v3884 = vmul.f32 %v3835, 100.0
        %v3885 = vmul.f32 %v3853, 100.0
        %v3886 = vmul.f32 %v3871, 100.0
        %v3887 = vmul.f32 %v3747, 100.0
        %v3888 = vmul.f32 %v3765, 100.0
        %v3889 = vmul.f32 %v3783, 100.0
        %v3890 = vmul.f32 %v3801, 100.0
        %v3891 = vmul.f32 %v3819, 100.0
        %v3892 = vmul.f32 %v3837, 100.0
        %v3893 = vmul.f32 %v3855, 100.0
        %v3894 = vmul.f32 %v3873, 100.0
        %v3895 = vmul.f32 %v3750, 100.0
        %v3896 = vmul.f32 %v3768, 100.0
        %v3897 = vmul.f32 %v3786, 100.0
        %v3898 = vmul.f32 %v3804, 100.0
        %v3899 = vmul.f32 %v3822, 100.0
        %v3900 = vmul.f32 %v3840, 100.0
        %v3901 = vmul.f32 %v3858, 100.0
        %v3902 = vmul.f32 %v3876, 100.0
        %vm3903 = vcmp.gt.f32.partialorder %v3879, 20.0
        %vm3904 = vcmp.gt.f32.partialorder %v3880, 20.0
        %vm3905 = vcmp.gt.f32.partialorder %v3881, 20.0
        %vm3906 = vcmp.gt.f32.partialorder %v3882, 20.0
        %vm3907 = vcmp.gt.f32.partialorder %v3883, 20.0
        %vm3908 = vcmp.gt.f32.partialorder %v3884, 20.0
        %vm3909 = vcmp.gt.f32.partialorder %v3885, 20.0
        %vm3910 = vcmp.gt.f32.partialorder %v3886, 20.0
        %vm3911 = vcmp.gt.f32.partialorder %v3887, 20.0
        %vm3912 = vcmp.gt.f32.partialorder %v3888, 20.0
        %vm3913 = vcmp.gt.f32.partialorder %v3889, 20.0
        %vm3914 = vcmp.gt.f32.partialorder %v3890, 20.0
        %vm3915 = vcmp.gt.f32.partialorder %v3891, 20.0
        %vm3916 = vcmp.gt.f32.partialorder %v3892, 20.0
        %vm3917 = vcmp.gt.f32.partialorder %v3893, 20.0
        %vm3918 = vcmp.gt.f32.partialorder %v3894, 20.0
        %vm3919 = vcmp.gt.f32.partialorder %v3895, 20.0
        %vm3920 = vcmp.gt.f32.partialorder %v3896, 20.0
        %vm3921 = vcmp.gt.f32.partialorder %v3897, 20.0
        %vm3922 = vcmp.gt.f32.partialorder %v3898, 20.0
        %vm3923 = vcmp.gt.f32.partialorder %v3899, 20.0
        %vm3924 = vcmp.gt.f32.partialorder %v3900, 20.0
        %vm3925 = vcmp.gt.f32.partialorder %v3901, 20.0
        %vm3926 = vcmp.gt.f32.partialorder %v3902, 20.0
        %v3927 = vmin.f32 %v3879, 20.0
        %v3928 = vmin.f32 %v3880, 20.0
        %v3929 = vmin.f32 %v3881, 20.0
        %v3930 = vmin.f32 %v3882, 20.0
        %v3931 = vmin.f32 %v3883, 20.0
        %v3932 = vmin.f32 %v3884, 20.0
        %v3933 = vmin.f32 %v3885, 20.0
        %v3934 = vmin.f32 %v3886, 20.0
        %v3935 = vmin.f32 %v3887, 20.0
        %v3936 = vmin.f32 %v3888, 20.0
        %v3937 = vmin.f32 %v3889, 20.0
        %v3938 = vmin.f32 %v3890, 20.0
        %v3939 = vmin.f32 %v3891, 20.0
        %v3940 = vmin.f32 %v3892, 20.0
        %v3941 = vmin.f32 %v3893, 20.0
        %v3942 = vmin.f32 %v3894, 20.0
        %v3943 = vmin.f32 %v3895, 20.0
        %v3944 = vmin.f32 %v3896, 20.0
        %v3945 = vmin.f32 %v3897, 20.0
        %v3946 = vmin.f32 %v3898, 20.0
        %v3947 = vmin.f32 %v3899, 20.0
        %v3948 = vmin.f32 %v3900, 20.0
        %v3949 = vmin.f32 %v3901, 20.0
        %v3950 = vmin.f32 %v3902, 20.0
        %v3951 = vmul.f32 %v3927, 1.442695
        %v3952 = vpow.pop %v3951
        %v3953 = vmul.f32 %v3928, 1.442695
        %v3954 = vpow.pop %v3953
        %v3955 = vmul.f32 %v3929, 1.442695
        %v3956 = vpow.pop %v3955
        %v3957 = vmul.f32 %v3930, 1.442695
        %v3958 = vpow.pop %v3957
        %v3959 = vmul.f32 %v3931, 1.442695
        %v3960 = vpow.pop %v3959
        %v3961 = vmul.f32 %v3932, 1.442695
        %v3962 = vpow.pop %v3961
        %v3963 = vmul.f32 %v3933, 1.442695
        %v3964 = vpow.pop %v3963
        %v3965 = vmul.f32 %v3934, 1.442695
        %v3966 = vpow.pop %v3965
        %v3967 = vmul.f32 %v3935, 1.442695
        %v3968 = vpow.pop %v3967
        %v3969 = vmul.f32 %v3936, 1.442695
        %v3970 = vpow.pop %v3969
        %v3971 = vmul.f32 %v3937, 1.442695
        %v3972 = vpow.pop %v3971
        %v3973 = vmul.f32 %v3938, 1.442695
        %v3974 = vpow.pop %v3973
        %v3975 = vmul.f32 %v3939, 1.442695
        %v3976 = vpow.pop %v3975
        %v3977 = vmul.f32 %v3940, 1.442695
        %v3978 = vpow.pop %v3977
        %v3979 = vmul.f32 %v3941, 1.442695
        %v3980 = vpow.pop %v3979
        %v3981 = vmul.f32 %v3942, 1.442695
        %v3982 = vpow.pop %v3981
        %v3983 = vmul.f32 %v3943, 1.442695
        %v3984 = vpow.pop %v3983
        %v3985 = vmul.f32 %v3944, 1.442695
        %v3986 = vpow.pop %v3985
        %v3987 = vmul.f32 %v3945, 1.442695
        %v3988 = vpow.pop %v3987
        %v3989 = vmul.f32 %v3946, 1.442695
        %v3990 = vpow.pop %v3989
        %v3991 = vmul.f32 %v3947, 1.442695
        %v3992 = vpow.pop %v3991
        %v3993 = vmul.f32 %v3948, 1.442695
        %v3994 = vpow.pop %v3993
        %v3995 = vmul.f32 %v3949, 1.442695
        %v3996 = vpow.pop %v3995
        %v3997 = vmul.f32 %v3950, 1.442695
        %v3998 = vpow.pop %v3997
        %v3999 = vadd.f32 %v3952, 1.0
        %v4000 = vlog2.pop %v3999
        %v4001 = vmul.f32 %v4000, 0.6931472
        %v4002 = vmul.f32 -0.5, %v3952
        %v4003 = vadd.f32 %v4002, 1.0
        %v4004 = vmul.f32 %v4003, %v3952
        %v4005 = vand.u32 2147483647, %v3952
        %vm4006 = vcmp.lt.f32.partialorder %v4005, 0.0004427343
        %v4007 = vsel %vm4006, %v4004, %v4001
        %v4008 = vadd.f32 %v3954, 1.0
        %v4009 = vlog2.pop %v4008
        %v4010 = vmul.f32 %v4009, 0.6931472
        %v4011 = vmul.f32 -0.5, %v3954
        %v4012 = vadd.f32 %v4011, 1.0
        %v4013 = vmul.f32 %v4012, %v3954
        %v4014 = vand.u32 2147483647, %v3954
        %vm4015 = vcmp.lt.f32.partialorder %v4014, 0.0004427343
        %v4016 = vsel %vm4015, %v4013, %v4010
        %v4017 = vadd.f32 %v3956, 1.0
        %v4018 = vlog2.pop %v4017
        %v4019 = vmul.f32 %v4018, 0.6931472
        %v4020 = vmul.f32 -0.5, %v3956
        %v4021 = vadd.f32 %v4020, 1.0
        %v4022 = vmul.f32 %v4021, %v3956
        %v4023 = vand.u32 2147483647, %v3956
        %vm4024 = vcmp.lt.f32.partialorder %v4023, 0.0004427343
        %v4025 = vsel %vm4024, %v4022, %v4019
        %v4026 = vadd.f32 %v3958, 1.0
        %v4027 = vlog2.pop %v4026
        %v4028 = vmul.f32 %v4027, 0.6931472
        %v4029 = vmul.f32 -0.5, %v3958
        %v4030 = vadd.f32 %v4029, 1.0
        %v4031 = vmul.f32 %v4030, %v3958
        %v4032 = vand.u32 2147483647, %v3958
        %vm4033 = vcmp.lt.f32.partialorder %v4032, 0.0004427343
        %v4034 = vsel %vm4033, %v4031, %v4028
        %v4035 = vadd.f32 %v3960, 1.0
        %v4036 = vlog2.pop %v4035
        %v4037 = vmul.f32 %v4036, 0.6931472
        %v4038 = vmul.f32 -0.5, %v3960
        %v4039 = vadd.f32 %v4038, 1.0
        %v4040 = vmul.f32 %v4039, %v3960
        %v4041 = vand.u32 2147483647, %v3960
        %vm4042 = vcmp.lt.f32.partialorder %v4041, 0.0004427343
        %v4043 = vsel %vm4042, %v4040, %v4037
        %v4044 = vadd.f32 %v3962, 1.0
        %v4045 = vlog2.pop %v4044
        %v4046 = vmul.f32 %v4045, 0.6931472
        %v4047 = vmul.f32 -0.5, %v3962
        %v4048 = vadd.f32 %v4047, 1.0
        %v4049 = vmul.f32 %v4048, %v3962
        %v4050 = vand.u32 2147483647, %v3962
        %vm4051 = vcmp.lt.f32.partialorder %v4050, 0.0004427343
        %v4052 = vsel %vm4051, %v4049, %v4046
        %v4053 = vadd.f32 %v3964, 1.0
        %v4054 = vlog2.pop %v4053
        %v4055 = vmul.f32 %v4054, 0.6931472
        %v4056 = vmul.f32 -0.5, %v3964
        %v4057 = vadd.f32 %v4056, 1.0
        %v4058 = vmul.f32 %v4057, %v3964
        %v4059 = vand.u32 2147483647, %v3964
        %vm4060 = vcmp.lt.f32.partialorder %v4059, 0.0004427343
        %v4061 = vsel %vm4060, %v4058, %v4055
        %v4062 = vadd.f32 %v3966, 1.0
        %v4063 = vlog2.pop %v4062
        %v4064 = vmul.f32 %v4063, 0.6931472
        %v4065 = vmul.f32 -0.5, %v3966
        %v4066 = vadd.f32 %v4065, 1.0
        %v4067 = vmul.f32 %v4066, %v3966
        %v4068 = vand.u32 2147483647, %v3966
        %vm4069 = vcmp.lt.f32.partialorder %v4068, 0.0004427343
        %v4070 = vsel %vm4069, %v4067, %v4064
        %v4071 = vadd.f32 %v3968, 1.0
        %v4072 = vlog2.pop %v4071
        %v4073 = vmul.f32 %v4072, 0.6931472
        %v4074 = vmul.f32 -0.5, %v3968
        %v4075 = vadd.f32 %v4074, 1.0
        %v4076 = vmul.f32 %v4075, %v3968
        %v4077 = vand.u32 2147483647, %v3968
        %vm4078 = vcmp.lt.f32.partialorder %v4077, 0.0004427343
        %v4079 = vsel %vm4078, %v4076, %v4073
        %v4080 = vadd.f32 %v3970, 1.0
        %v4081 = vlog2.pop %v4080
        %v4082 = vmul.f32 %v4081, 0.6931472
        %v4083 = vmul.f32 -0.5, %v3970
        %v4084 = vadd.f32 %v4083, 1.0
        %v4085 = vmul.f32 %v4084, %v3970
        %v4086 = vand.u32 2147483647, %v3970
        %vm4087 = vcmp.lt.f32.partialorder %v4086, 0.0004427343
        %v4088 = vsel %vm4087, %v4085, %v4082
        %v4089 = vadd.f32 %v3972, 1.0
        %v4090 = vlog2.pop %v4089
        %v4091 = vmul.f32 %v4090, 0.6931472
        %v4092 = vmul.f32 -0.5, %v3972
        %v4093 = vadd.f32 %v4092, 1.0
        %v4094 = vmul.f32 %v4093, %v3972
        %v4095 = vand.u32 2147483647, %v3972
        %vm4096 = vcmp.lt.f32.partialorder %v4095, 0.0004427343
        %v4097 = vsel %vm4096, %v4094, %v4091
        %v4098 = vadd.f32 %v3974, 1.0
        %v4099 = vlog2.pop %v4098
        %v4100 = vmul.f32 %v4099, 0.6931472
        %v4101 = vmul.f32 -0.5, %v3974
        %v4102 = vadd.f32 %v4101, 1.0
        %v4103 = vmul.f32 %v4102, %v3974
        %v4104 = vand.u32 2147483647, %v3974
        %vm4105 = vcmp.lt.f32.partialorder %v4104, 0.0004427343
        %v4106 = vsel %vm4105, %v4103, %v4100
        %v4107 = vadd.f32 %v3976, 1.0
        %v4108 = vlog2.pop %v4107
        %v4109 = vmul.f32 %v4108, 0.6931472
        %v4110 = vmul.f32 -0.5, %v3976
        %v4111 = vadd.f32 %v4110, 1.0
        %v4112 = vmul.f32 %v4111, %v3976
        %v4113 = vand.u32 2147483647, %v3976
        %vm4114 = vcmp.lt.f32.partialorder %v4113, 0.0004427343
        %v4115 = vsel %vm4114, %v4112, %v4109
        %v4116 = vadd.f32 %v3978, 1.0
        %v4117 = vlog2.pop %v4116
        %v4118 = vmul.f32 %v4117, 0.6931472
        %v4119 = vmul.f32 -0.5, %v3978
        %v4120 = vadd.f32 %v4119, 1.0
        %v4121 = vmul.f32 %v4120, %v3978
        %v4122 = vand.u32 2147483647, %v3978
        %vm4123 = vcmp.lt.f32.partialorder %v4122, 0.0004427343
        %v4124 = vsel %vm4123, %v4121, %v4118
        %v4125 = vadd.f32 %v3980, 1.0
        %v4126 = vlog2.pop %v4125
        %v4127 = vmul.f32 %v4126, 0.6931472
        %v4128 = vmul.f32 -0.5, %v3980
        %v4129 = vadd.f32 %v4128, 1.0
        %v4130 = vmul.f32 %v4129, %v3980
        %v4131 = vand.u32 2147483647, %v3980
        %vm4132 = vcmp.lt.f32.partialorder %v4131, 0.0004427343
        %v4133 = vsel %vm4132, %v4130, %v4127
        %v4134 = vadd.f32 %v3982, 1.0
        %v4135 = vlog2.pop %v4134
        %v4136 = vmul.f32 %v4135, 0.6931472
        %v4137 = vmul.f32 -0.5, %v3982
        %v4138 = vadd.f32 %v4137, 1.0
        %v4139 = vmul.f32 %v4138, %v3982
        %v4140 = vand.u32 2147483647, %v3982
        %vm4141 = vcmp.lt.f32.partialorder %v4140, 0.0004427343
        %v4142 = vsel %vm4141, %v4139, %v4136
        %v4143 = vadd.f32 %v3984, 1.0
        %v4144 = vlog2.pop %v4143
        %v4145 = vmul.f32 %v4144, 0.6931472
        %v4146 = vmul.f32 -0.5, %v3984
        %v4147 = vadd.f32 %v4146, 1.0
        %v4148 = vmul.f32 %v4147, %v3984
        %v4149 = vand.u32 2147483647, %v3984
        %vm4150 = vcmp.lt.f32.partialorder %v4149, 0.0004427343
        %v4151 = vsel %vm4150, %v4148, %v4145
        %v4152 = vadd.f32 %v3986, 1.0
        %v4153 = vlog2.pop %v4152
        %v4154 = vmul.f32 %v4153, 0.6931472
        %v4155 = vmul.f32 -0.5, %v3986
        %v4156 = vadd.f32 %v4155, 1.0
        %v4157 = vmul.f32 %v4156, %v3986
        %v4158 = vand.u32 2147483647, %v3986
        %vm4159 = vcmp.lt.f32.partialorder %v4158, 0.0004427343
        %v4160 = vsel %vm4159, %v4157, %v4154
        %v4161 = vadd.f32 %v3988, 1.0
        %v4162 = vlog2.pop %v4161
        %v4163 = vmul.f32 %v4162, 0.6931472
        %v4164 = vmul.f32 -0.5, %v3988
        %v4165 = vadd.f32 %v4164, 1.0
        %v4166 = vmul.f32 %v4165, %v3988
        %v4167 = vand.u32 2147483647, %v3988
        %vm4168 = vcmp.lt.f32.partialorder %v4167, 0.0004427343
        %v4169 = vsel %vm4168, %v4166, %v4163
        %v4170 = vadd.f32 %v3990, 1.0
        %v4171 = vlog2.pop %v4170
        %v4172 = vmul.f32 %v4171, 0.6931472
        %v4173 = vmul.f32 -0.5, %v3990
        %v4174 = vadd.f32 %v4173, 1.0
        %v4175 = vmul.f32 %v4174, %v3990
        %v4176 = vand.u32 2147483647, %v3990
        %vm4177 = vcmp.lt.f32.partialorder %v4176, 0.0004427343
        %v4178 = vsel %vm4177, %v4175, %v4172
        %v4179 = vadd.f32 %v3992, 1.0
        %v4180 = vlog2.pop %v4179
        %v4181 = vmul.f32 %v4180, 0.6931472
        %v4182 = vmul.f32 -0.5, %v3992
        %v4183 = vadd.f32 %v4182, 1.0
        %v4184 = vmul.f32 %v4183, %v3992
        %v4185 = vand.u32 2147483647, %v3992
        %vm4186 = vcmp.lt.f32.partialorder %v4185, 0.0004427343
        %v4187 = vsel %vm4186, %v4184, %v4181
        %v4188 = vadd.f32 %v3994, 1.0
        %v4189 = vlog2.pop %v4188
        %v4190 = vmul.f32 %v4189, 0.6931472
        %v4191 = vmul.f32 -0.5, %v3994
        %v4192 = vadd.f32 %v4191, 1.0
        %v4193 = vmul.f32 %v4192, %v3994
        %v4194 = vand.u32 2147483647, %v3994
        %vm4195 = vcmp.lt.f32.partialorder %v4194, 0.0004427343
        %v4196 = vsel %vm4195, %v4193, %v4190
        %v4197 = vadd.f32 %v3996, 1.0
        %v4198 = vlog2.pop %v4197
        %v4199 = vmul.f32 %v4198, 0.6931472
        %v4200 = vmul.f32 -0.5, %v3996
        %v4201 = vadd.f32 %v4200, 1.0
        %v4202 = vmul.f32 %v4201, %v3996
        %v4203 = vand.u32 2147483647, %v3996
        %vm4204 = vcmp.lt.f32.partialorder %v4203, 0.0004427343
        %v4205 = vsel %vm4204, %v4202, %v4199
        %v4206 = vadd.f32 %v3998, 1.0
        %v4207 = vlog2.pop %v4206
        %v4208 = vmul.f32 %v4207, 0.6931472
        %v4209 = vmul.f32 -0.5, %v3998
        %v4210 = vadd.f32 %v4209, 1.0
        %v4211 = vmul.f32 %v4210, %v3998
        %v4212 = vand.u32 2147483647, %v3998
        %vm4213 = vcmp.lt.f32.partialorder %v4212, 0.0004427343
        %v4214 = vsel %vm4213, %v4211, %v4208
        %v4215 = vmul.f32 %v4007, %v3624
        %v4216 = vmul.f32 %v4016, %v3624
        %v4217 = vmul.f32 %v4025, %v3624
        %v4218 = vmul.f32 %v4034, %v3624
        %v4219 = vmul.f32 %v4043, %v3624
        %v4220 = vmul.f32 %v4052, %v3624
        %v4221 = vmul.f32 %v4061, %v3624
        %v4222 = vmul.f32 %v4070, %v3624
        %v4223 = vmul.f32 %v4079, %v3624
        %v4224 = vmul.f32 %v4088, %v3624
        %v4225 = vmul.f32 %v4097, %v3624
        %v4226 = vmul.f32 %v4106, %v3624
        %v4227 = vmul.f32 %v4115, %v3624
        %v4228 = vmul.f32 %v4124, %v3624
        %v4229 = vmul.f32 %v4133, %v3624
        %v4230 = vmul.f32 %v4142, %v3624
        %v4231 = vmul.f32 %v4151, %v3624
        %v4232 = vmul.f32 %v4160, %v3624
        %v4233 = vmul.f32 %v4169, %v3624
        %v4234 = vmul.f32 %v4178, %v3624
        %v4235 = vmul.f32 %v4187, %v3624
        %v4236 = vmul.f32 %v4196, %v3624
        %v4237 = vmul.f32 %v4205, %v3624
        %v4238 = vmul.f32 %v4214, %v3624
        %v4239 = vsel %vm3903, %v3745, %v4215
        %v4240 = vsel %vm3904, %v3763, %v4216
        %v4241 = vsel %vm3905, %v3781, %v4217
        %v4242 = vsel %vm3906, %v3799, %v4218
        %v4243 = vsel %vm3907, %v3817, %v4219
        %v4244 = vsel %vm3908, %v3835, %v4220
        %v4245 = vsel %vm3909, %v3853, %v4221
        %v4246 = vsel %vm3910, %v3871, %v4222
        %v4247 = vsel %vm3911, %v3747, %v4223
        %v4248 = vsel %vm3912, %v3765, %v4224
        %v4249 = vsel %vm3913, %v3783, %v4225
        %v4250 = vsel %vm3914, %v3801, %v4226
        %v4251 = vsel %vm3915, %v3819, %v4227
        %v4252 = vsel %vm3916, %v3837, %v4228
        %v4253 = vsel %vm3917, %v3855, %v4229
        %v4254 = vsel %vm3918, %v3873, %v4230
        %v4255 = vsel %vm3919, %v3750, %v4231
        %v4256 = vsel %vm3920, %v3768, %v4232
        %v4257 = vsel %vm3921, %v3786, %v4233
        %v4258 = vsel %vm3922, %v3804, %v4234
        %v4259 = vsel %vm3923, %v3822, %v4235
        %v4260 = vsel %vm3924, %v3840, %v4236
        %v4261 = vsel %vm3925, %v3858, %v4237
        %v4262 = vsel %vm3926, %v3876, %v4238
        %4263 = vst [vmem:[#allocation2] sm:$0xff] %v4239
        %4264 = vst [vmem:[#allocation2 + $0x8] sm:$0xff] %v4240
        %4265 = vst [vmem:[#allocation2 + $0x10] sm:$0xff] %v4241
        %4266 = vst [vmem:[#allocation2 + $0x18] sm:$0xff] %v4242
        %4267 = vst [vmem:[#allocation2 + $0x20] sm:$0xff] %v4243
        %4268 = vst [vmem:[#allocation2 + $0x28] sm:$0xff] %v4244
        %4269 = vst [vmem:[#allocation2 + $0x30] sm:$0xff] %v4245
        %4270 = vst [vmem:[#allocation2 + $0x38] sm:$0xff] %v4246
        %4271 = vst [vmem:[#allocation2 + $0x40] sm:$0xff] %v4247
        %4272 = vst [vmem:[#allocation2 + $0x48] sm:$0xff] %v4248
        %4273 = vst [vmem:[#allocation2 + $0x50] sm:$0xff] %v4249
        %4274 = vst [vmem:[#allocation2 + $0x58] sm:$0xff] %v4250
        %4275 = vst [vmem:[#allocation2 + $0x60] sm:$0xff] %v4251
        %4276 = vst [vmem:[#allocation2 + $0x68] sm:$0xff] %v4252
        %4277 = vst [vmem:[#allocation2 + $0x70] sm:$0xff] %v4253
        %4278 = vst [vmem:[#allocation2 + $0x78] sm:$0xff] %v4254
        %4279 = vst [vmem:[#allocation2 + $0x80] sm:$0xff] %v4255
        %4280 = vst [vmem:[#allocation2 + $0x88] sm:$0xff] %v4256
        %4281 = vst [vmem:[#allocation2 + $0x90] sm:$0xff] %v4257
        %4282 = vst [vmem:[#allocation2 + $0x98] sm:$0xff] %v4258
        %4283 = vst [vmem:[#allocation2 + $0xa0] sm:$0xff] %v4259
        %4284 = vst [vmem:[#allocation2 + $0xa8] sm:$0xff] %v4260
        %4285 = vst [vmem:[#allocation2 + $0xb0] sm:$0xff] %v4261
        %4286 = vst [vmem:[#allocation2 + $0xb8] sm:$0xff] %v4262
        %v4287 = vld [vmem:[#allocation2] sm:$0xff]
        %v4288 = vld [vmem:[#allocation2 + $0x8] sm:$0xff]
        %v4289 = vld [vmem:[#allocation2 + $0x10] sm:$0xff]
        %v4290 = vld [vmem:[#allocation2 + $0x18] sm:$0xff]
        %v4291 = vld [vmem:[#allocation2 + $0x20] sm:$0xff]
        %v4292 = vld [vmem:[#allocation2 + $0x28] sm:$0xff]
        %v4293 = vld [vmem:[#allocation2 + $0x30] sm:$0xff]
        %v4294 = vld [vmem:[#allocation2 + $0x38] sm:$0xff]
        %v4295 = vld [vmem:[#allocation2 + $0x40] sm:$0xff]
        %v4296 = vld [vmem:[#allocation2 + $0x48] sm:$0xff]
        %v4297 = vld [vmem:[#allocation2 + $0x50] sm:$0xff]
        %v4298 = vld [vmem:[#allocation2 + $0x58] sm:$0xff]
        %v4299 = vld [vmem:[#allocation2 + $0x60] sm:$0xff]
        %v4300 = vld [vmem:[#allocation2 + $0x68] sm:$0xff]
        %v4301 = vld [vmem:[#allocation2 + $0x70] sm:$0xff]
        %v4302 = vld [vmem:[#allocation2 + $0x78] sm:$0xff]
        %v4303 = vld [vmem:[#allocation2 + $0x80] sm:$0xff]
        %v4304 = vld [vmem:[#allocation2 + $0x88] sm:$0xff]
        %v4305 = vld [vmem:[#allocation2 + $0x90] sm:$0xff]
        %v4306 = vld [vmem:[#allocation2 + $0x98] sm:$0xff]
        %v4307 = vld [vmem:[#allocation2 + $0xa0] sm:$0xff]
        %v4308 = vld [vmem:[#allocation2 + $0xa8] sm:$0xff]
        %v4309 = vld [vmem:[#allocation2 + $0xb0] sm:$0xff]
        %v4310 = vld [vmem:[#allocation2 + $0xb8] sm:$0xff]
        %v4311 = vld [vmem:[#allocation2 + $0xc0] sm:$0xff]
        %v4312 = vld [vmem:[#allocation2 + $0xc8] sm:$0xff]
        %v4313 = vld [vmem:[#allocation2 + $0xd0] sm:$0xff]
        %v4314 = vld [vmem:[#allocation2 + $0xd8] sm:$0xff]
        %v4315 = vld [vmem:[#allocation2 + $0xe0] sm:$0xff]
        %v4316 = vld [vmem:[#allocation2 + $0xe8] sm:$0xff]
        %v4317 = vld [vmem:[#allocation2 + $0xf0] sm:$0xff]
        %v4318 = vld [vmem:[#allocation2 + $0xf8] sm:$0xff]
        %v4319 = vld [vmem:[#allocation2 + $0x100] sm:$0xff]
        %v4320 = vld [vmem:[#allocation2 + $0x108] sm:$0xff]
        %v4321 = vld [vmem:[#allocation2 + $0x110] sm:$0xff]
        %v4322 = vld [vmem:[#allocation2 + $0x118] sm:$0xff]
        %v4323 = vld [vmem:[#allocation2 + $0x120] sm:$0xff]
        %v4324 = vld [vmem:[#allocation2 + $0x128] sm:$0xff]
        %v4325 = vld [vmem:[#allocation2 + $0x130] sm:$0xff]
        %v4326 = vld [vmem:[#allocation2 + $0x138] sm:$0xff]
        %v4327 = vpack.c.bf16 %v4295, %v4287
        %v4328 = vpack.c.bf16 %v4296, %v4288
        %v4329 = vpack.c.bf16 %v4297, %v4289
        %v4330 = vpack.c.bf16 %v4298, %v4290
        %v4331 = vpack.c.bf16 %v4299, %v4291
        %v4332 = vpack.c.bf16 %v4300, %v4292
        %v4333 = vpack.c.bf16 %v4301, %v4293
        %v4334 = vpack.c.bf16 %v4302, %v4294
        %v4335 = vpack.c.bf16 %v4311, %v4303
        %v4336 = vpack.c.bf16 %v4312, %v4304
        %v4337 = vpack.c.bf16 %v4313, %v4305
        %v4338 = vpack.c.bf16 %v4314, %v4306
        %v4339 = vpack.c.bf16 %v4315, %v4307
        %v4340 = vpack.c.bf16 %v4316, %v4308
        %v4341 = vpack.c.bf16 %v4317, %v4309
        %v4342 = vpack.c.bf16 %v4318, %v4310
        %v4343 = vpack.c.bf16 %v4319, %v4319
        %v4344 = vpack.c.bf16 %v4320, %v4320
        %v4345 = vpack.c.bf16 %v4321, %v4321
        %v4346 = vpack.c.bf16 %v4322, %v4322
        %v4347 = vpack.c.bf16 %v4323, %v4323
        %v4348 = vpack.c.bf16 %v4324, %v4324
        %v4349 = vpack.c.bf16 %v4325, %v4325
        %v4350 = vpack.c.bf16 %v4326, %v4326
        %v4355 = vunpack.c.l.b16 %v310
        %v4356 = vunpack.c.l.b16 %v311
        %v4357 = vunpack.c.l.b16 %v312
        %v4358 = vunpack.c.l.b16 %v313
        %v4359 = vpack.c.b16 %v4356, %v4355
        %v4360 = vpack.c.b16 %v4358, %v4357
        %vm4361 = vcmask 326656
        %v4363 = vsel %vm4361, %v4359, 0
        %v4366 = vsel %vm4361, %v4360, 0
        %vm4368 = vcmask 1043456
        %v4370 = vsel %vm4368, %v4343, 0
        %v4373 = vsel %vm4368, %v4344, 0
        %v4376 = vsel %vm4368, %v4345, 0
        %v4379 = vsel %vm4368, %v4346, 0
        %v4382 = vsel %vm4368, %v4347, 0
        %v4385 = vsel %vm4368, %v4348, 0
        %v4388 = vsel %vm4368, %v4349, 0
        %v4391 = vsel %vm4368, %v4350, 0
        %4393 = vmatpush.bf16.msra.mxu0 0
        %4394 = vmatpush.bf16.msra.mxu0 0
        %4395 = vmatpush.bf16.msra.mxu0 0
        %4396 = vmatpush.bf16.msra.mxu0 0
        %4397 = vmatpush.bf16.msra.mxu0 0
        %4398 = vmatpush.bf16.msra.mxu0 %v4370
        %4399 = vmatpush.bf16.msra.mxu0 %v4335
        %4400 = vmatpush.bf16.msra.mxu0 %v4327
        %4401 = vmatmul.bf16.gmra.mxu0 %v4363
        %v4402 = vpop.f32.mrf.mxu0
        %v4403 = vadd.f32 0.0, %v4402
        %v4404 = vpop.f32.mrf.mxu0
        %v4405 = vadd.f32 0.0, %v4404
        %4406 = vmatmul.bf16.gmra.mxu0 %v4366
        %v4407 = vpop.f32.mrf.mxu0
        %v4408 = vadd.f32 0.0, %v4407
        %v4409 = vpop.f32.mrf.mxu0
        %v4410 = vadd.f32 0.0, %v4409
        %4411 = vdwg.mxu0
        %4412 = vmatpush.bf16.msra.mxu0 0
        %4413 = vmatpush.bf16.msra.mxu0 0
        %4414 = vmatpush.bf16.msra.mxu0 0
        %4415 = vmatpush.bf16.msra.mxu0 0
        %4416 = vmatpush.bf16.msra.mxu0 0
        %4417 = vmatpush.bf16.msra.mxu0 %v4373
        %4418 = vmatpush.bf16.msra.mxu0 %v4336
        %4419 = vmatpush.bf16.msra.mxu0 %v4328
        %4420 = vmatmul.bf16.gmra.mxu0 %v4363
        %v4421 = vpop.f32.mrf.mxu0
        %v4422 = vadd.f32 0.0, %v4421
        %v4423 = vpop.f32.mrf.mxu0
        %v4424 = vadd.f32 0.0, %v4423
        %4425 = vmatmul.bf16.gmra.mxu0 %v4366
        %v4426 = vpop.f32.mrf.mxu0
        %v4427 = vadd.f32 0.0, %v4426
        %v4428 = vpop.f32.mrf.mxu0
        %v4429 = vadd.f32 0.0, %v4428
        %4430 = vdwg.mxu0
        %4431 = vmatpush.bf16.msra.mxu0 0
        %4432 = vmatpush.bf16.msra.mxu0 0
        %4433 = vmatpush.bf16.msra.mxu0 0
        %4434 = vmatpush.bf16.msra.mxu0 0
        %4435 = vmatpush.bf16.msra.mxu0 0
        %4436 = vmatpush.bf16.msra.mxu0 %v4376
        %4437 = vmatpush.bf16.msra.mxu0 %v4337
        %4438 = vmatpush.bf16.msra.mxu0 %v4329
        %4439 = vmatmul.bf16.gmra.mxu0 %v4363
        %v4440 = vpop.f32.mrf.mxu0
        %v4441 = vadd.f32 0.0, %v4440
        %v4442 = vpop.f32.mrf.mxu0
        %v4443 = vadd.f32 0.0, %v4442
        %4444 = vmatmul.bf16.gmra.mxu0 %v4366
        %v4445 = vpop.f32.mrf.mxu0
        %v4446 = vadd.f32 0.0, %v4445
        %v4447 = vpop.f32.mrf.mxu0
        %v4448 = vadd.f32 0.0, %v4447
        %4449 = vdwg.mxu0
        %4450 = vmatpush.bf16.msra.mxu0 0
        %4451 = vmatpush.bf16.msra.mxu0 0
        %4452 = vmatpush.bf16.msra.mxu0 0
        %4453 = vmatpush.bf16.msra.mxu0 0
        %4454 = vmatpush.bf16.msra.mxu0 0
        %4455 = vmatpush.bf16.msra.mxu0 %v4379
        %4456 = vmatpush.bf16.msra.mxu0 %v4338
        %4457 = vmatpush.bf16.msra.mxu0 %v4330
        %4458 = vmatmul.bf16.gmra.mxu0 %v4363
        %v4459 = vpop.f32.mrf.mxu0
        %v4460 = vadd.f32 0.0, %v4459
        %v4461 = vpop.f32.mrf.mxu0
        %v4462 = vadd.f32 0.0, %v4461
        %4463 = vmatmul.bf16.gmra.mxu0 %v4366
        %v4464 = vpop.f32.mrf.mxu0
        %v4465 = vadd.f32 0.0, %v4464
        %v4466 = vpop.f32.mrf.mxu0
        %v4467 = vadd.f32 0.0, %v4466
        %4468 = vdwg.mxu0
        %4469 = vmatpush.bf16.msra.mxu0 0
        %4470 = vmatpush.bf16.msra.mxu0 0
        %4471 = vmatpush.bf16.msra.mxu0 0
        %4472 = vmatpush.bf16.msra.mxu0 0
        %4473 = vmatpush.bf16.msra.mxu0 0
        %4474 = vmatpush.bf16.msra.mxu0 %v4382
        %4475 = vmatpush.bf16.msra.mxu0 %v4339
        %4476 = vmatpush.bf16.msra.mxu0 %v4331
        %4477 = vmatmul.bf16.gmra.mxu0 %v4363
        %v4478 = vpop.f32.mrf.mxu0
        %v4479 = vadd.f32 0.0, %v4478
        %v4480 = vpop.f32.mrf.mxu0
        %v4481 = vadd.f32 0.0, %v4480
        %4482 = vmatmul.bf16.gmra.mxu0 %v4366
        %v4483 = vpop.f32.mrf.mxu0
        %v4484 = vadd.f32 0.0, %v4483
        %v4485 = vpop.f32.mrf.mxu0
        %v4486 = vadd.f32 0.0, %v4485
        %4487 = vdwg.mxu0
        %4488 = vmatpush.bf16.msra.mxu0 0
        %4489 = vmatpush.bf16.msra.mxu0 0
        %4490 = vmatpush.bf16.msra.mxu0 0
        %4491 = vmatpush.bf16.msra.mxu0 0
        %4492 = vmatpush.bf16.msra.mxu0 0
        %4493 = vmatpush.bf16.msra.mxu0 %v4385
        %4494 = vmatpush.bf16.msra.mxu0 %v4340
        %4495 = vmatpush.bf16.msra.mxu0 %v4332
        %4496 = vmatmul.bf16.gmra.mxu0 %v4363
        %v4497 = vpop.f32.mrf.mxu0
        %v4498 = vadd.f32 0.0, %v4497
        %v4499 = vpop.f32.mrf.mxu0
        %v4500 = vadd.f32 0.0, %v4499
        %4501 = vmatmul.bf16.gmra.mxu0 %v4366
        %v4502 = vpop.f32.mrf.mxu0
        %v4503 = vadd.f32 0.0, %v4502
        %v4504 = vpop.f32.mrf.mxu0
        %v4505 = vadd.f32 0.0, %v4504
        %4506 = vdwg.mxu0
        %4507 = vmatpush.bf16.msra.mxu0 0
        %4508 = vmatpush.bf16.msra.mxu0 0
        %4509 = vmatpush.bf16.msra.mxu0 0
        %4510 = vmatpush.bf16.msra.mxu0 0
        %4511 = vmatpush.bf16.msra.mxu0 0
        %4512 = vmatpush.bf16.msra.mxu0 %v4388
        %4513 = vmatpush.bf16.msra.mxu0 %v4341
        %4514 = vmatpush.bf16.msra.mxu0 %v4333
        %4515 = vmatmul.bf16.gmra.mxu0 %v4363
        %v4516 = vpop.f32.mrf.mxu0
        %v4517 = vadd.f32 0.0, %v4516
        %v4518 = vpop.f32.mrf.mxu0
        %v4519 = vadd.f32 0.0, %v4518
        %4520 = vmatmul.bf16.gmra.mxu0 %v4366
        %v4521 = vpop.f32.mrf.mxu0
        %v4522 = vadd.f32 0.0, %v4521
        %v4523 = vpop.f32.mrf.mxu0
        %v4524 = vadd.f32 0.0, %v4523
        %4525 = vdwg.mxu0
        %4526 = vmatpush.bf16.msra.mxu0 0
        %4527 = vmatpush.bf16.msra.mxu0 0
        %4528 = vmatpush.bf16.msra.mxu0 0
        %4529 = vmatpush.bf16.msra.mxu0 0
        %4530 = vmatpush.bf16.msra.mxu0 0
        %4531 = vmatpush.bf16.msra.mxu0 %v4391
        %4532 = vmatpush.bf16.msra.mxu0 %v4342
        %4533 = vmatpush.bf16.msra.mxu0 %v4334
        %4534 = vmatmul.bf16.gmra.mxu0 %v4363
        %v4535 = vpop.f32.mrf.mxu0
        %v4536 = vadd.f32 0.0, %v4535
        %v4537 = vpop.f32.mrf.mxu0
        %v4538 = vadd.f32 0.0, %v4537
        %4539 = vmatmul.bf16.gmra.mxu0 %v4366
        %v4540 = vpop.f32.mrf.mxu0
        %v4541 = vadd.f32 0.0, %v4540
        %v4542 = vpop.f32.mrf.mxu0
        %v4543 = vadd.f32 0.0, %v4542
        %4544 = vdwg.mxu0
        %v4545 = vmul.f32 %v4403, 100.0
        %v4546 = vmul.f32 %v4422, 100.0
        %v4547 = vmul.f32 %v4441, 100.0
        %v4548 = vmul.f32 %v4460, 100.0
        %v4549 = vmul.f32 %v4479, 100.0
        %v4550 = vmul.f32 %v4498, 100.0
        %v4551 = vmul.f32 %v4517, 100.0
        %v4552 = vmul.f32 %v4536, 100.0
        %v4553 = vmul.f32 %v4405, 100.0
        %v4554 = vmul.f32 %v4424, 100.0
        %v4555 = vmul.f32 %v4443, 100.0
        %v4556 = vmul.f32 %v4462, 100.0
        %v4557 = vmul.f32 %v4481, 100.0
        %v4558 = vmul.f32 %v4500, 100.0
        %v4559 = vmul.f32 %v4519, 100.0
        %v4560 = vmul.f32 %v4538, 100.0
        %v4561 = vmul.f32 %v4408, 100.0
        %v4562 = vmul.f32 %v4427, 100.0
        %v4563 = vmul.f32 %v4446, 100.0
        %v4564 = vmul.f32 %v4465, 100.0
        %v4565 = vmul.f32 %v4484, 100.0
        %v4566 = vmul.f32 %v4503, 100.0
        %v4567 = vmul.f32 %v4522, 100.0
        %v4568 = vmul.f32 %v4541, 100.0
        %v4569 = vmul.f32 %v4410, 100.0
        %v4570 = vmul.f32 %v4429, 100.0
        %v4571 = vmul.f32 %v4448, 100.0
        %v4572 = vmul.f32 %v4467, 100.0
        %v4573 = vmul.f32 %v4486, 100.0
        %v4574 = vmul.f32 %v4505, 100.0
        %v4575 = vmul.f32 %v4524, 100.0
        %v4576 = vmul.f32 %v4543, 100.0
        %vm4577 = vcmp.gt.f32.partialorder %v4545, 20.0
        %vm4578 = vcmp.gt.f32.partialorder %v4546, 20.0
        %vm4579 = vcmp.gt.f32.partialorder %v4547, 20.0
        %vm4580 = vcmp.gt.f32.partialorder %v4548, 20.0
        %vm4581 = vcmp.gt.f32.partialorder %v4549, 20.0
        %vm4582 = vcmp.gt.f32.partialorder %v4550, 20.0
        %vm4583 = vcmp.gt.f32.partialorder %v4551, 20.0
        %vm4584 = vcmp.gt.f32.partialorder %v4552, 20.0
        %vm4585 = vcmp.gt.f32.partialorder %v4553, 20.0
        %vm4586 = vcmp.gt.f32.partialorder %v4554, 20.0
        %vm4587 = vcmp.gt.f32.partialorder %v4555, 20.0
        %vm4588 = vcmp.gt.f32.partialorder %v4556, 20.0
        %vm4589 = vcmp.gt.f32.partialorder %v4557, 20.0
        %vm4590 = vcmp.gt.f32.partialorder %v4558, 20.0
        %vm4591 = vcmp.gt.f32.partialorder %v4559, 20.0
        %vm4592 = vcmp.gt.f32.partialorder %v4560, 20.0
        %vm4593 = vcmp.gt.f32.partialorder %v4561, 20.0
        %vm4594 = vcmp.gt.f32.partialorder %v4562, 20.0
        %vm4595 = vcmp.gt.f32.partialorder %v4563, 20.0
        %vm4596 = vcmp.gt.f32.partialorder %v4564, 20.0
        %vm4597 = vcmp.gt.f32.partialorder %v4565, 20.0
        %vm4598 = vcmp.gt.f32.partialorder %v4566, 20.0
        %vm4599 = vcmp.gt.f32.partialorder %v4567, 20.0
        %vm4600 = vcmp.gt.f32.partialorder %v4568, 20.0
        %vm4601 = vcmp.gt.f32.partialorder %v4569, 20.0
        %vm4602 = vcmp.gt.f32.partialorder %v4570, 20.0
        %vm4603 = vcmp.gt.f32.partialorder %v4571, 20.0
        %vm4604 = vcmp.gt.f32.partialorder %v4572, 20.0
        %vm4605 = vcmp.gt.f32.partialorder %v4573, 20.0
        %vm4606 = vcmp.gt.f32.partialorder %v4574, 20.0
        %vm4607 = vcmp.gt.f32.partialorder %v4575, 20.0
        %vm4608 = vcmp.gt.f32.partialorder %v4576, 20.0
        %v4609 = vmin.f32 %v4545, 20.0
        %v4610 = vmin.f32 %v4546, 20.0
        %v4611 = vmin.f32 %v4547, 20.0
        %v4612 = vmin.f32 %v4548, 20.0
        %v4613 = vmin.f32 %v4549, 20.0
        %v4614 = vmin.f32 %v4550, 20.0
        %v4615 = vmin.f32 %v4551, 20.0
        %v4616 = vmin.f32 %v4552, 20.0
        %v4617 = vmin.f32 %v4553, 20.0
        %v4618 = vmin.f32 %v4554, 20.0
        %v4619 = vmin.f32 %v4555, 20.0
        %v4620 = vmin.f32 %v4556, 20.0
        %v4621 = vmin.f32 %v4557, 20.0
        %v4622 = vmin.f32 %v4558, 20.0
        %v4623 = vmin.f32 %v4559, 20.0
        %v4624 = vmin.f32 %v4560, 20.0
        %v4625 = vmin.f32 %v4561, 20.0
        %v4626 = vmin.f32 %v4562, 20.0
        %v4627 = vmin.f32 %v4563, 20.0
        %v4628 = vmin.f32 %v4564, 20.0
        %v4629 = vmin.f32 %v4565, 20.0
        %v4630 = vmin.f32 %v4566, 20.0
        %v4631 = vmin.f32 %v4567, 20.0
        %v4632 = vmin.f32 %v4568, 20.0
        %v4633 = vmin.f32 %v4569, 20.0
        %v4634 = vmin.f32 %v4570, 20.0
        %v4635 = vmin.f32 %v4571, 20.0
        %v4636 = vmin.f32 %v4572, 20.0
        %v4637 = vmin.f32 %v4573, 20.0
        %v4638 = vmin.f32 %v4574, 20.0
        %v4639 = vmin.f32 %v4575, 20.0
        %v4640 = vmin.f32 %v4576, 20.0
        %v4641 = vmul.f32 %v4609, 1.442695
        %v4642 = vpow.pop %v4641
        %v4643 = vmul.f32 %v4610, 1.442695
        %v4644 = vpow.pop %v4643
        %v4645 = vmul.f32 %v4611, 1.442695
        %v4646 = vpow.pop %v4645
        %v4647 = vmul.f32 %v4612, 1.442695
        %v4648 = vpow.pop %v4647
        %v4649 = vmul.f32 %v4613, 1.442695
        %v4650 = vpow.pop %v4649
        %v4651 = vmul.f32 %v4614, 1.442695
        %v4652 = vpow.pop %v4651
        %v4653 = vmul.f32 %v4615, 1.442695
        %v4654 = vpow.pop %v4653
        %v4655 = vmul.f32 %v4616, 1.442695
        %v4656 = vpow.pop %v4655
        %v4657 = vmul.f32 %v4617, 1.442695
        %v4658 = vpow.pop %v4657
        %v4659 = vmul.f32 %v4618, 1.442695
        %v4660 = vpow.pop %v4659
        %v4661 = vmul.f32 %v4619, 1.442695
        %v4662 = vpow.pop %v4661
        %v4663 = vmul.f32 %v4620, 1.442695
        %v4664 = vpow.pop %v4663
        %v4665 = vmul.f32 %v4621, 1.442695
        %v4666 = vpow.pop %v4665
        %v4667 = vmul.f32 %v4622, 1.442695
        %v4668 = vpow.pop %v4667
        %v4669 = vmul.f32 %v4623, 1.442695
        %v4670 = vpow.pop %v4669
        %v4671 = vmul.f32 %v4624, 1.442695
        %v4672 = vpow.pop %v4671
        %v4673 = vmul.f32 %v4625, 1.442695
        %v4674 = vpow.pop %v4673
        %v4675 = vmul.f32 %v4626, 1.442695
        %v4676 = vpow.pop %v4675
        %v4677 = vmul.f32 %v4627, 1.442695
        %v4678 = vpow.pop %v4677
        %v4679 = vmul.f32 %v4628, 1.442695
        %v4680 = vpow.pop %v4679
        %v4681 = vmul.f32 %v4629, 1.442695
        %v4682 = vpow.pop %v4681
        %v4683 = vmul.f32 %v4630, 1.442695
        %v4684 = vpow.pop %v4683
        %v4685 = vmul.f32 %v4631, 1.442695
        %v4686 = vpow.pop %v4685
        %v4687 = vmul.f32 %v4632, 1.442695
        %v4688 = vpow.pop %v4687
        %v4689 = vmul.f32 %v4633, 1.442695
        %v4690 = vpow.pop %v4689
        %v4691 = vmul.f32 %v4634, 1.442695
        %v4692 = vpow.pop %v4691
        %v4693 = vmul.f32 %v4635, 1.442695
        %v4694 = vpow.pop %v4693
        %v4695 = vmul.f32 %v4636, 1.442695
        %v4696 = vpow.pop %v4695
        %v4697 = vmul.f32 %v4637, 1.442695
        %v4698 = vpow.pop %v4697
        %v4699 = vmul.f32 %v4638, 1.442695
        %v4700 = vpow.pop %v4699
        %v4701 = vmul.f32 %v4639, 1.442695
        %v4702 = vpow.pop %v4701
        %v4703 = vmul.f32 %v4640, 1.442695
        %v4704 = vpow.pop %v4703
        %v4705 = vadd.f32 %v4642, 1.0
        %v4706 = vlog2.pop %v4705
        %v4707 = vmul.f32 %v4706, 0.6931472
        %v4708 = vmul.f32 -0.5, %v4642
        %v4709 = vadd.f32 %v4708, 1.0
        %v4710 = vmul.f32 %v4709, %v4642
        %v4711 = vand.u32 2147483647, %v4642
        %vm4712 = vcmp.lt.f32.partialorder %v4711, 0.0004427343
        %v4713 = vsel %vm4712, %v4710, %v4707
        %v4714 = vadd.f32 %v4644, 1.0
        %v4715 = vlog2.pop %v4714
        %v4716 = vmul.f32 %v4715, 0.6931472
        %v4717 = vmul.f32 -0.5, %v4644
        %v4718 = vadd.f32 %v4717, 1.0
        %v4719 = vmul.f32 %v4718, %v4644
        %v4720 = vand.u32 2147483647, %v4644
        %vm4721 = vcmp.lt.f32.partialorder %v4720, 0.0004427343
        %v4722 = vsel %vm4721, %v4719, %v4716
        %v4723 = vadd.f32 %v4646, 1.0
        %v4724 = vlog2.pop %v4723
        %v4725 = vmul.f32 %v4724, 0.6931472
        %v4726 = vmul.f32 -0.5, %v4646
        %v4727 = vadd.f32 %v4726, 1.0
        %v4728 = vmul.f32 %v4727, %v4646
        %v4729 = vand.u32 2147483647, %v4646
        %vm4730 = vcmp.lt.f32.partialorder %v4729, 0.0004427343
        %v4731 = vsel %vm4730, %v4728, %v4725
        %v4732 = vadd.f32 %v4648, 1.0
        %v4733 = vlog2.pop %v4732
        %v4734 = vmul.f32 %v4733, 0.6931472
        %v4735 = vmul.f32 -0.5, %v4648
        %v4736 = vadd.f32 %v4735, 1.0
        %v4737 = vmul.f32 %v4736, %v4648
        %v4738 = vand.u32 2147483647, %v4648
        %vm4739 = vcmp.lt.f32.partialorder %v4738, 0.0004427343
        %v4740 = vsel %vm4739, %v4737, %v4734
        %v4741 = vadd.f32 %v4650, 1.0
        %v4742 = vlog2.pop %v4741
        %v4743 = vmul.f32 %v4742, 0.6931472
        %v4744 = vmul.f32 -0.5, %v4650
        %v4745 = vadd.f32 %v4744, 1.0
        %v4746 = vmul.f32 %v4745, %v4650
        %v4747 = vand.u32 2147483647, %v4650
        %vm4748 = vcmp.lt.f32.partialorder %v4747, 0.0004427343
        %v4749 = vsel %vm4748, %v4746, %v4743
        %v4750 = vadd.f32 %v4652, 1.0
        %v4751 = vlog2.pop %v4750
        %v4752 = vmul.f32 %v4751, 0.6931472
        %v4753 = vmul.f32 -0.5, %v4652
        %v4754 = vadd.f32 %v4753, 1.0
        %v4755 = vmul.f32 %v4754, %v4652
        %v4756 = vand.u32 2147483647, %v4652
        %vm4757 = vcmp.lt.f32.partialorder %v4756, 0.0004427343
        %v4758 = vsel %vm4757, %v4755, %v4752
        %v4759 = vadd.f32 %v4654, 1.0
        %v4760 = vlog2.pop %v4759
        %v4761 = vmul.f32 %v4760, 0.6931472
        %v4762 = vmul.f32 -0.5, %v4654
        %v4763 = vadd.f32 %v4762, 1.0
        %v4764 = vmul.f32 %v4763, %v4654
        %v4765 = vand.u32 2147483647, %v4654
        %vm4766 = vcmp.lt.f32.partialorder %v4765, 0.0004427343
        %v4767 = vsel %vm4766, %v4764, %v4761
        %v4768 = vadd.f32 %v4656, 1.0
        %v4769 = vlog2.pop %v4768
        %v4770 = vmul.f32 %v4769, 0.6931472
        %v4771 = vmul.f32 -0.5, %v4656
        %v4772 = vadd.f32 %v4771, 1.0
        %v4773 = vmul.f32 %v4772, %v4656
        %v4774 = vand.u32 2147483647, %v4656
        %vm4775 = vcmp.lt.f32.partialorder %v4774, 0.0004427343
        %v4776 = vsel %vm4775, %v4773, %v4770
        %v4777 = vadd.f32 %v4658, 1.0
        %v4778 = vlog2.pop %v4777
        %v4779 = vmul.f32 %v4778, 0.6931472
        %v4780 = vmul.f32 -0.5, %v4658
        %v4781 = vadd.f32 %v4780, 1.0
        %v4782 = vmul.f32 %v4781, %v4658
        %v4783 = vand.u32 2147483647, %v4658
        %vm4784 = vcmp.lt.f32.partialorder %v4783, 0.0004427343
        %v4785 = vsel %vm4784, %v4782, %v4779
        %v4786 = vadd.f32 %v4660, 1.0
        %v4787 = vlog2.pop %v4786
        %v4788 = vmul.f32 %v4787, 0.6931472
        %v4789 = vmul.f32 -0.5, %v4660
        %v4790 = vadd.f32 %v4789, 1.0
        %v4791 = vmul.f32 %v4790, %v4660
        %v4792 = vand.u32 2147483647, %v4660
        %vm4793 = vcmp.lt.f32.partialorder %v4792, 0.0004427343
        %v4794 = vsel %vm4793, %v4791, %v4788
        %v4795 = vadd.f32 %v4662, 1.0
        %v4796 = vlog2.pop %v4795
        %v4797 = vmul.f32 %v4796, 0.6931472
        %v4798 = vmul.f32 -0.5, %v4662
        %v4799 = vadd.f32 %v4798, 1.0
        %v4800 = vmul.f32 %v4799, %v4662
        %v4801 = vand.u32 2147483647, %v4662
        %vm4802 = vcmp.lt.f32.partialorder %v4801, 0.0004427343
        %v4803 = vsel %vm4802, %v4800, %v4797
        %v4804 = vadd.f32 %v4664, 1.0
        %v4805 = vlog2.pop %v4804
        %v4806 = vmul.f32 %v4805, 0.6931472
        %v4807 = vmul.f32 -0.5, %v4664
        %v4808 = vadd.f32 %v4807, 1.0
        %v4809 = vmul.f32 %v4808, %v4664
        %v4810 = vand.u32 2147483647, %v4664
        %vm4811 = vcmp.lt.f32.partialorder %v4810, 0.0004427343
        %v4812 = vsel %vm4811, %v4809, %v4806
        %v4813 = vadd.f32 %v4666, 1.0
        %v4814 = vlog2.pop %v4813
        %v4815 = vmul.f32 %v4814, 0.6931472
        %v4816 = vmul.f32 -0.5, %v4666
        %v4817 = vadd.f32 %v4816, 1.0
        %v4818 = vmul.f32 %v4817, %v4666
        %v4819 = vand.u32 2147483647, %v4666
        %vm4820 = vcmp.lt.f32.partialorder %v4819, 0.0004427343
        %v4821 = vsel %vm4820, %v4818, %v4815
        %v4822 = vadd.f32 %v4668, 1.0
        %v4823 = vlog2.pop %v4822
        %v4824 = vmul.f32 %v4823, 0.6931472
        %v4825 = vmul.f32 -0.5, %v4668
        %v4826 = vadd.f32 %v4825, 1.0
        %v4827 = vmul.f32 %v4826, %v4668
        %v4828 = vand.u32 2147483647, %v4668
        %vm4829 = vcmp.lt.f32.partialorder %v4828, 0.0004427343
        %v4830 = vsel %vm4829, %v4827, %v4824
        %v4831 = vadd.f32 %v4670, 1.0
        %v4832 = vlog2.pop %v4831
        %v4833 = vmul.f32 %v4832, 0.6931472
        %v4834 = vmul.f32 -0.5, %v4670
        %v4835 = vadd.f32 %v4834, 1.0
        %v4836 = vmul.f32 %v4835, %v4670
        %v4837 = vand.u32 2147483647, %v4670
        %vm4838 = vcmp.lt.f32.partialorder %v4837, 0.0004427343
        %v4839 = vsel %vm4838, %v4836, %v4833
        %v4840 = vadd.f32 %v4672, 1.0
        %v4841 = vlog2.pop %v4840
        %v4842 = vmul.f32 %v4841, 0.6931472
        %v4843 = vmul.f32 -0.5, %v4672
        %v4844 = vadd.f32 %v4843, 1.0
        %v4845 = vmul.f32 %v4844, %v4672
        %v4846 = vand.u32 2147483647, %v4672
        %vm4847 = vcmp.lt.f32.partialorder %v4846, 0.0004427343
        %v4848 = vsel %vm4847, %v4845, %v4842
        %v4849 = vadd.f32 %v4674, 1.0
        %v4850 = vlog2.pop %v4849
        %v4851 = vmul.f32 %v4850, 0.6931472
        %v4852 = vmul.f32 -0.5, %v4674
        %v4853 = vadd.f32 %v4852, 1.0
        %v4854 = vmul.f32 %v4853, %v4674
        %v4855 = vand.u32 2147483647, %v4674
        %vm4856 = vcmp.lt.f32.partialorder %v4855, 0.0004427343
        %v4857 = vsel %vm4856, %v4854, %v4851
        %v4858 = vadd.f32 %v4676, 1.0
        %v4859 = vlog2.pop %v4858
        %v4860 = vmul.f32 %v4859, 0.6931472
        %v4861 = vmul.f32 -0.5, %v4676
        %v4862 = vadd.f32 %v4861, 1.0
        %v4863 = vmul.f32 %v4862, %v4676
        %v4864 = vand.u32 2147483647, %v4676
        %vm4865 = vcmp.lt.f32.partialorder %v4864, 0.0004427343
        %v4866 = vsel %vm4865, %v4863, %v4860
        %v4867 = vadd.f32 %v4678, 1.0
        %v4868 = vlog2.pop %v4867
        %v4869 = vmul.f32 %v4868, 0.6931472
        %v4870 = vmul.f32 -0.5, %v4678
        %v4871 = vadd.f32 %v4870, 1.0
        %v4872 = vmul.f32 %v4871, %v4678
        %v4873 = vand.u32 2147483647, %v4678
        %vm4874 = vcmp.lt.f32.partialorder %v4873, 0.0004427343
        %v4875 = vsel %vm4874, %v4872, %v4869
        %v4876 = vadd.f32 %v4680, 1.0
        %v4877 = vlog2.pop %v4876
        %v4878 = vmul.f32 %v4877, 0.6931472
        %v4879 = vmul.f32 -0.5, %v4680
        %v4880 = vadd.f32 %v4879, 1.0
        %v4881 = vmul.f32 %v4880, %v4680
        %v4882 = vand.u32 2147483647, %v4680
        %vm4883 = vcmp.lt.f32.partialorder %v4882, 0.0004427343
        %v4884 = vsel %vm4883, %v4881, %v4878
        %v4885 = vadd.f32 %v4682, 1.0
        %v4886 = vlog2.pop %v4885
        %v4887 = vmul.f32 %v4886, 0.6931472
        %v4888 = vmul.f32 -0.5, %v4682
        %v4889 = vadd.f32 %v4888, 1.0
        %v4890 = vmul.f32 %v4889, %v4682
        %v4891 = vand.u32 2147483647, %v4682
        %vm4892 = vcmp.lt.f32.partialorder %v4891, 0.0004427343
        %v4893 = vsel %vm4892, %v4890, %v4887
        %v4894 = vadd.f32 %v4684, 1.0
        %v4895 = vlog2.pop %v4894
        %v4896 = vmul.f32 %v4895, 0.6931472
        %v4897 = vmul.f32 -0.5, %v4684
        %v4898 = vadd.f32 %v4897, 1.0
        %v4899 = vmul.f32 %v4898, %v4684
        %v4900 = vand.u32 2147483647, %v4684
        %vm4901 = vcmp.lt.f32.partialorder %v4900, 0.0004427343
        %v4902 = vsel %vm4901, %v4899, %v4896
        %v4903 = vadd.f32 %v4686, 1.0
        %v4904 = vlog2.pop %v4903
        %v4905 = vmul.f32 %v4904, 0.6931472
        %v4906 = vmul.f32 -0.5, %v4686
        %v4907 = vadd.f32 %v4906, 1.0
        %v4908 = vmul.f32 %v4907, %v4686
        %v4909 = vand.u32 2147483647, %v4686
        %vm4910 = vcmp.lt.f32.partialorder %v4909, 0.0004427343
        %v4911 = vsel %vm4910, %v4908, %v4905
        %v4912 = vadd.f32 %v4688, 1.0
        %v4913 = vlog2.pop %v4912
        %v4914 = vmul.f32 %v4913, 0.6931472
        %v4915 = vmul.f32 -0.5, %v4688
        %v4916 = vadd.f32 %v4915, 1.0
        %v4917 = vmul.f32 %v4916, %v4688
        %v4918 = vand.u32 2147483647, %v4688
        %vm4919 = vcmp.lt.f32.partialorder %v4918, 0.0004427343
        %v4920 = vsel %vm4919, %v4917, %v4914
        %v4921 = vadd.f32 %v4690, 1.0
        %v4922 = vlog2.pop %v4921
        %v4923 = vmul.f32 %v4922, 0.6931472
        %v4924 = vmul.f32 -0.5, %v4690
        %v4925 = vadd.f32 %v4924, 1.0
        %v4926 = vmul.f32 %v4925, %v4690
        %v4927 = vand.u32 2147483647, %v4690
        %vm4928 = vcmp.lt.f32.partialorder %v4927, 0.0004427343
        %v4929 = vsel %vm4928, %v4926, %v4923
        %v4930 = vadd.f32 %v4692, 1.0
        %v4931 = vlog2.pop %v4930
        %v4932 = vmul.f32 %v4931, 0.6931472
        %v4933 = vmul.f32 -0.5, %v4692
        %v4934 = vadd.f32 %v4933, 1.0
        %v4935 = vmul.f32 %v4934, %v4692
        %v4936 = vand.u32 2147483647, %v4692
        %vm4937 = vcmp.lt.f32.partialorder %v4936, 0.0004427343
        %v4938 = vsel %vm4937, %v4935, %v4932
        %v4939 = vadd.f32 %v4694, 1.0
        %v4940 = vlog2.pop %v4939
        %v4941 = vmul.f32 %v4940, 0.6931472
        %v4942 = vmul.f32 -0.5, %v4694
        %v4943 = vadd.f32 %v4942, 1.0
        %v4944 = vmul.f32 %v4943, %v4694
        %v4945 = vand.u32 2147483647, %v4694
        %vm4946 = vcmp.lt.f32.partialorder %v4945, 0.0004427343
        %v4947 = vsel %vm4946, %v4944, %v4941
        %v4948 = vadd.f32 %v4696, 1.0
        %v4949 = vlog2.pop %v4948
        %v4950 = vmul.f32 %v4949, 0.6931472
        %v4951 = vmul.f32 -0.5, %v4696
        %v4952 = vadd.f32 %v4951, 1.0
        %v4953 = vmul.f32 %v4952, %v4696
        %v4954 = vand.u32 2147483647, %v4696
        %vm4955 = vcmp.lt.f32.partialorder %v4954, 0.0004427343
        %v4956 = vsel %vm4955, %v4953, %v4950
        %v4957 = vadd.f32 %v4698, 1.0
        %v4958 = vlog2.pop %v4957
        %v4959 = vmul.f32 %v4958, 0.6931472
        %v4960 = vmul.f32 -0.5, %v4698
        %v4961 = vadd.f32 %v4960, 1.0
        %v4962 = vmul.f32 %v4961, %v4698
        %v4963 = vand.u32 2147483647, %v4698
        %vm4964 = vcmp.lt.f32.partialorder %v4963, 0.0004427343
        %v4965 = vsel %vm4964, %v4962, %v4959
        %v4966 = vadd.f32 %v4700, 1.0
        %v4967 = vlog2.pop %v4966
        %v4968 = vmul.f32 %v4967, 0.6931472
        %v4969 = vmul.f32 -0.5, %v4700
        %v4970 = vadd.f32 %v4969, 1.0
        %v4971 = vmul.f32 %v4970, %v4700
        %v4972 = vand.u32 2147483647, %v4700
        %vm4973 = vcmp.lt.f32.partialorder %v4972, 0.0004427343
        %v4974 = vsel %vm4973, %v4971, %v4968
        %v4975 = vadd.f32 %v4702, 1.0
        %v4976 = vlog2.pop %v4975
        %v4977 = vmul.f32 %v4976, 0.6931472
        %v4978 = vmul.f32 -0.5, %v4702
        %v4979 = vadd.f32 %v4978, 1.0
        %v4980 = vmul.f32 %v4979, %v4702
        %v4981 = vand.u32 2147483647, %v4702
        %vm4982 = vcmp.lt.f32.partialorder %v4981, 0.0004427343
        %v4983 = vsel %vm4982, %v4980, %v4977
        %v4984 = vadd.f32 %v4704, 1.0
        %v4985 = vlog2.pop %v4984
        %v4986 = vmul.f32 %v4985, 0.6931472
        %v4987 = vmul.f32 -0.5, %v4704
        %v4988 = vadd.f32 %v4987, 1.0
        %v4989 = vmul.f32 %v4988, %v4704
        %v4990 = vand.u32 2147483647, %v4704
        %vm4991 = vcmp.lt.f32.partialorder %v4990, 0.0004427343
        %v4992 = vsel %vm4991, %v4989, %v4986
        %v4993 = vmul.f32 %v4713, %v3624
        %v4994 = vmul.f32 %v4722, %v3624
        %v4995 = vmul.f32 %v4731, %v3624
        %v4996 = vmul.f32 %v4740, %v3624
        %v4997 = vmul.f32 %v4749, %v3624
        %v4998 = vmul.f32 %v4758, %v3624
        %v4999 = vmul.f32 %v4767, %v3624
        %v5000 = vmul.f32 %v4776, %v3624
        %v5001 = vmul.f32 %v4785, %v3624
        %v5002 = vmul.f32 %v4794, %v3624
        %v5003 = vmul.f32 %v4803, %v3624
        %v5004 = vmul.f32 %v4812, %v3624
        %v5005 = vmul.f32 %v4821, %v3624
        %v5006 = vmul.f32 %v4830, %v3624
        %v5007 = vmul.f32 %v4839, %v3624
        %v5008 = vmul.f32 %v4848, %v3624
        %v5009 = vmul.f32 %v4857, %v3624
        %v5010 = vmul.f32 %v4866, %v3624
        %v5011 = vmul.f32 %v4875, %v3624
        %v5012 = vmul.f32 %v4884, %v3624
        %v5013 = vmul.f32 %v4893, %v3624
        %v5014 = vmul.f32 %v4902, %v3624
        %v5015 = vmul.f32 %v4911, %v3624
        %v5016 = vmul.f32 %v4920, %v3624
        %v5017 = vmul.f32 %v4929, %v3624
        %v5018 = vmul.f32 %v4938, %v3624
        %v5019 = vmul.f32 %v4947, %v3624
        %v5020 = vmul.f32 %v4956, %v3624
        %v5021 = vmul.f32 %v4965, %v3624
        %v5022 = vmul.f32 %v4974, %v3624
        %v5023 = vmul.f32 %v4983, %v3624
        %v5024 = vmul.f32 %v4992, %v3624
        %v5025 = vsel %vm4577, %v4403, %v4993
        %v5026 = vsel %vm4578, %v4422, %v4994
        %v5027 = vsel %vm4579, %v4441, %v4995
        %v5028 = vsel %vm4580, %v4460, %v4996
        %v5029 = vsel %vm4581, %v4479, %v4997
        %v5030 = vsel %vm4582, %v4498, %v4998
        %v5031 = vsel %vm4583, %v4517, %v4999
        %v5032 = vsel %vm4584, %v4536, %v5000
        %v5033 = vsel %vm4585, %v4405, %v5001
        %v5034 = vsel %vm4586, %v4424, %v5002
        %v5035 = vsel %vm4587, %v4443, %v5003
        %v5036 = vsel %vm4588, %v4462, %v5004
        %v5037 = vsel %vm4589, %v4481, %v5005
        %v5038 = vsel %vm4590, %v4500, %v5006
        %v5039 = vsel %vm4591, %v4519, %v5007
        %v5040 = vsel %vm4592, %v4538, %v5008
        %v5041 = vsel %vm4593, %v4408, %v5009
        %v5042 = vsel %vm4594, %v4427, %v5010
        %v5043 = vsel %vm4595, %v4446, %v5011
        %v5044 = vsel %vm4596, %v4465, %v5012
        %v5045 = vsel %vm4597, %v4484, %v5013
        %v5046 = vsel %vm4598, %v4503, %v5014
        %v5047 = vsel %vm4599, %v4522, %v5015
        %v5048 = vsel %vm4600, %v4541, %v5016
        %v5049 = vsel %vm4601, %v4410, %v5017
        %v5050 = vsel %vm4602, %v4429, %v5018
        %v5051 = vsel %vm4603, %v4448, %v5019
        %v5052 = vsel %vm4604, %v4467, %v5020
        %v5053 = vsel %vm4605, %v4486, %v5021
        %v5054 = vsel %vm4606, %v4505, %v5022
        %v5055 = vsel %vm4607, %v4524, %v5023
        %v5056 = vsel %vm4608, %v4543, %v5024
        %v5057 = vpack.c.bf16 %v5033, %v5025
        %v5058 = vpack.c.bf16 %v5034, %v5026
        %v5059 = vpack.c.bf16 %v5035, %v5027
        %v5060 = vpack.c.bf16 %v5036, %v5028
        %v5061 = vpack.c.bf16 %v5037, %v5029
        %v5062 = vpack.c.bf16 %v5038, %v5030
        %v5063 = vpack.c.bf16 %v5039, %v5031
        %v5064 = vpack.c.bf16 %v5040, %v5032
        %v5065 = vpack.c.bf16 %v5049, %v5041
        %v5066 = vpack.c.bf16 %v5050, %v5042
        %v5067 = vpack.c.bf16 %v5051, %v5043
        %v5068 = vpack.c.bf16 %v5052, %v5044
        %v5069 = vpack.c.bf16 %v5053, %v5045
        %v5070 = vpack.c.bf16 %v5054, %v5046
        %v5071 = vpack.c.bf16 %v5055, %v5047
        %v5072 = vpack.c.bf16 %v5056, %v5048
        %5074 = vset.pattern.permute.xlu0 0
        %5075 = vperm.xlu0 %5074, %v317
        %v5076 = vpop.permute.xlu0 %5075
        %5079 = vset.pattern.permute.xlu0 0
        %5080 = vperm.xlu0 %5079, %v318
        %v5081 = vpop.permute.xlu0 %5080
        %5084 = vset.pattern.permute.xlu0 0
        %5085 = vperm.xlu0 %5084, %v319
        %v5086 = vpop.permute.xlu0 %5085
        %v5091 = vunpack.c.l.b16 %v314
        %v5092 = vunpack.c.l.b16 %v315
        %v5093 = vunpack.c.l.b16 %v316
        %v5094 = vpack.c.b16 %v5092, %v5091
        %v5095 = vpack.c.b16 %v5093, %v5093
        %v5097 = vsel %vm3728, %v5094, 0
        %v5100 = vsel %vm3728, %v5095, 0
        %5102 = vmatpush.bf16.msra.mxu0 0
        %5103 = vmatpush.bf16.msra.mxu0 0
        %5104 = vmatpush.bf16.msra.mxu0 0
        %5105 = vmatpush.bf16.msra.mxu0 0
        %5106 = vmatpush.bf16.msra.mxu0 0
        %5107 = vmatpush.bf16.msra.mxu0 0
        %5108 = vmatpush.bf16.msra.mxu0 %v5065
        %5109 = vmatpush.bf16.msra.mxu0 %v5057
        %5110 = vmatmul.bf16.gmra.mxu0 %v5097
        %v5111 = vpop.f32.mrf.mxu0
        %v5112 = vadd.f32 %v5076, %v5111
        %v5113 = vpop.f32.mrf.mxu0
        %v5114 = vadd.f32 %v5081, %v5113
        %5115 = vmatmul.bf16.gmra.mxu0 %v5100
        %v5116 = vpop.f32.mrf.mxu0
        %v5117 = vadd.f32 %v5086, %v5116
        %v5118 = vpop.f32.mrf.mxu0
        %5119 = vdwg.mxu0
        %5120 = vmatpush.bf16.msra.mxu0 0
        %5121 = vmatpush.bf16.msra.mxu0 0
        %5122 = vmatpush.bf16.msra.mxu0 0
        %5123 = vmatpush.bf16.msra.mxu0 0
        %5124 = vmatpush.bf16.msra.mxu0 0
        %5125 = vmatpush.bf16.msra.mxu0 0
        %5126 = vmatpush.bf16.msra.mxu0 %v5066
        %5127 = vmatpush.bf16.msra.mxu0 %v5058
        %5128 = vmatmul.bf16.gmra.mxu0 %v5097
        %v5129 = vpop.f32.mrf.mxu0
        %v5130 = vadd.f32 %v5076, %v5129
        %v5131 = vpop.f32.mrf.mxu0
        %v5132 = vadd.f32 %v5081, %v5131
        %5133 = vmatmul.bf16.gmra.mxu0 %v5100
        %v5134 = vpop.f32.mrf.mxu0
        %v5135 = vadd.f32 %v5086, %v5134
        %v5136 = vpop.f32.mrf.mxu0
        %5137 = vdwg.mxu0
        %5138 = vmatpush.bf16.msra.mxu0 0
        %5139 = vmatpush.bf16.msra.mxu0 0
        %5140 = vmatpush.bf16.msra.mxu0 0
        %5141 = vmatpush.bf16.msra.mxu0 0
        %5142 = vmatpush.bf16.msra.mxu0 0
        %5143 = vmatpush.bf16.msra.mxu0 0
        %5144 = vmatpush.bf16.msra.mxu0 %v5067
        %5145 = vmatpush.bf16.msra.mxu0 %v5059
        %5146 = vmatmul.bf16.gmra.mxu0 %v5097
        %v5147 = vpop.f32.mrf.mxu0
        %v5148 = vadd.f32 %v5076, %v5147
        %v5149 = vpop.f32.mrf.mxu0
        %v5150 = vadd.f32 %v5081, %v5149
        %5151 = vmatmul.bf16.gmra.mxu0 %v5100
        %v5152 = vpop.f32.mrf.mxu0
        %v5153 = vadd.f32 %v5086, %v5152
        %v5154 = vpop.f32.mrf.mxu0
        %5155 = vdwg.mxu0
        %5156 = vmatpush.bf16.msra.mxu0 0
        %5157 = vmatpush.bf16.msra.mxu0 0
        %5158 = vmatpush.bf16.msra.mxu0 0
        %5159 = vmatpush.bf16.msra.mxu0 0
        %5160 = vmatpush.bf16.msra.mxu0 0
        %5161 = vmatpush.bf16.msra.mxu0 0
        %5162 = vmatpush.bf16.msra.mxu0 %v5068
        %5163 = vmatpush.bf16.msra.mxu0 %v5060
        %5164 = vmatmul.bf16.gmra.mxu0 %v5097
        %v5165 = vpop.f32.mrf.mxu0
        %v5166 = vadd.f32 %v5076, %v5165
        %v5167 = vpop.f32.mrf.mxu0
        %v5168 = vadd.f32 %v5081, %v5167
        %5169 = vmatmul.bf16.gmra.mxu0 %v5100
        %v5170 = vpop.f32.mrf.mxu0
        %v5171 = vadd.f32 %v5086, %v5170
        %v5172 = vpop.f32.mrf.mxu0
        %5173 = vdwg.mxu0
        %5174 = vmatpush.bf16.msra.mxu0 0
        %5175 = vmatpush.bf16.msra.mxu0 0
        %5176 = vmatpush.bf16.msra.mxu0 0
        %5177 = vmatpush.bf16.msra.mxu0 0
        %5178 = vmatpush.bf16.msra.mxu0 0
        %5179 = vmatpush.bf16.msra.mxu0 0
        %5180 = vmatpush.bf16.msra.mxu0 %v5069
        %5181 = vmatpush.bf16.msra.mxu0 %v5061
        %5182 = vmatmul.bf16.gmra.mxu0 %v5097
        %v5183 = vpop.f32.mrf.mxu0
        %v5184 = vadd.f32 %v5076, %v5183
        %v5185 = vpop.f32.mrf.mxu0
        %v5186 = vadd.f32 %v5081, %v5185
        %5187 = vmatmul.bf16.gmra.mxu0 %v5100
        %v5188 = vpop.f32.mrf.mxu0
        %v5189 = vadd.f32 %v5086, %v5188
        %v5190 = vpop.f32.mrf.mxu0
        %5191 = vdwg.mxu0
        %5192 = vmatpush.bf16.msra.mxu0 0
        %5193 = vmatpush.bf16.msra.mxu0 0
        %5194 = vmatpush.bf16.msra.mxu0 0
        %5195 = vmatpush.bf16.msra.mxu0 0
        %5196 = vmatpush.bf16.msra.mxu0 0
        %5197 = vmatpush.bf16.msra.mxu0 0
        %5198 = vmatpush.bf16.msra.mxu0 %v5070
        %5199 = vmatpush.bf16.msra.mxu0 %v5062
        %5200 = vmatmul.bf16.gmra.mxu0 %v5097
        %v5201 = vpop.f32.mrf.mxu0
        %v5202 = vadd.f32 %v5076, %v5201
        %v5203 = vpop.f32.mrf.mxu0
        %v5204 = vadd.f32 %v5081, %v5203
        %5205 = vmatmul.bf16.gmra.mxu0 %v5100
        %v5206 = vpop.f32.mrf.mxu0
        %v5207 = vadd.f32 %v5086, %v5206
        %v5208 = vpop.f32.mrf.mxu0
        %5209 = vdwg.mxu0
        %5210 = vmatpush.bf16.msra.mxu0 0
        %5211 = vmatpush.bf16.msra.mxu0 0
        %5212 = vmatpush.bf16.msra.mxu0 0
        %5213 = vmatpush.bf16.msra.mxu0 0
        %5214 = vmatpush.bf16.msra.mxu0 0
        %5215 = vmatpush.bf16.msra.mxu0 0
        %5216 = vmatpush.bf16.msra.mxu0 %v5071
        %5217 = vmatpush.bf16.msra.mxu0 %v5063
        %5218 = vmatmul.bf16.gmra.mxu0 %v5097
        %v5219 = vpop.f32.mrf.mxu0
        %v5220 = vadd.f32 %v5076, %v5219
        %v5221 = vpop.f32.mrf.mxu0
        %v5222 = vadd.f32 %v5081, %v5221
        %5223 = vmatmul.bf16.gmra.mxu0 %v5100
        %v5224 = vpop.f32.mrf.mxu0
        %v5225 = vadd.f32 %v5086, %v5224
        %v5226 = vpop.f32.mrf.mxu0
        %5227 = vdwg.mxu0
        %5228 = vmatpush.bf16.msra.mxu0 0
        %5229 = vmatpush.bf16.msra.mxu0 0
        %5230 = vmatpush.bf16.msra.mxu0 0
        %5231 = vmatpush.bf16.msra.mxu0 0
        %5232 = vmatpush.bf16.msra.mxu0 0
        %5233 = vmatpush.bf16.msra.mxu0 0
        %5234 = vmatpush.bf16.msra.mxu0 %v5072
        %5235 = vmatpush.bf16.msra.mxu0 %v5064
        %5236 = vmatmul.bf16.gmra.mxu0 %v5097
        %v5237 = vpop.f32.mrf.mxu0
        %v5238 = vadd.f32 %v5076, %v5237
        %v5239 = vpop.f32.mrf.mxu0
        %v5240 = vadd.f32 %v5081, %v5239
        %5241 = vmatmul.bf16.gmra.mxu0 %v5100
        %v5242 = vpop.f32.mrf.mxu0
        %v5243 = vadd.f32 %v5086, %v5242
        %v5244 = vpop.f32.mrf.mxu0
        %5245 = vdwg.mxu0
        %5246 = vst [vmem:[%s296] sm:$0xff] %v5112
        %5247 = vst [vmem:[%s296 + $0x8] sm:$0xff] %v5130
        %5248 = vst [vmem:[%s296 + $0x10] sm:$0xff] %v5148
        %5249 = vst [vmem:[%s296 + $0x18] sm:$0xff] %v5166
        %5250 = vst [vmem:[%s296 + $0x20] sm:$0xff] %v5184
        %5251 = vst [vmem:[%s296 + $0x28] sm:$0xff] %v5202
        %5252 = vst [vmem:[%s296 + $0x30] sm:$0xff] %v5220
        %5253 = vst [vmem:[%s296 + $0x38] sm:$0xff] %v5238
        %5254 = vst [vmem:[%s296 + $0x40] sm:$0xff] %v5114
        %5255 = vst [vmem:[%s296 + $0x48] sm:$0xff] %v5132
        %5256 = vst [vmem:[%s296 + $0x50] sm:$0xff] %v5150
        %5257 = vst [vmem:[%s296 + $0x58] sm:$0xff] %v5168
        %5258 = vst [vmem:[%s296 + $0x60] sm:$0xff] %v5186
        %5259 = vst [vmem:[%s296 + $0x68] sm:$0xff] %v5204
        %5260 = vst [vmem:[%s296 + $0x70] sm:$0xff] %v5222
        %5261 = vst [vmem:[%s296 + $0x78] sm:$0xff] %v5240
        %5262 = vst [vmem:[%s296 + $0x80] sm:$0x1f] %v5117
        %5263 = vst [vmem:[%s296 + $0x88] sm:$0x1f] %v5135
        %5264 = vst [vmem:[%s296 + $0x90] sm:$0x1f] %v5153
        %5265 = vst [vmem:[%s296 + $0x98] sm:$0x1f] %v5171
        %5266 = vst [vmem:[%s296 + $0xa0] sm:$0x1f] %v5189
        %5267 = vst [vmem:[%s296 + $0xa8] sm:$0x1f] %v5207
        %5268 = vst [vmem:[%s296 + $0xb0] sm:$0x1f] %v5225
        %5269 = vst [vmem:[%s296 + $0xb8] sm:$0x1f] %v5243
        %s5270 = sand.u32 %s184, 1
        %s5271 = scalar_lea.sflag [#allocation5], %s5270
        %s5272 = sand.u32 %s184, 1
        %s5273 = smul.addr %s5272, 192
        %s5274 = scalar_lea.vmem [#allocation6], %s5273
        // Predicated region
        $region53: #{tpu_custom_call.1} parent=47 // pred_check
          %p5275 = pneg %p194
        $region54: #{tpu_custom_call.1} parent=47 // pred_check_branch
          %5277 = sbr.rel (%p5275) target = $region56
        $region55: #{tpu_custom_call.1} parent=47 // pred_region
          %s5278 = smul.u32 8, %s24
          %5280 = vsyncadd %s5271, 0
          %s5281 = smul.addr %s5278, 8
          %s5282 = scalar_lea.hbm %s7, %s5281
          %s5283 = sshll.u32 %s5274, 4
          %s5284 = int_to_ptr.vmem [resolvable:$true] %s5283
          %s5285 = sshll.u32 %s5282, 4
          %s5286 = int_to_ptr.hbm [resolvable:$true] %s5285
          %5291 = dma.vmem_to_hbm [thread:$0]  %s5284, 3072, %s5286, %s5271, 1024, 2048, 64
        $region56: #{tpu_custom_call.1} parent=47 // pred_fallthru
          _
      $region48: #{tpu_custom_call.1} parent=5 // pred_fallthru
        _
      %p5292 = scmp.le.s32.totalorder 2, %s19
      // Predicated region
      $region57: #{tpu_custom_call.1} parent=5 // pred_check
        %p5293 = pneg %p5292
      $region58: #{tpu_custom_call.1} parent=5 // pred_check_branch
        %5295 = sbr.rel (%p5293) target = $region60
      $region59: #{tpu_custom_call.1} parent=5 // pred_region
        %s5296 = ssub.s32 %s19, 2
        // Predicated region
        $region61: #{tpu_custom_call.1} parent=59 // pred_check
          %p5297 = pneg %p200
        $region62: #{tpu_custom_call.1} parent=59 // pred_check_branch
          %5299 = sbr.rel (%p5297) target = $region64
        $region63: #{tpu_custom_call.1} parent=59 // pred_region
          %s5300 = sand.u32 %s185, 1
          %s5301 = scalar_lea.sflag [#allocation5], %s5300
          %s5302 = sand.u32 %s185, 1
          %s5303 = smul.addr %s5302, 192
          %s5304 = scalar_lea.vmem [#allocation6], %s5303
          %5306 = dma.done %s5301, 3072
        $region64: #{tpu_custom_call.1} parent=59 // pred_fallthru
          _
      $region60: #{tpu_custom_call.1} parent=5 // pred_fallthru
        _
    $region6: #{tpu_custom_call.1} parent=1 // loop_footer
      %s23 = sadd.s32 1, %s19
    $region7: #{tpu_custom_call.1} parent=1 // loop_footer_branch
      %18 = sbr.rel target = $region3
    $region8: #{tpu_custom_call.1} parent=1 // loop_exit
      _
    %5307 = vsyncpa [#allocation4], 1
    %s5308 = scalar_lea.sflag [#allocation4], 1
    %5309 = vsyncpa %s5308, 1
    %5310 = vsyncpa [#allocation5], 1
    %s5311 = scalar_lea.sflag [#allocation5], 1
    %5312 = vsyncpa %s5311, 1

</llo_original>
